<compile_context>
chip_gen: v7x
topology: tpu7x:2x2x1
jax: 0.10.0
libtpu: 0.0.40
codegen_flags: <defaults>
</compile_context>

<pallas_src>
import functools
import math

import jax
import jax.numpy as jnp
from jax.experimental import pallas as pl
from jax.experimental.pallas import tpu as pltpu


# -----------------------------------------------------------------------------
# Pallas kernel
# -----------------------------------------------------------------------------
def decoder_layer_kernel(
    x_ref, enc_ref,
    ln1_ref, ln2_ref, ln3_ref,
    sa_wqkv_ref, sa_bqkv_ref, sa_wo_ref, sa_bo_ref,
    ca_wq_ref, ca_bq_ref, ca_wkv_ref, ca_bkv_ref, ca_wo_ref, ca_bo_ref,
    w1_ref, b1_ref, w2_ref, b2_ref,
    o_ref,
    *, n_heads, norm_first, mask_future, compute_dtype,
):
    f32 = jnp.float32
    x = x_ref[0].astype(f32)      # (Sq, D)  residual stream kept in f32
    enc = enc_ref[0]              # (Sk, D)
    Sq, D = x.shape
    Sk = enc.shape[0]
    H = n_heads
    dh = D // H

    def cast(a):
        return a.astype(compute_dtype)

    def matmul(a_c, b_c):
        # MXU matmul with f32 accumulation; operands already in compute_dtype.
        return jnp.dot(a_c, b_c, preferred_element_type=f32)

    def split_heads(t):   # (S, D)[compute_dtype] -> (H, S, dh)
        return jnp.concatenate(
            [t[:, h * dh:(h + 1) * dh][None, :, :] for h in range(H)], axis=0)

    def attention_core(q2d, k2d, v2d, wo3_ref, causal):
        # q2d/k2d/v2d already cast to compute_dtype; q pre-scaled by 1/sqrt(dh).
        sk = k2d.shape[0]
        qh = split_heads(q2d)                       # (H, Sq, dh)
        kh = split_heads(k2d)                       # (H, sk, dh)
        vh = split_heads(v2d)                       # (H, sk, dh)
        s = jnp.einsum('hqd,hkd->hqk', qh, kh,
                       preferred_element_type=f32)  # (H, Sq, sk), f32
        if causal:
            # mask built once, broadcast over heads; scores stay f32 so the
            # -1e30 constant is safe.
            row = jax.lax.broadcasted_iota(jnp.int32, (1, Sq, sk), 1)
            col = jax.lax.broadcasted_iota(jnp.int32, (1, Sq, sk), 2)
            s = jnp.where(col <= row, s, jnp.float32(-1e30))
        m = jnp.max(s, axis=-1, keepdims=True)
        p = jnp.exp(s - m)
        p = p * pl.reciprocal(jnp.sum(p, axis=-1, keepdims=True), approx=True)
        ctx = jnp.einsum('hqk,hkd->hqd', cast(p), vh,
                         preferred_element_type=f32)  # (H, Sq, dh), f32
        # merge_heads folded into the output projection:
        #   concat_h(ctx_h) @ Wo == sum_h ctx_h @ Wo_h, Wo pre-reshaped (H, dh, D)
        out = jnp.einsum('hqd,hdk->hqk', cast(ctx), wo3_ref[...],
                         preferred_element_type=f32)  # (H, Sq, D)
        return jnp.sum(out, axis=0)                   # (Sq, D)

    def self_attention(xin):
        qkv = matmul(cast(xin), sa_wqkv_ref[...]) + sa_bqkv_ref[...].astype(f32)
        qkv_c = cast(qkv)                              # single cast, then slice
        ctx = attention_core(qkv_c[:, :D], qkv_c[:, D:2 * D], qkv_c[:, 2 * D:],
                             sa_wo_ref, causal=mask_future)
        return ctx + sa_bo_ref[...].astype(f32)

    def cross_attention(xin):
        q = matmul(cast(xin), ca_wq_ref[...]) + ca_bq_ref[...].astype(f32)   # (Sq, D)
        kv = matmul(cast(enc), ca_wkv_ref[...]) + ca_bkv_ref[...].astype(f32)  # (Sk, 2D)
        kv_c = cast(kv)
        ctx = attention_core(cast(q), kv_c[:, :D], kv_c[:, D:],
                             ca_wo_ref, causal=False)
        return ctx + ca_bo_ref[...].astype(f32)

    def ffn(xin):
        h1 = matmul(cast(xin), w1_ref[...]) + b1_ref[...].astype(f32)
        h1 = jnp.maximum(h1, 0.0)            # ReLU (dropout = identity at inference)
        return matmul(cast(h1), w2_ref[...]) + b2_ref[...].astype(f32)

    def layernorm(v, w_ref):                 # LayerNorm(d_model, bias=False), f32 math
        mu = jnp.mean(v, axis=-1, keepdims=True)
        vc = v - mu
        var = jnp.mean(vc * vc, axis=-1, keepdims=True)
        return vc * jax.lax.rsqrt(var + 1e-5) * w_ref[...].astype(f32)

    if norm_first:
        x = x + self_attention(layernorm(x, ln1_ref))
        x = x + cross_attention(layernorm(x, ln2_ref))
        x = x + ffn(layernorm(x, ln3_ref))
    else:
        x = layernorm(x + self_attention(x), ln1_ref)
        x = layernorm(x + cross_attention(x), ln2_ref)
        x = layernorm(x + ffn(x), ln3_ref)

    o_ref[0] = x.astype(o_ref.dtype)


# -----------------------------------------------------------------------------
# Wrapper
# -----------------------------------------------------------------------------
def transformer_decoder_layer(x, enc_x, params, *, n_heads,
                              norm_first=True, mask_future=True,
                              compute_dtype=None):
    B, Sq, D = x.shape
    _, Sk, _ = enc_x.shape
    H = n_heads
    dh = D // H
    F = params["w1"].shape[1]
    scale = 1.0 / math.sqrt(dh)
    if compute_dtype is None:
        compute_dtype = jnp.bfloat16   # bf16 MXU path by default (f32 accumulate)
    f32 = jnp.float32

    def wcast(w):                      # matmul weights in compute_dtype (lane-dense)
        return w.astype(compute_dtype)

    # ---- fused projection weights (scale folded into Q side) ----------------
    sa_wqkv = wcast(jnp.concatenate(
        [params["sa_wq"] * scale, params["sa_wk"], params["sa_wv"]], axis=1))     # (D, 3D)
    sa_bqkv = jnp.concatenate(
        [params["sa_bq"] * scale, params["sa_bk"], params["sa_bv"]]).reshape(1, 3 * D).astype(f32)
    sa_wo3 = wcast(params["sa_wo"].reshape(H, dh, D))                             # (H, dh, D)
    sa_bo = params["sa_bo"].reshape(1, D).astype(f32)

    ca_wq = wcast(params["ca_wq"] * scale)                                        # (D, D)
    ca_bq = (params["ca_bq"] * scale).reshape(1, D).astype(f32)
    ca_wkv = wcast(jnp.concatenate([params["ca_wk"], params["ca_wv"]], axis=1))   # (D, 2D)
    ca_bkv = jnp.concatenate([params["ca_bk"], params["ca_bv"]]).reshape(1, 2 * D).astype(f32)
    ca_wo3 = wcast(params["ca_wo"].reshape(H, dh, D))                             # (H, dh, D)
    ca_bo = params["ca_bo"].reshape(1, D).astype(f32)

    w1 = wcast(params["w1"])                                                      # (D, F)
    b1 = params["b1"].reshape(1, F).astype(f32)
    w2 = wcast(params["w2"])                                                      # (F, D)
    b2 = params["b2"].reshape(1, D).astype(f32)

    weights = [
        params["ln1"].reshape(1, D).astype(f32),
        params["ln2"].reshape(1, D).astype(f32),
        params["ln3"].reshape(1, D).astype(f32),
        sa_wqkv, sa_bqkv, sa_wo3, sa_bo,
        ca_wq, ca_bq, ca_wkv, ca_bkv, ca_wo3, ca_bo,
        w1, b1, w2, b2,
    ]

    # Weights: whole-array VMEM residents (single-buffered, no per-step DMA).
    weight_spec = pl.BlockSpec(memory_space=pltpu.MemorySpace.VMEM)
    in_specs = [
        pl.BlockSpec((1, Sq, D), lambda b: (b, 0, 0)),
        pl.BlockSpec((1, Sk, D), lambda b: (b, 0, 0)),
    ] + [weight_spec] * len(weights)

    # ---- generation-aware VMEM budget (weights + pipelined blocks + temps) ---
    try:
        vmem_cap = int(pltpu.get_tpu_info().vmem_capacity_bytes)
    except Exception:
        vmem_cap = 128 * 2**20
    weight_bytes = sum(int(w.size) * w.dtype.itemsize for w in weights)
    act_bytes = 2 * (2 * Sq * D + Sk * D) * x.dtype.itemsize        # double-buffered x/enc/out
    tmp_bytes = 4 * (2 * H * Sq * max(Sq, Sk)                       # scores + probs (f32)
                     + Sq * F                                       # FFN hidden (f32)
                     + 8 * Sq * D)                                  # qkv/ctx/head copies
    need = int(1.5 * (weight_bytes + act_bytes + tmp_bytes))
    vmem_ceiling = min(int(0.85 * vmem_cap), vmem_cap - 8 * 2**20)  # headroom on 64 MiB parts
    vmem_limit = max(32 * 2**20, min(need, vmem_ceiling))

    # ---- advisory cost estimate ----------------------------------------------
    flops_per_b = (2 * Sq * D * (3 * D) + 2 * Sq * D * D            # self-attn qkv + out proj
                   + 4 * Sq * Sq * D                                # self-attn scores + context
                   + 2 * Sq * D * D + 2 * Sk * D * (2 * D)          # cross q + kv proj
                   + 2 * Sq * D * D                                 # cross out proj
                   + 4 * Sq * Sk * D                                # cross scores + context
                   + 4 * Sq * D * F)                                # FFN
    cost = pl.CostEstimate(
        flops=int(B * flops_per_b),
        transcendentals=int(B * H * Sq * (Sq + Sk)),
        bytes_accessed=int(weight_bytes + (2 * B * Sq * D + B * Sk * D) * x.dtype.itemsize),
    )

    kernel = functools.partial(
        decoder_layer_kernel,
        n_heads=n_heads, norm_first=norm_first, mask_future=mask_future,
        compute_dtype=compute_dtype)

    return pl.pallas_call(
        kernel,
        out_shape=jax.ShapeDtypeStruct((B, Sq, D), x.dtype),
        grid_spec=pltpu.PrefetchScalarGridSpec(
            num_scalar_prefetch=0,
            grid=(B,),
            in_specs=in_specs,
            out_specs=pl.BlockSpec((1, Sq, D), lambda b: (b, 0, 0)),
        ),
        compiler_params=pltpu.CompilerParams(
            dimension_semantics=("parallel",),
            vmem_limit_bytes=vmem_limit),
        cost_estimate=cost,
    )(x, enc_x, *weights)


# -----------------------------------------------------------------------------
# Deterministic parameter init (nn.Linear convention y = x @ W + b, W: (in, out))
# -----------------------------------------------------------------------------
def init_params(key, d_model, n_heads, dim_feedforward):
    ks = jax.random.split(key, 12)
    s = 0.02

    def dense(k, fi, fo):
        return jax.random.normal(k, (fi, fo), jnp.float32) * s

    D, Fh = d_model, dim_feedforward
    params = {
        "ln1": jnp.ones((D,), jnp.float32),
        "ln2": jnp.ones((D,), jnp.float32),
        "ln3": jnp.ones((D,), jnp.float32),
        # self-attention
        "sa_wq": dense(ks[0], D, D), "sa_bq": jnp.zeros((D,), jnp.float32),
        "sa_wk": dense(ks[1], D, D), "sa_bk": jnp.zeros((D,), jnp.float32),
        "sa_wv": dense(ks[2], D, D), "sa_bv": jnp.zeros((D,), jnp.float32),
        "sa_wo": dense(ks[3], D, D), "sa_bo": jnp.zeros((D,), jnp.float32),
        # cross-attention
        "ca_wq": dense(ks[4], D, D), "ca_bq": jnp.zeros((D,), jnp.float32),
        "ca_wk": dense(ks[5], D, D), "ca_bk": jnp.zeros((D,), jnp.float32),
        "ca_wv": dense(ks[6], D, D), "ca_bv": jnp.zeros((D,), jnp.float32),
        "ca_wo": dense(ks[7], D, D), "ca_bo": jnp.zeros((D,), jnp.float32),
        # FFN
        "w1": dense(ks[8], D, Fh), "b1": jax.random.normal(ks[9], (Fh,), jnp.float32) * s,
        "w2": dense(ks[10], Fh, D), "b2": jax.random.normal(ks[11], (D,), jnp.float32) * s,
    }
    return params


# -----------------------------------------------------------------------------
# Pure-JAX reference (mirrors the PyTorch forward, all f32)
# -----------------------------------------------------------------------------
def ref_decoder_layer(x, enc_x, p, n_heads, norm_first=True, mask_future=True):
    def ln(v, w):
        mu = v.mean(-1, keepdims=True)
        var = ((v - mu) ** 2).mean(-1, keepdims=True)
        return (v - mu) / jnp.sqrt(var + 1e-5) * w

    def mha(q_in, kv_in, wq, bq, wk, bk, wv, bv, wo, bo, causal):
        B, Sq, D = q_in.shape
        Sk = kv_in.shape[1]
        H, dh = n_heads, D // n_heads
        q = (q_in @ wq + bq).reshape(B, Sq, H, dh).transpose(0, 2, 1, 3)
        k = (kv_in @ wk + bk).reshape(B, Sk, H, dh).transpose(0, 2, 1, 3)
        v = (kv_in @ wv + bv).reshape(B, Sk, H, dh).transpose(0, 2, 1, 3)
        s = jnp.einsum("bhqd,bhkd->bhqk", q, k) * (1.0 / (dh ** 0.5))
        if causal:
            row = jnp.arange(Sq)[:, None]
            col = jnp.arange(Sk)[None, :]
            s = jnp.where(col <= row, s, jnp.float32(-1e30))
        a = jax.nn.softmax(s, axis=-1)
        ctx = jnp.einsum("bhqk,bhkd->bhqd", a, v).transpose(0, 2, 1, 3).reshape(B, Sq, D)
        return ctx @ wo + bo

    def ffn(v):
        return jnp.maximum(v @ p["w1"] + p["b1"], 0.0) @ p["w2"] + p["b2"]

    sa = lambda v: mha(v, v, p["sa_wq"], p["sa_bq"], p["sa_wk"], p["sa_bk"],
                       p["sa_wv"], p["sa_bv"], p["sa_wo"], p["sa_bo"],
                       causal=mask_future)
    ca = lambda v: mha(v, enc_x, p["ca_wq"], p["ca_bq"], p["ca_wk"], p["ca_bk"],
                       p["ca_wv"], p["ca_bv"], p["ca_wo"], p["ca_bo"],
                       causal=False)

    if norm_first:
        x = x + sa(ln(x, p["ln1"]))
        x = x + ca(ln(x, p["ln2"]))
        x = x + ffn(ln(x, p["ln3"]))
    else:
        x = ln(x + sa(x), p["ln1"])
        x = ln(x + ca(x), p["ln2"])
        x = ln(x + ffn(x), p["ln3"])
    return x


# -----------------------------------------------------------------------------
if __name__ == "__main__":
    # Small but lane-dense demo shapes: D and F multiples of 128, Sq multiple of 16.
    B, Sq, Sk = 2, 16, 16
    d_model, n_heads, dim_ff = 128, 4, 256

    key = jax.random.PRNGKey(0)
    k_x, k_e, k_p = jax.random.split(key, 3)
    x = jax.random.normal(k_x, (B, Sq, d_model), jnp.float32)
    enc_x = jax.random.normal(k_e, (B, Sk, d_model), jnp.float32)
    params = init_params(k_p, d_model, n_heads, dim_ff)

    ref = ref_decoder_layer(x, enc_x, params, n_heads,
                            norm_first=True, mask_future=True)

    # f32 MXU path: tight check (only the approx softmax reciprocal differs).
    out_f32 = transformer_decoder_layer(
        x, enc_x, params, n_heads=n_heads, norm_first=True, mask_future=True,
        compute_dtype=jnp.float32)
    out_f32 = jax.block_until_ready(out_f32)
    assert out_f32.shape == (B, Sq, d_model)
    assert bool(jnp.allclose(out_f32, ref, rtol=5e-3, atol=5e-3)), "f32 mismatch vs reference"

    # Default bf16 MXU path (f32 LayerNorm/softmax/residual): looser tolerance.
    out_bf16 = transformer_decoder_layer(
        x, enc_x, params, n_heads=n_heads, norm_first=True, mask_future=True)
    out_bf16 = jax.block_until_ready(out_bf16)
    assert out_bf16.shape == (B, Sq, d_model)
    assert bool(jnp.allclose(out_bf16, ref, rtol=3e-2, atol=3e-2)), "bf16 mismatch vs reference"

    print("KERNEL_OK")
</pallas_src>

<mosaic_0001>
module attributes {stable_mosaic.version = 11 : i64} {
  func.func @decoder_layer_kernel(%arg0: i32, %arg1: memref<1x16x128xf32, #tpu.memory_space<vmem>>, %arg2: memref<1x16x128xf32, #tpu.memory_space<vmem>>, %arg3: memref<1x128xf32, #tpu.memory_space<vmem>>, %arg4: memref<1x128xf32, #tpu.memory_space<vmem>>, %arg5: memref<1x128xf32, #tpu.memory_space<vmem>>, %arg6: memref<128x384xf32, #tpu.memory_space<vmem>>, %arg7: memref<1x384xf32, #tpu.memory_space<vmem>>, %arg8: memref<4x32x128xf32, #tpu.memory_space<vmem>>, %arg9: memref<1x128xf32, #tpu.memory_space<vmem>>, %arg10: memref<128x128xf32, #tpu.memory_space<vmem>>, %arg11: memref<1x128xf32, #tpu.memory_space<vmem>>, %arg12: memref<128x256xf32, #tpu.memory_space<vmem>>, %arg13: memref<1x256xf32, #tpu.memory_space<vmem>>, %arg14: memref<4x32x128xf32, #tpu.memory_space<vmem>>, %arg15: memref<1x128xf32, #tpu.memory_space<vmem>>, %arg16: memref<128x256xf32, #tpu.memory_space<vmem>>, %arg17: memref<1x256xf32, #tpu.memory_space<vmem>>, %arg18: memref<256x128xf32, #tpu.memory_space<vmem>>, %arg19: memref<1x128xf32, #tpu.memory_space<vmem>>, %arg20: memref<1x16x128xf32, #tpu.memory_space<vmem>>) attributes {dimension_semantics = [#tpu.dimension_semantics<parallel>], iteration_bounds = array<i64: 2>, scalar_prefetch = 0 : i64, scratch_operands = 0 : i64, tpu.core_type = #tpu.core_type<tc>, window_params = [{transform_indices = @transform_0, window_bounds = array<i64: 1, 16, 128>}, {transform_indices = @transform_1, window_bounds = array<i64: 1, 16, 128>}, {pipeline_mode = #tpu.pipeline_mode<synchronous>, transform_indices = @transform_2, window_bounds = array<i64: 1, 128>}, {pipeline_mode = #tpu.pipeline_mode<synchronous>, transform_indices = @transform_3, window_bounds = array<i64: 1, 128>}, {pipeline_mode = #tpu.pipeline_mode<synchronous>, transform_indices = @transform_4, window_bounds = array<i64: 1, 128>}, {pipeline_mode = #tpu.pipeline_mode<synchronous>, transform_indices = @transform_5, window_bounds = array<i64: 128, 384>}, {pipeline_mode = #tpu.pipeline_mode<synchronous>, transform_indices = @transform_6, window_bounds = array<i64: 1, 384>}, {pipeline_mode = #tpu.pipeline_mode<synchronous>, transform_indices = @transform_7, window_bounds = array<i64: 4, 32, 128>}, {pipeline_mode = #tpu.pipeline_mode<synchronous>, transform_indices = @transform_8, window_bounds = array<i64: 1, 128>}, {pipeline_mode = #tpu.pipeline_mode<synchronous>, transform_indices = @transform_9, window_bounds = array<i64: 128, 128>}, {pipeline_mode = #tpu.pipeline_mode<synchronous>, transform_indices = @transform_10, window_bounds = array<i64: 1, 128>}, {pipeline_mode = #tpu.pipeline_mode<synchronous>, transform_indices = @transform_11, window_bounds = array<i64: 128, 256>}, {pipeline_mode = #tpu.pipeline_mode<synchronous>, transform_indices = @transform_12, window_bounds = array<i64: 1, 256>}, {pipeline_mode = #tpu.pipeline_mode<synchronous>, transform_indices = @transform_13, window_bounds = array<i64: 4, 32, 128>}, {pipeline_mode = #tpu.pipeline_mode<synchronous>, transform_indices = @transform_14, window_bounds = array<i64: 1, 128>}, {pipeline_mode = #tpu.pipeline_mode<synchronous>, transform_indices = @transform_15, window_bounds = array<i64: 128, 256>}, {pipeline_mode = #tpu.pipeline_mode<synchronous>, transform_indices = @transform_16, window_bounds = array<i64: 1, 256>}, {pipeline_mode = #tpu.pipeline_mode<synchronous>, transform_indices = @transform_17, window_bounds = array<i64: 256, 128>}, {pipeline_mode = #tpu.pipeline_mode<synchronous>, transform_indices = @transform_18, window_bounds = array<i64: 1, 128>}, {transform_indices = @transform_19, window_bounds = array<i64: 1, 16, 128>}]} {
    %c0 = arith.constant 0 : index
    %c0_0 = arith.constant 0 : index
    %c0_1 = arith.constant 0 : index
    %0 = vector.load %arg1[%c0, %c0_0, %c0_1] : memref<1x16x128xf32, #tpu.memory_space<vmem>>, vector<1x16x128xf32>
    %1 = vector.shape_cast %0 : vector<1x16x128xf32> to vector<16x128xf32>
    %c0_2 = arith.constant 0 : index
    %c0_3 = arith.constant 0 : index
    %c0_4 = arith.constant 0 : index
    %2 = vector.load %arg2[%c0_2, %c0_3, %c0_4] : memref<1x16x128xf32, #tpu.memory_space<vmem>>, vector<1x16x128xf32>
    %3 = vector.shape_cast %2 : vector<1x16x128xf32> to vector<16x128xf32>
    %cst = arith.constant dense<0.000000e+00> : vector<16xf32>
    %4 = vector.multi_reduction <add>, %1, %cst [1] : vector<16x128xf32> to vector<16xf32>
    %5 = vector.shape_cast %4 : vector<16xf32> to vector<16x1xf32>
    %cst_5 = arith.constant 1.280000e+02 : f32
    %6 = vector.broadcast %cst_5 : f32 to vector<16x1xf32>
    %7 = arith.divf %5, %6 : vector<16x1xf32>
    %8 = vector.broadcast %7 : vector<16x1xf32> to vector<16x128xf32>
    %9 = arith.subf %1, %8 : vector<16x128xf32>
    %10 = arith.mulf %9, %9 : vector<16x128xf32>
    %cst_6 = arith.constant dense<0.000000e+00> : vector<16xf32>
    %11 = vector.multi_reduction <add>, %10, %cst_6 [1] : vector<16x128xf32> to vector<16xf32>
    %12 = vector.shape_cast %11 : vector<16xf32> to vector<16x1xf32>
    %cst_7 = arith.constant 1.280000e+02 : f32
    %13 = vector.broadcast %cst_7 : f32 to vector<16x1xf32>
    %14 = arith.divf %12, %13 : vector<16x1xf32>
    %cst_8 = arith.constant 9.99999974E-6 : f32
    %15 = vector.broadcast %cst_8 : f32 to vector<16x1xf32>
    %16 = arith.addf %14, %15 : vector<16x1xf32>
    %17 = math.rsqrt %16 : vector<16x1xf32>
    %18 = vector.broadcast %17 : vector<16x1xf32> to vector<16x128xf32>
    %19 = arith.mulf %9, %18 : vector<16x128xf32>
    %c0_9 = arith.constant 0 : index
    %c0_10 = arith.constant 0 : index
    %20 = vector.load %arg3[%c0_9, %c0_10] : memref<1x128xf32, #tpu.memory_space<vmem>>, vector<1x128xf32>
    %21 = vector.broadcast %20 : vector<1x128xf32> to vector<16x128xf32>
    %22 = arith.mulf %19, %21 : vector<16x128xf32>
    %c0_11 = arith.constant 0 : index
    %c0_12 = arith.constant 0 : index
    %23 = vector.load %arg6[%c0_11, %c0_12] : memref<128x384xf32, #tpu.memory_space<vmem>>, vector<128x384xf32>
    %cst_13 = arith.constant dense<0.000000e+00> : vector<16x384xf32>
    %24 = tpu.matmul %22, %23, %cst_13 {dimension_numbers = #tpu.dot_dimension_numbers<[1], [0], [0], [1], [0, 0, 1, 1], [], []>} : vector<16x128xf32>, vector<128x384xf32>, vector<16x384xf32> -> vector<16x384xf32>
    %c0_14 = arith.constant 0 : index
    %c0_15 = arith.constant 0 : index
    %25 = vector.load %arg7[%c0_14, %c0_15] : memref<1x384xf32, #tpu.memory_space<vmem>>, vector<1x384xf32>
    %26 = vector.broadcast %25 : vector<1x384xf32> to vector<16x384xf32>
    %27 = arith.addf %24, %26 : vector<16x384xf32>
    %28 = vector.extract_strided_slice %27 {offsets = [0, 0], sizes = [16, 128], strides = [1, 1]} : vector<16x384xf32> to vector<16x128xf32>
    %29 = vector.extract_strided_slice %27 {offsets = [0, 128], sizes = [16, 128], strides = [1, 1]} : vector<16x384xf32> to vector<16x128xf32>
    %30 = vector.extract_strided_slice %27 {offsets = [0, 256], sizes = [16, 128], strides = [1, 1]} : vector<16x384xf32> to vector<16x128xf32>
    %31 = vector.extract_strided_slice %28 {offsets = [0, 0], sizes = [16, 32], strides = [1, 1]} : vector<16x128xf32> to vector<16x32xf32>
    %32 = vector.shape_cast %31 : vector<16x32xf32> to vector<1x16x32xf32>
    %33 = vector.extract_strided_slice %28 {offsets = [0, 32], sizes = [16, 32], strides = [1, 1]} : vector<16x128xf32> to vector<16x32xf32>
    %34 = vector.shape_cast %33 : vector<16x32xf32> to vector<1x16x32xf32>
    %35 = vector.extract_strided_slice %28 {offsets = [0, 64], sizes = [16, 32], strides = [1, 1]} : vector<16x128xf32> to vector<16x32xf32>
    %36 = vector.shape_cast %35 : vector<16x32xf32> to vector<1x16x32xf32>
    %37 = vector.extract_strided_slice %28 {offsets = [0, 96], sizes = [16, 32], strides = [1, 1]} : vector<16x128xf32> to vector<16x32xf32>
    %38 = vector.shape_cast %37 : vector<16x32xf32> to vector<1x16x32xf32>
    %39 = tpu.concatenate %32, %34, %36, %38 in 0 : vector<1x16x32xf32>, vector<1x16x32xf32>, vector<1x16x32xf32>, vector<1x16x32xf32> -> vector<4x16x32xf32>
    %40 = vector.extract_strided_slice %29 {offsets = [0, 0], sizes = [16, 32], strides = [1, 1]} : vector<16x128xf32> to vector<16x32xf32>
    %41 = vector.shape_cast %40 : vector<16x32xf32> to vector<1x16x32xf32>
    %42 = vector.extract_strided_slice %29 {offsets = [0, 32], sizes = [16, 32], strides = [1, 1]} : vector<16x128xf32> to vector<16x32xf32>
    %43 = vector.shape_cast %42 : vector<16x32xf32> to vector<1x16x32xf32>
    %44 = vector.extract_strided_slice %29 {offsets = [0, 64], sizes = [16, 32], strides = [1, 1]} : vector<16x128xf32> to vector<16x32xf32>
    %45 = vector.shape_cast %44 : vector<16x32xf32> to vector<1x16x32xf32>
    %46 = vector.extract_strided_slice %29 {offsets = [0, 96], sizes = [16, 32], strides = [1, 1]} : vector<16x128xf32> to vector<16x32xf32>
    %47 = vector.shape_cast %46 : vector<16x32xf32> to vector<1x16x32xf32>
    %48 = tpu.concatenate %41, %43, %45, %47 in 0 : vector<1x16x32xf32>, vector<1x16x32xf32>, vector<1x16x32xf32>, vector<1x16x32xf32> -> vector<4x16x32xf32>
    %49 = vector.extract_strided_slice %30 {offsets = [0, 0], sizes = [16, 32], strides = [1, 1]} : vector<16x128xf32> to vector<16x32xf32>
    %50 = vector.shape_cast %49 : vector<16x32xf32> to vector<1x16x32xf32>
    %51 = vector.extract_strided_slice %30 {offsets = [0, 32], sizes = [16, 32], strides = [1, 1]} : vector<16x128xf32> to vector<16x32xf32>
    %52 = vector.shape_cast %51 : vector<16x32xf32> to vector<1x16x32xf32>
    %53 = vector.extract_strided_slice %30 {offsets = [0, 64], sizes = [16, 32], strides = [1, 1]} : vector<16x128xf32> to vector<16x32xf32>
    %54 = vector.shape_cast %53 : vector<16x32xf32> to vector<1x16x32xf32>
    %55 = vector.extract_strided_slice %30 {offsets = [0, 96], sizes = [16, 32], strides = [1, 1]} : vector<16x128xf32> to vector<16x32xf32>
    %56 = vector.shape_cast %55 : vector<16x32xf32> to vector<1x16x32xf32>
    %57 = tpu.concatenate %50, %52, %54, %56 in 0 : vector<1x16x32xf32>, vector<1x16x32xf32>, vector<1x16x32xf32>, vector<1x16x32xf32> -> vector<4x16x32xf32>
    "tpu.trace_start"() <{level = 10 : i32, message = "hqd,hkd->hqk"}> : () -> ()
    %cst_16 = arith.constant dense<0.000000e+00> : vector<4x16x16xf32>
    %58 = tpu.matmul %39, %48, %cst_16 {dimension_numbers = #tpu.dot_dimension_numbers<[2], [2], [1], [1], [0, 0, 0, 1, 1, 1], [0], [0]>} : vector<4x16x32xf32>, vector<4x16x32xf32>, vector<4x16x16xf32> -> vector<4x16x16xf32>
    "tpu.trace_stop"() : () -> ()
    %59 = tpu.iota {dimensions = array<i32: 1>} : vector<1x16x16xi32>
    %60 = tpu.iota {dimensions = array<i32: 2>} : vector<1x16x16xi32>
    %61 = arith.cmpi sle, %60, %59 : vector<1x16x16xi32>
    %cst_17 = arith.constant -1.000000e+30 : f32
    %62 = vector.shape_cast %61 : vector<1x16x16xi1> to vector<1x16x16xi1>
    %63 = vector.broadcast %62 : vector<1x16x16xi1> to vector<4x16x16xi1>
    %64 = vector.broadcast %cst_17 : f32 to vector<4x16x16xf32>
    %65 = arith.select %63, %58, %64 : vector<4x16x16xi1>, vector<4x16x16xf32>
    %cst_18 = arith.constant dense<0xFF800000> : vector<4x16xf32>
    %66 = vector.multi_reduction <maximumf>, %65, %cst_18 [2] : vector<4x16x16xf32> to vector<4x16xf32>
    %67 = vector.shape_cast %66 : vector<4x16xf32> to vector<4x16x1xf32>
    %68 = vector.broadcast %67 : vector<4x16x1xf32> to vector<4x16x16xf32>
    %69 = arith.subf %65, %68 : vector<4x16x16xf32>
    %70 = math.exp %69 : vector<4x16x16xf32>
    %cst_19 = arith.constant dense<0.000000e+00> : vector<4x16xf32>
    %71 = vector.multi_reduction <add>, %70, %cst_19 [2] : vector<4x16x16xf32> to vector<4x16xf32>
    %72 = vector.shape_cast %71 : vector<4x16xf32> to vector<4x16x1xf32>
    %73 = tpu.reciprocal %72 {approx = true} : vector<4x16x1xf32> -> vector<4x16x1xf32>
    %74 = vector.broadcast %73 : vector<4x16x1xf32> to vector<4x16x16xf32>
    %75 = arith.mulf %70, %74 : vector<4x16x16xf32>
    "tpu.trace_start"() <{level = 10 : i32, message = "hqk,hkd->hqd"}> : () -> ()
    %cst_20 = arith.constant dense<0.000000e+00> : vector<4x16x32xf32>
    %76 = tpu.matmul %75, %57, %cst_20 {dimension_numbers = #tpu.dot_dimension_numbers<[2], [1], [1], [2], [0, 0, 0, 1, 1, 2], [0], [0]>} : vector<4x16x16xf32>, vector<4x16x32xf32>, vector<4x16x32xf32> -> vector<4x16x32xf32>
    "tpu.trace_stop"() : () -> ()
    %c0_21 = arith.constant 0 : index
    %c0_22 = arith.constant 0 : index
    %c0_23 = arith.constant 0 : index
    %77 = vector.load %arg8[%c0_21, %c0_22, %c0_23] : memref<4x32x128xf32, #tpu.memory_space<vmem>>, vector<4x32x128xf32>
    "tpu.trace_start"() <{level = 10 : i32, message = "hqd,hdk->hqk"}> : () -> ()
    %cst_24 = arith.constant dense<0.000000e+00> : vector<4x16x128xf32>
    %78 = tpu.matmul %76, %77, %cst_24 {dimension_numbers = #tpu.dot_dimension_numbers<[2], [1], [1], [2], [0, 0, 0, 1, 1, 2], [0], [0]>} : vector<4x16x32xf32>, vector<4x32x128xf32>, vector<4x16x128xf32> -> vector<4x16x128xf32>
    "tpu.trace_stop"() : () -> ()
    %cst_25 = arith.constant dense<0.000000e+00> : vector<16x128xf32>
    %79 = vector.multi_reduction <add>, %78, %cst_25 [0] : vector<4x16x128xf32> to vector<16x128xf32>
    %c0_26 = arith.constant 0 : index
    %c0_27 = arith.constant 0 : index
    %80 = vector.load %arg9[%c0_26, %c0_27] : memref<1x128xf32, #tpu.memory_space<vmem>>, vector<1x128xf32>
    %81 = vector.broadcast %80 : vector<1x128xf32> to vector<16x128xf32>
    %82 = arith.addf %79, %81 : vector<16x128xf32>
    %83 = arith.addf %1, %82 : vector<16x128xf32>
    %cst_28 = arith.constant dense<0.000000e+00> : vector<16xf32>
    %84 = vector.multi_reduction <add>, %83, %cst_28 [1] : vector<16x128xf32> to vector<16xf32>
    %85 = vector.shape_cast %84 : vector<16xf32> to vector<16x1xf32>
    %cst_29 = arith.constant 1.280000e+02 : f32
    %86 = vector.broadcast %cst_29 : f32 to vector<16x1xf32>
    %87 = arith.divf %85, %86 : vector<16x1xf32>
    %88 = vector.broadcast %87 : vector<16x1xf32> to vector<16x128xf32>
    %89 = arith.subf %83, %88 : vector<16x128xf32>
    %90 = arith.mulf %89, %89 : vector<16x128xf32>
    %cst_30 = arith.constant dense<0.000000e+00> : vector<16xf32>
    %91 = vector.multi_reduction <add>, %90, %cst_30 [1] : vector<16x128xf32> to vector<16xf32>
    %92 = vector.shape_cast %91 : vector<16xf32> to vector<16x1xf32>
    %cst_31 = arith.constant 1.280000e+02 : f32
    %93 = vector.broadcast %cst_31 : f32 to vector<16x1xf32>
    %94 = arith.divf %92, %93 : vector<16x1xf32>
    %cst_32 = arith.constant 9.99999974E-6 : f32
    %95 = vector.broadcast %cst_32 : f32 to vector<16x1xf32>
    %96 = arith.addf %94, %95 : vector<16x1xf32>
    %97 = math.rsqrt %96 : vector<16x1xf32>
    %98 = vector.broadcast %97 : vector<16x1xf32> to vector<16x128xf32>
    %99 = arith.mulf %89, %98 : vector<16x128xf32>
    %c0_33 = arith.constant 0 : index
    %c0_34 = arith.constant 0 : index
    %100 = vector.load %arg4[%c0_33, %c0_34] : memref<1x128xf32, #tpu.memory_space<vmem>>, vector<1x128xf32>
    %101 = vector.broadcast %100 : vector<1x128xf32> to vector<16x128xf32>
    %102 = arith.mulf %99, %101 : vector<16x128xf32>
    %c0_35 = arith.constant 0 : index
    %c0_36 = arith.constant 0 : index
    %103 = vector.load %arg10[%c0_35, %c0_36] : memref<128x128xf32, #tpu.memory_space<vmem>>, vector<128x128xf32>
    %cst_37 = arith.constant dense<0.000000e+00> : vector<16x128xf32>
    %104 = tpu.matmul %102, %103, %cst_37 {dimension_numbers = #tpu.dot_dimension_numbers<[1], [0], [0], [1], [0, 0, 1, 1], [], []>} : vector<16x128xf32>, vector<128x128xf32>, vector<16x128xf32> -> vector<16x128xf32>
    %c0_38 = arith.constant 0 : index
    %c0_39 = arith.constant 0 : index
    %105 = vector.load %arg11[%c0_38, %c0_39] : memref<1x128xf32, #tpu.memory_space<vmem>>, vector<1x128xf32>
    %106 = vector.broadcast %105 : vector<1x128xf32> to vector<16x128xf32>
    %107 = arith.addf %104, %106 : vector<16x128xf32>
    %c0_40 = arith.constant 0 : index
    %c0_41 = arith.constant 0 : index
    %108 = vector.load %arg12[%c0_40, %c0_41] : memref<128x256xf32, #tpu.memory_space<vmem>>, vector<128x256xf32>
    %cst_42 = arith.constant dense<0.000000e+00> : vector<16x256xf32>
    %109 = tpu.matmul %3, %108, %cst_42 {dimension_numbers = #tpu.dot_dimension_numbers<[1], [0], [0], [1], [0, 0, 1, 1], [], []>} : vector<16x128xf32>, vector<128x256xf32>, vector<16x256xf32> -> vector<16x256xf32>
    %c0_43 = arith.constant 0 : index
    %c0_44 = arith.constant 0 : index
    %110 = vector.load %arg13[%c0_43, %c0_44] : memref<1x256xf32, #tpu.memory_space<vmem>>, vector<1x256xf32>
    %111 = vector.broadcast %110 : vector<1x256xf32> to vector<16x256xf32>
    %112 = arith.addf %109, %111 : vector<16x256xf32>
    %113 = vector.extract_strided_slice %112 {offsets = [0, 0], sizes = [16, 128], strides = [1, 1]} : vector<16x256xf32> to vector<16x128xf32>
    %114 = vector.extract_strided_slice %112 {offsets = [0, 128], sizes = [16, 128], strides = [1, 1]} : vector<16x256xf32> to vector<16x128xf32>
    %115 = vector.extract_strided_slice %107 {offsets = [0, 0], sizes = [16, 32], strides = [1, 1]} : vector<16x128xf32> to vector<16x32xf32>
    %116 = vector.shape_cast %115 : vector<16x32xf32> to vector<1x16x32xf32>
    %117 = vector.extract_strided_slice %107 {offsets = [0, 32], sizes = [16, 32], strides = [1, 1]} : vector<16x128xf32> to vector<16x32xf32>
    %118 = vector.shape_cast %117 : vector<16x32xf32> to vector<1x16x32xf32>
    %119 = vector.extract_strided_slice %107 {offsets = [0, 64], sizes = [16, 32], strides = [1, 1]} : vector<16x128xf32> to vector<16x32xf32>
    %120 = vector.shape_cast %119 : vector<16x32xf32> to vector<1x16x32xf32>
    %121 = vector.extract_strided_slice %107 {offsets = [0, 96], sizes = [16, 32], strides = [1, 1]} : vector<16x128xf32> to vector<16x32xf32>
    %122 = vector.shape_cast %121 : vector<16x32xf32> to vector<1x16x32xf32>
    %123 = tpu.concatenate %116, %118, %120, %122 in 0 : vector<1x16x32xf32>, vector<1x16x32xf32>, vector<1x16x32xf32>, vector<1x16x32xf32> -> vector<4x16x32xf32>
    %124 = vector.extract_strided_slice %113 {offsets = [0, 0], sizes = [16, 32], strides = [1, 1]} : vector<16x128xf32> to vector<16x32xf32>
    %125 = vector.shape_cast %124 : vector<16x32xf32> to vector<1x16x32xf32>
    %126 = vector.extract_strided_slice %113 {offsets = [0, 32], sizes = [16, 32], strides = [1, 1]} : vector<16x128xf32> to vector<16x32xf32>
    %127 = vector.shape_cast %126 : vector<16x32xf32> to vector<1x16x32xf32>
    %128 = vector.extract_strided_slice %113 {offsets = [0, 64], sizes = [16, 32], strides = [1, 1]} : vector<16x128xf32> to vector<16x32xf32>
    %129 = vector.shape_cast %128 : vector<16x32xf32> to vector<1x16x32xf32>
    %130 = vector.extract_strided_slice %113 {offsets = [0, 96], sizes = [16, 32], strides = [1, 1]} : vector<16x128xf32> to vector<16x32xf32>
    %131 = vector.shape_cast %130 : vector<16x32xf32> to vector<1x16x32xf32>
    %132 = tpu.concatenate %125, %127, %129, %131 in 0 : vector<1x16x32xf32>, vector<1x16x32xf32>, vector<1x16x32xf32>, vector<1x16x32xf32> -> vector<4x16x32xf32>
    %133 = vector.extract_strided_slice %114 {offsets = [0, 0], sizes = [16, 32], strides = [1, 1]} : vector<16x128xf32> to vector<16x32xf32>
    %134 = vector.shape_cast %133 : vector<16x32xf32> to vector<1x16x32xf32>
    %135 = vector.extract_strided_slice %114 {offsets = [0, 32], sizes = [16, 32], strides = [1, 1]} : vector<16x128xf32> to vector<16x32xf32>
    %136 = vector.shape_cast %135 : vector<16x32xf32> to vector<1x16x32xf32>
    %137 = vector.extract_strided_slice %114 {offsets = [0, 64], sizes = [16, 32], strides = [1, 1]} : vector<16x128xf32> to vector<16x32xf32>
    %138 = vector.shape_cast %137 : vector<16x32xf32> to vector<1x16x32xf32>
    %139 = vector.extract_strided_slice %114 {offsets = [0, 96], sizes = [16, 32], strides = [1, 1]} : vector<16x128xf32> to vector<16x32xf32>
    %140 = vector.shape_cast %139 : vector<16x32xf32> to vector<1x16x32xf32>
    %141 = tpu.concatenate %134, %136, %138, %140 in 0 : vector<1x16x32xf32>, vector<1x16x32xf32>, vector<1x16x32xf32>, vector<1x16x32xf32> -> vector<4x16x32xf32>
    "tpu.trace_start"() <{level = 10 : i32, message = "hqd,hkd->hqk"}> : () -> ()
    %cst_45 = arith.constant dense<0.000000e+00> : vector<4x16x16xf32>
    %142 = tpu.matmul %123, %132, %cst_45 {dimension_numbers = #tpu.dot_dimension_numbers<[2], [2], [1], [1], [0, 0, 0, 1, 1, 1], [0], [0]>} : vector<4x16x32xf32>, vector<4x16x32xf32>, vector<4x16x16xf32> -> vector<4x16x16xf32>
    "tpu.trace_stop"() : () -> ()
    %cst_46 = arith.constant dense<0xFF800000> : vector<4x16xf32>
    %143 = vector.multi_reduction <maximumf>, %142, %cst_46 [2] : vector<4x16x16xf32> to vector<4x16xf32>
    %144 = vector.shape_cast %143 : vector<4x16xf32> to vector<4x16x1xf32>
    %145 = vector.broadcast %144 : vector<4x16x1xf32> to vector<4x16x16xf32>
    %146 = arith.subf %142, %145 : vector<4x16x16xf32>
    %147 = math.exp %146 : vector<4x16x16xf32>
    %cst_47 = arith.constant dense<0.000000e+00> : vector<4x16xf32>
    %148 = vector.multi_reduction <add>, %147, %cst_47 [2] : vector<4x16x16xf32> to vector<4x16xf32>
    %149 = vector.shape_cast %148 : vector<4x16xf32> to vector<4x16x1xf32>
    %150 = tpu.reciprocal %149 {approx = true} : vector<4x16x1xf32> -> vector<4x16x1xf32>
    %151 = vector.broadcast %150 : vector<4x16x1xf32> to vector<4x16x16xf32>
    %152 = arith.mulf %147, %151 : vector<4x16x16xf32>
    "tpu.trace_start"() <{level = 10 : i32, message = "hqk,hkd->hqd"}> : () -> ()
    %cst_48 = arith.constant dense<0.000000e+00> : vector<4x16x32xf32>
    %153 = tpu.matmul %152, %141, %cst_48 {dimension_numbers = #tpu.dot_dimension_numbers<[2], [1], [1], [2], [0, 0, 0, 1, 1, 2], [0], [0]>} : vector<4x16x16xf32>, vector<4x16x32xf32>, vector<4x16x32xf32> -> vector<4x16x32xf32>
    "tpu.trace_stop"() : () -> ()
    %c0_49 = arith.constant 0 : index
    %c0_50 = arith.constant 0 : index
    %c0_51 = arith.constant 0 : index
    %154 = vector.load %arg14[%c0_49, %c0_50, %c0_51] : memref<4x32x128xf32, #tpu.memory_space<vmem>>, vector<4x32x128xf32>
    "tpu.trace_start"() <{level = 10 : i32, message = "hqd,hdk->hqk"}> : () -> ()
    %cst_52 = arith.constant dense<0.000000e+00> : vector<4x16x128xf32>
    %155 = tpu.matmul %153, %154, %cst_52 {dimension_numbers = #tpu.dot_dimension_numbers<[2], [1], [1], [2], [0, 0, 0, 1, 1, 2], [0], [0]>} : vector<4x16x32xf32>, vector<4x32x128xf32>, vector<4x16x128xf32> -> vector<4x16x128xf32>
    "tpu.trace_stop"() : () -> ()
    %cst_53 = arith.constant dense<0.000000e+00> : vector<16x128xf32>
    %156 = vector.multi_reduction <add>, %155, %cst_53 [0] : vector<4x16x128xf32> to vector<16x128xf32>
    %c0_54 = arith.constant 0 : index
    %c0_55 = arith.constant 0 : index
    %157 = vector.load %arg15[%c0_54, %c0_55] : memref<1x128xf32, #tpu.memory_space<vmem>>, vector<1x128xf32>
    %158 = vector.broadcast %157 : vector<1x128xf32> to vector<16x128xf32>
    %159 = arith.addf %156, %158 : vector<16x128xf32>
    %160 = arith.addf %83, %159 : vector<16x128xf32>
    %cst_56 = arith.constant dense<0.000000e+00> : vector<16xf32>
    %161 = vector.multi_reduction <add>, %160, %cst_56 [1] : vector<16x128xf32> to vector<16xf32>
    %162 = vector.shape_cast %161 : vector<16xf32> to vector<16x1xf32>
    %cst_57 = arith.constant 1.280000e+02 : f32
    %163 = vector.broadcast %cst_57 : f32 to vector<16x1xf32>
    %164 = arith.divf %162, %163 : vector<16x1xf32>
    %165 = vector.broadcast %164 : vector<16x1xf32> to vector<16x128xf32>
    %166 = arith.subf %160, %165 : vector<16x128xf32>
    %167 = arith.mulf %166, %166 : vector<16x128xf32>
    %cst_58 = arith.constant dense<0.000000e+00> : vector<16xf32>
    %168 = vector.multi_reduction <add>, %167, %cst_58 [1] : vector<16x128xf32> to vector<16xf32>
    %169 = vector.shape_cast %168 : vector<16xf32> to vector<16x1xf32>
    %cst_59 = arith.constant 1.280000e+02 : f32
    %170 = vector.broadcast %cst_59 : f32 to vector<16x1xf32>
    %171 = arith.divf %169, %170 : vector<16x1xf32>
    %cst_60 = arith.constant 9.99999974E-6 : f32
    %172 = vector.broadcast %cst_60 : f32 to vector<16x1xf32>
    %173 = arith.addf %171, %172 : vector<16x1xf32>
    %174 = math.rsqrt %173 : vector<16x1xf32>
    %175 = vector.broadcast %174 : vector<16x1xf32> to vector<16x128xf32>
    %176 = arith.mulf %166, %175 : vector<16x128xf32>
    %c0_61 = arith.constant 0 : index
    %c0_62 = arith.constant 0 : index
    %177 = vector.load %arg5[%c0_61, %c0_62] : memref<1x128xf32, #tpu.memory_space<vmem>>, vector<1x128xf32>
    %178 = vector.broadcast %177 : vector<1x128xf32> to vector<16x128xf32>
    %179 = arith.mulf %176, %178 : vector<16x128xf32>
    %c0_63 = arith.constant 0 : index
    %c0_64 = arith.constant 0 : index
    %180 = vector.load %arg16[%c0_63, %c0_64] : memref<128x256xf32, #tpu.memory_space<vmem>>, vector<128x256xf32>
    %cst_65 = arith.constant dense<0.000000e+00> : vector<16x256xf32>
    %181 = tpu.matmul %179, %180, %cst_65 {dimension_numbers = #tpu.dot_dimension_numbers<[1], [0], [0], [1], [0, 0, 1, 1], [], []>} : vector<16x128xf32>, vector<128x256xf32>, vector<16x256xf32> -> vector<16x256xf32>
    %c0_66 = arith.constant 0 : index
    %c0_67 = arith.constant 0 : index
    %182 = vector.load %arg17[%c0_66, %c0_67] : memref<1x256xf32, #tpu.memory_space<vmem>>, vector<1x256xf32>
    %183 = vector.broadcast %182 : vector<1x256xf32> to vector<16x256xf32>
    %184 = arith.addf %181, %183 : vector<16x256xf32>
    %cst_68 = arith.constant 0.000000e+00 : f32
    %185 = vector.broadcast %cst_68 : f32 to vector<16x256xf32>
    %186 = arith.maximumf %184, %185 : vector<16x256xf32>
    %c0_69 = arith.constant 0 : index
    %c0_70 = arith.constant 0 : index
    %187 = vector.load %arg18[%c0_69, %c0_70] : memref<256x128xf32, #tpu.memory_space<vmem>>, vector<256x128xf32>
    %cst_71 = arith.constant dense<0.000000e+00> : vector<16x128xf32>
    %188 = tpu.matmul %186, %187, %cst_71 {dimension_numbers = #tpu.dot_dimension_numbers<[1], [0], [0], [1], [0, 0, 1, 1], [], []>} : vector<16x256xf32>, vector<256x128xf32>, vector<16x128xf32> -> vector<16x128xf32>
    %c0_72 = arith.constant 0 : index
    %c0_73 = arith.constant 0 : index
    %189 = vector.load %arg19[%c0_72, %c0_73] : memref<1x128xf32, #tpu.memory_space<vmem>>, vector<1x128xf32>
    %190 = vector.broadcast %189 : vector<1x128xf32> to vector<16x128xf32>
    %191 = arith.addf %188, %190 : vector<16x128xf32>
    %192 = arith.addf %160, %191 : vector<16x128xf32>
    %c0_74 = arith.constant 0 : index
    %c0_75 = arith.constant 0 : index
    %c0_76 = arith.constant 0 : index
    %193 = vector.load %arg20[%c0_74, %c0_75, %c0_76] : memref<1x16x128xf32, #tpu.memory_space<vmem>>, vector<1x16x128xf32>
    %194 = vector.shape_cast %193 : vector<1x16x128xf32> to vector<16x128xf32>
    %195 = vector.shape_cast %192 : vector<16x128xf32> to vector<1x16x128xf32>
    tpu.vector_store %arg20[%c0_74, %c0_75, %c0_76], %195 {strides = array<i32>} : memref<1x16x128xf32, #tpu.memory_space<vmem>>, vector<1x16x128xf32>,
    return
  }
  func.func @transform_0(%arg0: i32) -> (i32, i32, i32) {
    %c0_i32 = arith.constant 0 : i32
    %c0_i32_0 = arith.constant 0 : i32
    %c0_i32_1 = arith.constant 0 : i32
    return %arg0, %c0_i32, %c0_i32_0 : i32, i32, i32
  }
  func.func @transform_1(%arg0: i32) -> (i32, i32, i32) {
    %c0_i32 = arith.constant 0 : i32
    %c0_i32_0 = arith.constant 0 : i32
    %c0_i32_1 = arith.constant 0 : i32
    return %arg0, %c0_i32, %c0_i32_0 : i32, i32, i32
  }
  func.func @transform_2(%arg0: i32) -> (i32, i32) {
    %c0_i32 = arith.constant 0 : i32
    %c0_i32_0 = arith.constant 0 : i32
    %c0_i32_1 = arith.constant 0 : i32
    return %c0_i32, %c0_i32_0 : i32, i32
  }
  func.func @transform_3(%arg0: i32) -> (i32, i32) {
    %c0_i32 = arith.constant 0 : i32
    %c0_i32_0 = arith.constant 0 : i32
    %c0_i32_1 = arith.constant 0 : i32
    return %c0_i32, %c0_i32_0 : i32, i32
  }
  func.func @transform_4(%arg0: i32) -> (i32, i32) {
    %c0_i32 = arith.constant 0 : i32
    %c0_i32_0 = arith.constant 0 : i32
    %c0_i32_1 = arith.constant 0 : i32
    return %c0_i32, %c0_i32_0 : i32, i32
  }
  func.func @transform_5(%arg0: i32) -> (i32, i32) {
    %c0_i32 = arith.constant 0 : i32
    %c0_i32_0 = arith.constant 0 : i32
    %c0_i32_1 = arith.constant 0 : i32
    return %c0_i32, %c0_i32_0 : i32, i32
  }
  func.func @transform_6(%arg0: i32) -> (i32, i32) {
    %c0_i32 = arith.constant 0 : i32
    %c0_i32_0 = arith.constant 0 : i32
    %c0_i32_1 = arith.constant 0 : i32
    return %c0_i32, %c0_i32_0 : i32, i32
  }
  func.func @transform_7(%arg0: i32) -> (i32, i32, i32) {
    %c0_i32 = arith.constant 0 : i32
    %c0_i32_0 = arith.constant 0 : i32
    %c0_i32_1 = arith.constant 0 : i32
    %c0_i32_2 = arith.constant 0 : i32
    return %c0_i32, %c0_i32_0, %c0_i32_1 : i32, i32, i32
  }
  func.func @transform_8(%arg0: i32) -> (i32, i32) {
    %c0_i32 = arith.constant 0 : i32
    %c0_i32_0 = arith.constant 0 : i32
    %c0_i32_1 = arith.constant 0 : i32
    return %c0_i32, %c0_i32_0 : i32, i32
  }
  func.func @transform_9(%arg0: i32) -> (i32, i32) {
    %c0_i32 = arith.constant 0 : i32
    %c0_i32_0 = arith.constant 0 : i32
    %c0_i32_1 = arith.constant 0 : i32
    return %c0_i32, %c0_i32_0 : i32, i32
  }
  func.func @transform_10(%arg0: i32) -> (i32, i32) {
    %c0_i32 = arith.constant 0 : i32
    %c0_i32_0 = arith.constant 0 : i32
    %c0_i32_1 = arith.constant 0 : i32
    return %c0_i32, %c0_i32_0 : i32, i32
  }
  func.func @transform_11(%arg0: i32) -> (i32, i32) {
    %c0_i32 = arith.constant 0 : i32
    %c0_i32_0 = arith.constant 0 : i32
    %c0_i32_1 = arith.constant 0 : i32
    return %c0_i32, %c0_i32_0 : i32, i32
  }
  func.func @transform_12(%arg0: i32) -> (i32, i32) {
    %c0_i32 = arith.constant 0 : i32
    %c0_i32_0 = arith.constant 0 : i32
    %c0_i32_1 = arith.constant 0 : i32
    return %c0_i32, %c0_i32_0 : i32, i32
  }
  func.func @transform_13(%arg0: i32) -> (i32, i32, i32) {
    %c0_i32 = arith.constant 0 : i32
    %c0_i32_0 = arith.constant 0 : i32
    %c0_i32_1 = arith.constant 0 : i32
    %c0_i32_2 = arith.constant 0 : i32
    return %c0_i32, %c0_i32_0, %c0_i32_1 : i32, i32, i32
  }
  func.func @transform_14(%arg0: i32) -> (i32, i32) {
    %c0_i32 = arith.constant 0 : i32
    %c0_i32_0 = arith.constant 0 : i32
    %c0_i32_1 = arith.constant 0 : i32
    return %c0_i32, %c0_i32_0 : i32, i32
  }
  func.func @transform_15(%arg0: i32) -> (i32, i32) {
    %c0_i32 = arith.constant 0 : i32
    %c0_i32_0 = arith.constant 0 : i32
    %c0_i32_1 = arith.constant 0 : i32
    return %c0_i32, %c0_i32_0 : i32, i32
  }
  func.func @transform_16(%arg0: i32) -> (i32, i32) {
    %c0_i32 = arith.constant 0 : i32
    %c0_i32_0 = arith.constant 0 : i32
    %c0_i32_1 = arith.constant 0 : i32
    return %c0_i32, %c0_i32_0 : i32, i32
  }
  func.func @transform_17(%arg0: i32) -> (i32, i32) {
    %c0_i32 = arith.constant 0 : i32
    %c0_i32_0 = arith.constant 0 : i32
    %c0_i32_1 = arith.constant 0 : i32
    return %c0_i32, %c0_i32_0 : i32, i32
  }
  func.func @transform_18(%arg0: i32) -> (i32, i32) {
    %c0_i32 = arith.constant 0 : i32
    %c0_i32_0 = arith.constant 0 : i32
    %c0_i32_1 = arith.constant 0 : i32
    return %c0_i32, %c0_i32_0 : i32, i32
  }
  func.func @transform_19(%arg0: i32) -> (i32, i32, i32) {
    %c0_i32 = arith.constant 0 : i32
    %c0_i32_0 = arith.constant 0 : i32
    %c0_i32_1 = arith.constant 0 : i32
    return %arg0, %c0_i32, %c0_i32_0 : i32, i32, i32
  }
}

</mosaic_0001>

<llo_original>
// kernel: tpu_custom_call.1
$region0: #{tpu_custom_call.1}
  #allocation0 [shape = 'u32[]', space=smem, size = 0x4, offset = 0x4, fixed_abs, tag = 'smem constant byte address 0x4 - core index']
  #allocation1 [shape = 'u32[144,128]{1,0:T(1,128)}', space=vmem, size = 0x12000, scoped, tag = 'internal scratch']
  %s0 = inlined_call_operand.hbm [shape: f32[2,16,128], index: 0, kind: input, shape index: {}]
  %s1 = inlined_call_operand.hbm [shape: f32[2,16,128], index: 1, kind: input, shape index: {}]
  %s2 = inlined_call_operand.hbm [shape: f32[1,128], index: 2, kind: input, shape index: {}]
  %s3 = inlined_call_operand.vmem [shape: f32[1,128], index: 3, kind: input, shape index: {}]
  %s4 = inlined_call_operand.vmem [shape: f32[1,128], index: 4, kind: input, shape index: {}]
  %s5 = inlined_call_operand.hbm [shape: f32[128,384], index: 5, kind: input, shape index: {}]
  %s6 = inlined_call_operand.vmem [shape: f32[1,384], index: 6, kind: input, shape index: {}]
  %s7 = inlined_call_operand.hbm [shape: f32[4,32,128], index: 7, kind: input, shape index: {}]
  %s8 = inlined_call_operand.vmem [shape: f32[1,128], index: 8, kind: input, shape index: {}]
  %s9 = inlined_call_operand.hbm [shape: f32[128,128], index: 9, kind: input, shape index: {}]
  %s10 = inlined_call_operand.vmem [shape: f32[1,128], index: 10, kind: input, shape index: {}]
  %s11 = inlined_call_operand.hbm [shape: f32[128,256], index: 11, kind: input, shape index: {}]
  %s12 = inlined_call_operand.vmem [shape: f32[1,256], index: 12, kind: input, shape index: {}]
  %s13 = inlined_call_operand.hbm [shape: f32[4,32,128], index: 13, kind: input, shape index: {}]
  %s14 = inlined_call_operand.vmem [shape: f32[1,128], index: 14, kind: input, shape index: {}]
  %s15 = inlined_call_operand.hbm [shape: f32[128,256], index: 15, kind: input, shape index: {}]
  %s16 = inlined_call_operand.vmem [shape: f32[1,256], index: 16, kind: input, shape index: {}]
  %s17 = inlined_call_operand.hbm [shape: f32[256,128], index: 17, kind: input, shape index: {}]
  %s18 = inlined_call_operand.vmem [shape: f32[1,128], index: 18, kind: input, shape index: {}]
  %s19 = inlined_call_operand.hbm [shape: f32[2,16,128], index: 19, kind: output, shape index: {}]
  %s20 = sld [smem:[#allocation0]]
  $region149: #{tpu_custom_call.1} parent=0
    _
  %s22 = ssub.s32 1, %s20
  %s23 = scalar_select 0, %s22, %s20
  $region1: #{tpu_custom_call.1} parent=0
    #allocation2 [shape = 'u8[16384]{0}', space=vmem, size = 0x4000, scoped, tag = 'input window, operand 0']
    #allocation3 [shape = 's32[2]{0}', space=sflag, size = 0x8, scoped, tag = 'scoped memory for tpu_custom_call.1']
    #allocation4 [shape = 's32[2]{0}', space=sflag, size = 0x8, scoped, tag = 'scoped memory for tpu_custom_call.1']
    #allocation5 [shape = 'u8[16384]{0}', space=vmem, size = 0x4000, scoped, tag = 'input window, operand 1']
    #allocation6 [shape = 's32[2]{0}', space=sflag, size = 0x8, scoped, tag = 'scoped memory for tpu_custom_call.1']
    #allocation7 [shape = 'u8[512]{0}', space=vmem, size = 0x400, scoped, tag = 'input window, operand 2, single buffered']
    #allocation8 [shape = 'u8[196608]{0}', space=vmem, size = 0x30000, scoped, tag = 'input window, operand 5, single buffered']
    #allocation9 [shape = 's32[1]{0}', space=sflag, size = 0x4, scoped, tag = 'scoped memory for tpu_custom_call.1']
    #allocation10 [shape = 'u8[65536]{0}', space=vmem, size = 0x10000, scoped, tag = 'input window, operand 7, single buffered']
    #allocation11 [shape = 'u8[65536]{0}', space=vmem, size = 0x10000, scoped, tag = 'input window, operand 9, single buffered']
    #allocation12 [shape = 's32[1]{0}', space=sflag, size = 0x4, scoped, tag = 'scoped memory for tpu_custom_call.1']
    #allocation13 [shape = 'u8[131072]{0}', space=vmem, size = 0x20000, scoped, tag = 'input window, operand 11, single buffered']
    #allocation14 [shape = 'u8[65536]{0}', space=vmem, size = 0x10000, scoped, tag = 'input window, operand 13, single buffered']
    #allocation15 [shape = 's32[1]{0}', space=sflag, size = 0x4, scoped, tag = 'scoped memory for tpu_custom_call.1']
    #allocation16 [shape = 'u8[131072]{0}', space=vmem, size = 0x20000, scoped, tag = 'input window, operand 15, single buffered']
    #allocation17 [shape = 'u8[131072]{0}', space=vmem, size = 0x20000, scoped, tag = 'input window, operand 17, single buffered']
    #allocation18 [shape = 's32[1]{0}', space=sflag, size = 0x4, scoped, tag = 'scoped memory for tpu_custom_call.1']
    #allocation19 [shape = 'u8[16384]{0}', space=vmem, size = 0x4000, scoped, tag = 'output window, operand 0']
    %24 = vsyncpa [#allocation3], 0
    %s25 = scalar_lea.sflag [#allocation3], 1
    %26 = vsyncpa %s25, 0
    %27 = vsyncpa [#allocation6], 0
    %s28 = scalar_lea.sflag [#allocation6], 1
    %29 = vsyncpa %s28, 0
    %30 = vsyncpa [#allocation9], 0
    %31 = vsyncpa [#allocation12], 0
    %32 = vsyncpa [#allocation15], 0
    %33 = vsyncpa [#allocation18], 0
    %34 = vsyncpa [#allocation4], 0
    %s35 = scalar_lea.sflag [#allocation4], 1
    %36 = vsyncpa %s35, 0
    loop: start=0, step=1, limit=4
    $region2: #{tpu_custom_call.1} parent=1 // loop_pre_header
      _
    $region3: #{tpu_custom_call.1} parent=1 // loop_header
      %s38 = sphi 0, %s42
      %p39 = scmp.ge.s32.totalorder %s38, 4
      %s48 = sphi 0, %s50
      %s51 = sphi 0, %s48
      %s52 = sphi 0, %s51
      %s68 = sphi 0, %s52
      %s74 = sphi 0, %s76
      %s77 = sphi 0, %s74
      %s78 = sphi 0, %s77
      %s94 = sphi 0, %s78
      %s98 = sphi 0, %s98
      %s100 = sphi 0, %s98
      %s101 = sphi 0, %s100
      %s115 = sphi 0, %s101
      %s119 = sphi 0, %s119
      %s121 = sphi 0, %s119
      %s122 = sphi 0, %s121
      %s136 = sphi 0, %s122
      %s140 = sphi 0, %s140
      %s142 = sphi 0, %s140
      %s143 = sphi 0, %s142
      %s157 = sphi 0, %s143
      %s161 = sphi 0, %s161
      %s163 = sphi 0, %s161
      %s164 = sphi 0, %s163
      %s178 = sphi 0, %s164
      %s182 = sphi 0, %s182
      %s184 = sphi 0, %s182
      %s185 = sphi 0, %s184
      %s199 = sphi 0, %s185
      %s203 = sphi 0, %s203
      %s205 = sphi 0, %s203
      %s206 = sphi 0, %s205
      %s220 = sphi 0, %s206
      %s224 = sphi 0, %s224
      %s226 = sphi 0, %s224
      %s227 = sphi 0, %s226
      %s241 = sphi 0, %s227
      %s245 = sphi 0, %s245
      %s247 = sphi 0, %s245
      %s248 = sphi 0, %s247
      %s262 = sphi 0, %s248
      %s266 = sphi 0, %s266
      %s268 = sphi 0, %s266
      %s269 = sphi 0, %s268
      %s283 = sphi 0, %s269
      %s287 = sphi 0, %s287
      %s289 = sphi 0, %s287
      %s290 = sphi 0, %s289
      %s304 = sphi 0, %s290
      %s308 = sphi 0, %s308
      %s310 = sphi 0, %s308
      %s311 = sphi 0, %s310
      %s325 = sphi 0, %s311
      %s329 = sphi 0, %s329
      %s331 = sphi 0, %s329
      %s332 = sphi 0, %s331
      %s346 = sphi 0, %s332
      %s350 = sphi 0, %s350
      %s352 = sphi 0, %s350
      %s353 = sphi 0, %s352
      %s367 = sphi 0, %s353
      %s371 = sphi 0, %s371
      %s373 = sphi 0, %s371
      %s374 = sphi 0, %s373
      %s388 = sphi 0, %s374
      %s392 = sphi 0, %s392
      %s394 = sphi 0, %s392
      %s395 = sphi 0, %s394
      %s409 = sphi 0, %s395
      %s413 = sphi 0, %s413
      %s415 = sphi 0, %s413
      %s416 = sphi 0, %s415
      %s430 = sphi 0, %s416
      %s434 = sphi 0, %s434
      %s436 = sphi 0, %s434
      %s437 = sphi 0, %s436
      %s451 = sphi 0, %s437
      %s457 = sphi 0, %s459
      %s460 = sphi 0, %s457
      %s461 = sphi 0, %s460
      %s477 = sphi 0, %s461
    $region4: #{tpu_custom_call.1} parent=1 // loop_header_branch
      %41 = sbr.rel (%p39) target = $region8
    $region5: #{tpu_custom_call.1} parent=1 // loop_body
      %s43 = ssub.s32 %s38, 1
      %s44 = ssub.s32 %s38, 2
      %s45 = sadd.s32 %s38, 1
      %s46 = ssub.s32 %s38, %s45
      %p47 = scmp.eq.s32.totalorder %s46, 0
      %s49 = sadd.s32 %s48, 1
      %s50 = scalar_select %p47, %s48, %s49
      %p53 = pneg %p47
      %p54 = scmp.eq.s32.totalorder %s38, 1
      %p55 = por %p53, %p54
      %p56 = scmp.ne.s32.totalorder %s48, %s51
      %p57 = scmp.eq.s32.totalorder %s38, 0
      %p58 = por %p56, %p57
      %p59 = scmp.ne.s32.totalorder %s48, %s51
      %p60 = scmp.eq.s32.totalorder %s43, 1
      %p61 = por %p59, %p60
      %p62 = scmp.ne.s32.totalorder %s51, %s52
      %p63 = scmp.eq.s32.totalorder %s43, 0
      %p64 = por %p62, %p63
      %p65 = scmp.ne.s32.totalorder %s51, %s52
      %p66 = scmp.eq.s32.totalorder %s44, 1
      %p67 = por %p65, %p66
      %p69 = scmp.ne.s32.totalorder %s52, %s68
      %p70 = scmp.eq.s32.totalorder %s44, 0
      %p71 = por %p69, %p70
      %s72 = ssub.s32 %s38, %s45
      %p73 = scmp.eq.s32.totalorder %s72, 0
      %s75 = sadd.s32 %s74, 1
      %s76 = scalar_select %p73, %s74, %s75
      %p79 = pneg %p73
      %p80 = scmp.eq.s32.totalorder %s38, 1
      %p81 = por %p79, %p80
      %p82 = scmp.ne.s32.totalorder %s74, %s77
      %p83 = scmp.eq.s32.totalorder %s38, 0
      %p84 = por %p82, %p83
      %p85 = scmp.ne.s32.totalorder %s74, %s77
      %p86 = scmp.eq.s32.totalorder %s43, 1
      %p87 = por %p85, %p86
      %p88 = scmp.ne.s32.totalorder %s77, %s78
      %p89 = scmp.eq.s32.totalorder %s43, 0
      %p90 = por %p88, %p89
      %p91 = scmp.ne.s32.totalorder %s77, %s78
      %p92 = scmp.eq.s32.totalorder %s44, 1
      %p93 = por %p91, %p92
      %p95 = scmp.ne.s32.totalorder %s78, %s94
      %p96 = scmp.eq.s32.totalorder %s44, 0
      %p97 = por %p95, %p96
      %s99 = sadd.s32 %s98, 1
      %p102 = scmp.eq.s32.totalorder %s38, 1
      %p103 = scmp.ne.s32.totalorder %s98, %s100
      %p104 = scmp.eq.s32.totalorder %s38, 0
      %p105 = por %p103, %p104
      %p106 = scmp.ne.s32.totalorder %s98, %s100
      %p107 = scmp.eq.s32.totalorder %s43, 1
      %p108 = por %p106, %p107
      %p109 = scmp.ne.s32.totalorder %s100, %s101
      %p110 = scmp.eq.s32.totalorder %s43, 0
      %p111 = por %p109, %p110
      %p112 = scmp.ne.s32.totalorder %s100, %s101
      %p113 = scmp.eq.s32.totalorder %s44, 1
      %p114 = por %p112, %p113
      %p116 = scmp.ne.s32.totalorder %s101, %s115
      %p117 = scmp.eq.s32.totalorder %s44, 0
      %p118 = por %p116, %p117
      %s120 = sadd.s32 %s119, 1
      %p123 = scmp.eq.s32.totalorder %s38, 1
      %p124 = scmp.ne.s32.totalorder %s119, %s121
      %p125 = scmp.eq.s32.totalorder %s38, 0
      %p126 = por %p124, %p125
      %p127 = scmp.ne.s32.totalorder %s119, %s121
      %p128 = scmp.eq.s32.totalorder %s43, 1
      %p129 = por %p127, %p128
      %p130 = scmp.ne.s32.totalorder %s121, %s122
      %p131 = scmp.eq.s32.totalorder %s43, 0
      %p132 = por %p130, %p131
      %p133 = scmp.ne.s32.totalorder %s121, %s122
      %p134 = scmp.eq.s32.totalorder %s44, 1
      %p135 = por %p133, %p134
      %p137 = scmp.ne.s32.totalorder %s122, %s136
      %p138 = scmp.eq.s32.totalorder %s44, 0
      %p139 = por %p137, %p138
      %s141 = sadd.s32 %s140, 1
      %p144 = scmp.eq.s32.totalorder %s38, 1
      %p145 = scmp.ne.s32.totalorder %s140, %s142
      %p146 = scmp.eq.s32.totalorder %s38, 0
      %p147 = por %p145, %p146
      %p148 = scmp.ne.s32.totalorder %s140, %s142
      %p149 = scmp.eq.s32.totalorder %s43, 1
      %p150 = por %p148, %p149
      %p151 = scmp.ne.s32.totalorder %s142, %s143
      %p152 = scmp.eq.s32.totalorder %s43, 0
      %p153 = por %p151, %p152
      %p154 = scmp.ne.s32.totalorder %s142, %s143
      %p155 = scmp.eq.s32.totalorder %s44, 1
      %p156 = por %p154, %p155
      %p158 = scmp.ne.s32.totalorder %s143, %s157
      %p159 = scmp.eq.s32.totalorder %s44, 0
      %p160 = por %p158, %p159
      %s162 = sadd.s32 %s161, 1
      %p165 = scmp.eq.s32.totalorder %s38, 1
      %p166 = scmp.ne.s32.totalorder %s161, %s163
      %p167 = scmp.eq.s32.totalorder %s38, 0
      %p168 = por %p166, %p167
      %p169 = scmp.ne.s32.totalorder %s161, %s163
      %p170 = scmp.eq.s32.totalorder %s43, 1
      %p171 = por %p169, %p170
      %p172 = scmp.ne.s32.totalorder %s163, %s164
      %p173 = scmp.eq.s32.totalorder %s43, 0
      %p174 = por %p172, %p173
      %p175 = scmp.ne.s32.totalorder %s163, %s164
      %p176 = scmp.eq.s32.totalorder %s44, 1
      %p177 = por %p175, %p176
      %p179 = scmp.ne.s32.totalorder %s164, %s178
      %p180 = scmp.eq.s32.totalorder %s44, 0
      %p181 = por %p179, %p180
      %s183 = sadd.s32 %s182, 1
      %p186 = scmp.eq.s32.totalorder %s38, 1
      %p187 = scmp.ne.s32.totalorder %s182, %s184
      %p188 = scmp.eq.s32.totalorder %s38, 0
      %p189 = por %p187, %p188
      %p190 = scmp.ne.s32.totalorder %s182, %s184
      %p191 = scmp.eq.s32.totalorder %s43, 1
      %p192 = por %p190, %p191
      %p193 = scmp.ne.s32.totalorder %s184, %s185
      %p194 = scmp.eq.s32.totalorder %s43, 0
      %p195 = por %p193, %p194
      %p196 = scmp.ne.s32.totalorder %s184, %s185
      %p197 = scmp.eq.s32.totalorder %s44, 1
      %p198 = por %p196, %p197
      %p200 = scmp.ne.s32.totalorder %s185, %s199
      %p201 = scmp.eq.s32.totalorder %s44, 0
      %p202 = por %p200, %p201
      %s204 = sadd.s32 %s203, 1
      %p207 = scmp.eq.s32.totalorder %s38, 1
      %p208 = scmp.ne.s32.totalorder %s203, %s205
      %p209 = scmp.eq.s32.totalorder %s38, 0
      %p210 = por %p208, %p209
      %p211 = scmp.ne.s32.totalorder %s203, %s205
      %p212 = scmp.eq.s32.totalorder %s43, 1
      %p213 = por %p211, %p212
      %p214 = scmp.ne.s32.totalorder %s205, %s206
      %p215 = scmp.eq.s32.totalorder %s43, 0
      %p216 = por %p214, %p215
      %p217 = scmp.ne.s32.totalorder %s205, %s206
      %p218 = scmp.eq.s32.totalorder %s44, 1
      %p219 = por %p217, %p218
      %p221 = scmp.ne.s32.totalorder %s206, %s220
      %p222 = scmp.eq.s32.totalorder %s44, 0
      %p223 = por %p221, %p222
      %s225 = sadd.s32 %s224, 1
      %p228 = scmp.eq.s32.totalorder %s38, 1
      %p229 = scmp.ne.s32.totalorder %s224, %s226
      %p230 = scmp.eq.s32.totalorder %s38, 0
      %p231 = por %p229, %p230
      %p232 = scmp.ne.s32.totalorder %s224, %s226
      %p233 = scmp.eq.s32.totalorder %s43, 1
      %p234 = por %p232, %p233
      %p235 = scmp.ne.s32.totalorder %s226, %s227
      %p236 = scmp.eq.s32.totalorder %s43, 0
      %p237 = por %p235, %p236
      %p238 = scmp.ne.s32.totalorder %s226, %s227
      %p239 = scmp.eq.s32.totalorder %s44, 1
      %p240 = por %p238, %p239
      %p242 = scmp.ne.s32.totalorder %s227, %s241
      %p243 = scmp.eq.s32.totalorder %s44, 0
      %p244 = por %p242, %p243
      %s246 = sadd.s32 %s245, 1
      %p249 = scmp.eq.s32.totalorder %s38, 1
      %p250 = scmp.ne.s32.totalorder %s245, %s247
      %p251 = scmp.eq.s32.totalorder %s38, 0
      %p252 = por %p250, %p251
      %p253 = scmp.ne.s32.totalorder %s245, %s247
      %p254 = scmp.eq.s32.totalorder %s43, 1
      %p255 = por %p253, %p254
      %p256 = scmp.ne.s32.totalorder %s247, %s248
      %p257 = scmp.eq.s32.totalorder %s43, 0
      %p258 = por %p256, %p257
      %p259 = scmp.ne.s32.totalorder %s247, %s248
      %p260 = scmp.eq.s32.totalorder %s44, 1
      %p261 = por %p259, %p260
      %p263 = scmp.ne.s32.totalorder %s248, %s262
      %p264 = scmp.eq.s32.totalorder %s44, 0
      %p265 = por %p263, %p264
      %s267 = sadd.s32 %s266, 1
      %p270 = scmp.eq.s32.totalorder %s38, 1
      %p271 = scmp.ne.s32.totalorder %s266, %s268
      %p272 = scmp.eq.s32.totalorder %s38, 0
      %p273 = por %p271, %p272
      %p274 = scmp.ne.s32.totalorder %s266, %s268
      %p275 = scmp.eq.s32.totalorder %s43, 1
      %p276 = por %p274, %p275
      %p277 = scmp.ne.s32.totalorder %s268, %s269
      %p278 = scmp.eq.s32.totalorder %s43, 0
      %p279 = por %p277, %p278
      %p280 = scmp.ne.s32.totalorder %s268, %s269
      %p281 = scmp.eq.s32.totalorder %s44, 1
      %p282 = por %p280, %p281
      %p284 = scmp.ne.s32.totalorder %s269, %s283
      %p285 = scmp.eq.s32.totalorder %s44, 0
      %p286 = por %p284, %p285
      %s288 = sadd.s32 %s287, 1
      %p291 = scmp.eq.s32.totalorder %s38, 1
      %p292 = scmp.ne.s32.totalorder %s287, %s289
      %p293 = scmp.eq.s32.totalorder %s38, 0
      %p294 = por %p292, %p293
      %p295 = scmp.ne.s32.totalorder %s287, %s289
      %p296 = scmp.eq.s32.totalorder %s43, 1
      %p297 = por %p295, %p296
      %p298 = scmp.ne.s32.totalorder %s289, %s290
      %p299 = scmp.eq.s32.totalorder %s43, 0
      %p300 = por %p298, %p299
      %p301 = scmp.ne.s32.totalorder %s289, %s290
      %p302 = scmp.eq.s32.totalorder %s44, 1
      %p303 = por %p301, %p302
      %p305 = scmp.ne.s32.totalorder %s290, %s304
      %p306 = scmp.eq.s32.totalorder %s44, 0
      %p307 = por %p305, %p306
      %s309 = sadd.s32 %s308, 1
      %p312 = scmp.eq.s32.totalorder %s38, 1
      %p313 = scmp.ne.s32.totalorder %s308, %s310
      %p314 = scmp.eq.s32.totalorder %s38, 0
      %p315 = por %p313, %p314
      %p316 = scmp.ne.s32.totalorder %s308, %s310
      %p317 = scmp.eq.s32.totalorder %s43, 1
      %p318 = por %p316, %p317
      %p319 = scmp.ne.s32.totalorder %s310, %s311
      %p320 = scmp.eq.s32.totalorder %s43, 0
      %p321 = por %p319, %p320
      %p322 = scmp.ne.s32.totalorder %s310, %s311
      %p323 = scmp.eq.s32.totalorder %s44, 1
      %p324 = por %p322, %p323
      %p326 = scmp.ne.s32.totalorder %s311, %s325
      %p327 = scmp.eq.s32.totalorder %s44, 0
      %p328 = por %p326, %p327
      %s330 = sadd.s32 %s329, 1
      %p333 = scmp.eq.s32.totalorder %s38, 1
      %p334 = scmp.ne.s32.totalorder %s329, %s331
      %p335 = scmp.eq.s32.totalorder %s38, 0
      %p336 = por %p334, %p335
      %p337 = scmp.ne.s32.totalorder %s329, %s331
      %p338 = scmp.eq.s32.totalorder %s43, 1
      %p339 = por %p337, %p338
      %p340 = scmp.ne.s32.totalorder %s331, %s332
      %p341 = scmp.eq.s32.totalorder %s43, 0
      %p342 = por %p340, %p341
      %p343 = scmp.ne.s32.totalorder %s331, %s332
      %p344 = scmp.eq.s32.totalorder %s44, 1
      %p345 = por %p343, %p344
      %p347 = scmp.ne.s32.totalorder %s332, %s346
      %p348 = scmp.eq.s32.totalorder %s44, 0
      %p349 = por %p347, %p348
      %s351 = sadd.s32 %s350, 1
      %p354 = scmp.eq.s32.totalorder %s38, 1
      %p355 = scmp.ne.s32.totalorder %s350, %s352
      %p356 = scmp.eq.s32.totalorder %s38, 0
      %p357 = por %p355, %p356
      %p358 = scmp.ne.s32.totalorder %s350, %s352
      %p359 = scmp.eq.s32.totalorder %s43, 1
      %p360 = por %p358, %p359
      %p361 = scmp.ne.s32.totalorder %s352, %s353
      %p362 = scmp.eq.s32.totalorder %s43, 0
      %p363 = por %p361, %p362
      %p364 = scmp.ne.s32.totalorder %s352, %s353
      %p365 = scmp.eq.s32.totalorder %s44, 1
      %p366 = por %p364, %p365
      %p368 = scmp.ne.s32.totalorder %s353, %s367
      %p369 = scmp.eq.s32.totalorder %s44, 0
      %p370 = por %p368, %p369
      %s372 = sadd.s32 %s371, 1
      %p375 = scmp.eq.s32.totalorder %s38, 1
      %p376 = scmp.ne.s32.totalorder %s371, %s373
      %p377 = scmp.eq.s32.totalorder %s38, 0
      %p378 = por %p376, %p377
      %p379 = scmp.ne.s32.totalorder %s371, %s373
      %p380 = scmp.eq.s32.totalorder %s43, 1
      %p381 = por %p379, %p380
      %p382 = scmp.ne.s32.totalorder %s373, %s374
      %p383 = scmp.eq.s32.totalorder %s43, 0
      %p384 = por %p382, %p383
      %p385 = scmp.ne.s32.totalorder %s373, %s374
      %p386 = scmp.eq.s32.totalorder %s44, 1
      %p387 = por %p385, %p386
      %p389 = scmp.ne.s32.totalorder %s374, %s388
      %p390 = scmp.eq.s32.totalorder %s44, 0
      %p391 = por %p389, %p390
      %s393 = sadd.s32 %s392, 1
      %p396 = scmp.eq.s32.totalorder %s38, 1
      %p397 = scmp.ne.s32.totalorder %s392, %s394
      %p398 = scmp.eq.s32.totalorder %s38, 0
      %p399 = por %p397, %p398
      %p400 = scmp.ne.s32.totalorder %s392, %s394
      %p401 = scmp.eq.s32.totalorder %s43, 1
      %p402 = por %p400, %p401
      %p403 = scmp.ne.s32.totalorder %s394, %s395
      %p404 = scmp.eq.s32.totalorder %s43, 0
      %p405 = por %p403, %p404
      %p406 = scmp.ne.s32.totalorder %s394, %s395
      %p407 = scmp.eq.s32.totalorder %s44, 1
      %p408 = por %p406, %p407
      %p410 = scmp.ne.s32.totalorder %s395, %s409
      %p411 = scmp.eq.s32.totalorder %s44, 0
      %p412 = por %p410, %p411
      %s414 = sadd.s32 %s413, 1
      %p417 = scmp.eq.s32.totalorder %s38, 1
      %p418 = scmp.ne.s32.totalorder %s413, %s415
      %p419 = scmp.eq.s32.totalorder %s38, 0
      %p420 = por %p418, %p419
      %p421 = scmp.ne.s32.totalorder %s413, %s415
      %p422 = scmp.eq.s32.totalorder %s43, 1
      %p423 = por %p421, %p422
      %p424 = scmp.ne.s32.totalorder %s415, %s416
      %p425 = scmp.eq.s32.totalorder %s43, 0
      %p426 = por %p424, %p425
      %p427 = scmp.ne.s32.totalorder %s415, %s416
      %p428 = scmp.eq.s32.totalorder %s44, 1
      %p429 = por %p427, %p428
      %p431 = scmp.ne.s32.totalorder %s416, %s430
      %p432 = scmp.eq.s32.totalorder %s44, 0
      %p433 = por %p431, %p432
      %s435 = sadd.s32 %s434, 1
      %p438 = scmp.eq.s32.totalorder %s38, 1
      %p439 = scmp.ne.s32.totalorder %s434, %s436
      %p440 = scmp.eq.s32.totalorder %s38, 0
      %p441 = por %p439, %p440
      %p442 = scmp.ne.s32.totalorder %s434, %s436
      %p443 = scmp.eq.s32.totalorder %s43, 1
      %p444 = por %p442, %p443
      %p445 = scmp.ne.s32.totalorder %s436, %s437
      %p446 = scmp.eq.s32.totalorder %s43, 0
      %p447 = por %p445, %p446
      %p448 = scmp.ne.s32.totalorder %s436, %s437
      %p449 = scmp.eq.s32.totalorder %s44, 1
      %p450 = por %p448, %p449
      %p452 = scmp.ne.s32.totalorder %s437, %s451
      %p453 = scmp.eq.s32.totalorder %s44, 0
      %p454 = por %p452, %p453
      %s455 = ssub.s32 %s38, %s45
      %p456 = scmp.eq.s32.totalorder %s455, 0
      %s458 = sadd.s32 %s457, 1
      %s459 = scalar_select %p456, %s457, %s458
      %p462 = pneg %p456
      %p463 = scmp.eq.s32.totalorder %s38, 1
      %p464 = por %p462, %p463
      %p465 = scmp.ne.s32.totalorder %s457, %s460
      %p466 = scmp.eq.s32.totalorder %s38, 0
      %p467 = por %p465, %p466
      %p468 = scmp.ne.s32.totalorder %s457, %s460
      %p469 = scmp.eq.s32.totalorder %s43, 1
      %p470 = por %p468, %p469
      %p471 = scmp.ne.s32.totalorder %s460, %s461
      %p472 = scmp.eq.s32.totalorder %s43, 0
      %p473 = por %p471, %p472
      %p474 = scmp.ne.s32.totalorder %s460, %s461
      %p475 = scmp.eq.s32.totalorder %s44, 1
      %p476 = por %p474, %p475
      %p478 = scmp.ne.s32.totalorder %s461, %s477
      %p479 = scmp.eq.s32.totalorder %s44, 0
      %p480 = por %p478, %p479
      %p481 = scmp.le.s32.totalorder 1, %s38
      %p482 = scmp.lt.s32.totalorder %s38, 3
      %p483 = pnand %p481, %p482
      %p484 = pneg %p483
      // Predicated region
      $region9: #{tpu_custom_call.1} parent=5 // pred_check
        _
      $region10: #{tpu_custom_call.1} parent=5 // pred_check_branch
        %486 = sbr.rel (%p483) target = $region12
      $region11: #{tpu_custom_call.1} parent=5 // pred_region
        %s487 = ssub.s32 %s38, 1
        // Predicated region
        $region13: #{tpu_custom_call.1} parent=11 // pred_check
          %p488 = pneg %p111
        $region14: #{tpu_custom_call.1} parent=11 // pred_check_branch
          %490 = sbr.rel (%p488) target = $region16
        $region15: #{tpu_custom_call.1} parent=11 // pred_region
          %s492 = ssub.s32 16, 16
          %493 = vsyncadd [#allocation6], %s492
          %s495 = sshll.u32 [#allocation7], 4
          %s496 = int_to_ptr.vmem [resolvable:$true] %s495
          %498 = dma.hbm_to_vmem [thread:$0]  %s2, 16, %s496, [#allocation6]
        $region16: #{tpu_custom_call.1} parent=11 // pred_fallthru
          _
        // Predicated region
        $region17: #{tpu_custom_call.1} parent=11 // pred_check
          %p499 = pneg %p132
        $region18: #{tpu_custom_call.1} parent=11 // pred_check_branch
          %501 = sbr.rel (%p499) target = $region20
        $region19: #{tpu_custom_call.1} parent=11 // pred_region
          _
        $region20: #{tpu_custom_call.1} parent=11 // pred_fallthru
          _
        // Predicated region
        $region21: #{tpu_custom_call.1} parent=11 // pred_check
          %p502 = pneg %p153
        $region22: #{tpu_custom_call.1} parent=11 // pred_check_branch
          %504 = sbr.rel (%p502) target = $region24
        $region23: #{tpu_custom_call.1} parent=11 // pred_region
          _
        $region24: #{tpu_custom_call.1} parent=11 // pred_fallthru
          _
        // Predicated region
        $region25: #{tpu_custom_call.1} parent=11 // pred_check
          %p505 = pneg %p174
        $region26: #{tpu_custom_call.1} parent=11 // pred_check_branch
          %507 = sbr.rel (%p505) target = $region28
        $region27: #{tpu_custom_call.1} parent=11 // pred_region
          %s509 = ssub.s32 6144, 6144
          %510 = vsyncadd [#allocation9], %s509
          %s511 = sshll.u32 [#allocation8], 4
          %s512 = int_to_ptr.vmem [resolvable:$true] %s511
          %517 = dma.hbm_to_vmem [thread:$0]  %s5, 6144, %s512, [#allocation9], 384, 384, 24
        $region28: #{tpu_custom_call.1} parent=11 // pred_fallthru
          _
        // Predicated region
        $region29: #{tpu_custom_call.1} parent=11 // pred_check
          %p518 = pneg %p195
        $region30: #{tpu_custom_call.1} parent=11 // pred_check_branch
          %520 = sbr.rel (%p518) target = $region32
        $region31: #{tpu_custom_call.1} parent=11 // pred_region
          _
        $region32: #{tpu_custom_call.1} parent=11 // pred_fallthru
          _
        // Predicated region
        $region33: #{tpu_custom_call.1} parent=11 // pred_check
          %p521 = pneg %p216
        $region34: #{tpu_custom_call.1} parent=11 // pred_check_branch
          %523 = sbr.rel (%p521) target = $region36
        $region35: #{tpu_custom_call.1} parent=11 // pred_region
          %s525 = ssub.s32 2048, 2048
          %526 = vsyncadd [#allocation9], %s525
          %s527 = sshll.u32 [#allocation10], 4
          %s528 = int_to_ptr.vmem [resolvable:$true] %s527
          %533 = dma.hbm_to_vmem [thread:$0]  %s7, 2048, %s528, [#allocation9], 128, 128, 8
        $region36: #{tpu_custom_call.1} parent=11 // pred_fallthru
          _
        // Predicated region
        $region37: #{tpu_custom_call.1} parent=11 // pred_check
          %p534 = pneg %p237
        $region38: #{tpu_custom_call.1} parent=11 // pred_check_branch
          %536 = sbr.rel (%p534) target = $region40
        $region39: #{tpu_custom_call.1} parent=11 // pred_region
          _
        $region40: #{tpu_custom_call.1} parent=11 // pred_fallthru
          _
        // Predicated region
        $region41: #{tpu_custom_call.1} parent=11 // pred_check
          %p537 = pneg %p258
        $region42: #{tpu_custom_call.1} parent=11 // pred_check_branch
          %539 = sbr.rel (%p537) target = $region44
        $region43: #{tpu_custom_call.1} parent=11 // pred_region
          %s541 = ssub.s32 2048, 2048
          %542 = vsyncadd [#allocation12], %s541
          %s543 = sshll.u32 [#allocation11], 4
          %s544 = int_to_ptr.vmem [resolvable:$true] %s543
          %549 = dma.hbm_to_vmem [thread:$0]  %s9, 2048, %s544, [#allocation12], 128, 128, 8
        $region44: #{tpu_custom_call.1} parent=11 // pred_fallthru
          _
        // Predicated region
        $region45: #{tpu_custom_call.1} parent=11 // pred_check
          %p550 = pneg %p279
        $region46: #{tpu_custom_call.1} parent=11 // pred_check_branch
          %552 = sbr.rel (%p550) target = $region48
        $region47: #{tpu_custom_call.1} parent=11 // pred_region
          _
        $region48: #{tpu_custom_call.1} parent=11 // pred_fallthru
          _
        // Predicated region
        $region49: #{tpu_custom_call.1} parent=11 // pred_check
          %p553 = pneg %p300
        $region50: #{tpu_custom_call.1} parent=11 // pred_check_branch
          %555 = sbr.rel (%p553) target = $region52
        $region51: #{tpu_custom_call.1} parent=11 // pred_region
          %s557 = ssub.s32 4096, 4096
          %558 = vsyncadd [#allocation12], %s557
          %s559 = sshll.u32 [#allocation13], 4
          %s560 = int_to_ptr.vmem [resolvable:$true] %s559
          %565 = dma.hbm_to_vmem [thread:$0]  %s11, 4096, %s560, [#allocation12], 256, 256, 16
        $region52: #{tpu_custom_call.1} parent=11 // pred_fallthru
          _
        // Predicated region
        $region53: #{tpu_custom_call.1} parent=11 // pred_check
          %p566 = pneg %p321
        $region54: #{tpu_custom_call.1} parent=11 // pred_check_branch
          %568 = sbr.rel (%p566) target = $region56
        $region55: #{tpu_custom_call.1} parent=11 // pred_region
          _
        $region56: #{tpu_custom_call.1} parent=11 // pred_fallthru
          _
        // Predicated region
        $region57: #{tpu_custom_call.1} parent=11 // pred_check
          %p569 = pneg %p342
        $region58: #{tpu_custom_call.1} parent=11 // pred_check_branch
          %571 = sbr.rel (%p569) target = $region60
        $region59: #{tpu_custom_call.1} parent=11 // pred_region
          %s573 = ssub.s32 2048, 2048
          %574 = vsyncadd [#allocation15], %s573
          %s575 = sshll.u32 [#allocation14], 4
          %s576 = int_to_ptr.vmem [resolvable:$true] %s575
          %581 = dma.hbm_to_vmem [thread:$0]  %s13, 2048, %s576, [#allocation15], 128, 128, 8
        $region60: #{tpu_custom_call.1} parent=11 // pred_fallthru
          _
        // Predicated region
        $region61: #{tpu_custom_call.1} parent=11 // pred_check
          %p582 = pneg %p363
        $region62: #{tpu_custom_call.1} parent=11 // pred_check_branch
          %584 = sbr.rel (%p582) target = $region64
        $region63: #{tpu_custom_call.1} parent=11 // pred_region
          _
        $region64: #{tpu_custom_call.1} parent=11 // pred_fallthru
          _
        // Predicated region
        $region65: #{tpu_custom_call.1} parent=11 // pred_check
          %p585 = pneg %p384
        $region66: #{tpu_custom_call.1} parent=11 // pred_check_branch
          %587 = sbr.rel (%p585) target = $region68
        $region67: #{tpu_custom_call.1} parent=11 // pred_region
          %s589 = ssub.s32 4096, 4096
          %590 = vsyncadd [#allocation15], %s589
          %s591 = sshll.u32 [#allocation16], 4
          %s592 = int_to_ptr.vmem [resolvable:$true] %s591
          %597 = dma.hbm_to_vmem [thread:$0]  %s15, 4096, %s592, [#allocation15], 256, 256, 16
        $region68: #{tpu_custom_call.1} parent=11 // pred_fallthru
          _
        // Predicated region
        $region69: #{tpu_custom_call.1} parent=11 // pred_check
          %p598 = pneg %p405
        $region70: #{tpu_custom_call.1} parent=11 // pred_check_branch
          %600 = sbr.rel (%p598) target = $region72
        $region71: #{tpu_custom_call.1} parent=11 // pred_region
          _
        $region72: #{tpu_custom_call.1} parent=11 // pred_fallthru
          _
        // Predicated region
        $region73: #{tpu_custom_call.1} parent=11 // pred_check
          %p601 = pneg %p426
        $region74: #{tpu_custom_call.1} parent=11 // pred_check_branch
          %603 = sbr.rel (%p601) target = $region76
        $region75: #{tpu_custom_call.1} parent=11 // pred_region
          %s605 = ssub.s32 4096, 4096
          %606 = vsyncadd [#allocation18], %s605
          %s607 = sshll.u32 [#allocation17], 4
          %s608 = int_to_ptr.vmem [resolvable:$true] %s607
          %613 = dma.hbm_to_vmem [thread:$0]  %s17, 4096, %s608, [#allocation18], 128, 128, 8
        $region76: #{tpu_custom_call.1} parent=11 // pred_fallthru
          _
        // Predicated region
        $region77: #{tpu_custom_call.1} parent=11 // pred_check
          %p614 = pneg %p447
        $region78: #{tpu_custom_call.1} parent=11 // pred_check_branch
          %616 = sbr.rel (%p614) target = $region80
        $region79: #{tpu_custom_call.1} parent=11 // pred_region
          _
        $region80: #{tpu_custom_call.1} parent=11 // pred_fallthru
          _
      $region12: #{tpu_custom_call.1} parent=5 // pred_fallthru
        _
      %p617 = scmp.lt.s32.totalorder %s38, 2
      // Predicated region
      $region81: #{tpu_custom_call.1} parent=5 // pred_check
        %p618 = pneg %p617
      $region82: #{tpu_custom_call.1} parent=5 // pred_check_branch
        %620 = sbr.rel (%p618) target = $region84
      $region83: #{tpu_custom_call.1} parent=5 // pred_region
        // Predicated region
        $region85: #{tpu_custom_call.1} parent=83 // pred_check
          %p621 = pneg %p58
        $region86: #{tpu_custom_call.1} parent=83 // pred_check_branch
          %623 = sbr.rel (%p621) target = $region88
        $region87: #{tpu_custom_call.1} parent=83 // pred_region
          %s624 = sand.u32 %s48, 1
          %s625 = scalar_lea.sflag [#allocation3], %s624
          %s626 = sand.u32 %s48, 1
          %s627 = smul.addr %s626, 16
          %s628 = scalar_lea.vmem [#allocation2], %s627
          %s630 = ssub.s32 256, 256
          %631 = vsyncadd %s625, %s630
          %s632 = smul.addr %s38, 2
          %s633 = smul.addr %s632, 128
          %s634 = scalar_lea.hbm %s0, %s633
          %s635 = sshll.u32 %s628, 4
          %s636 = int_to_ptr.vmem [resolvable:$true] %s635
          %641 = dma.hbm_to_vmem [thread:$0]  %s634, 256, %s636, %s625, 128, 128, 8
        $region88: #{tpu_custom_call.1} parent=83 // pred_fallthru
          _
        // Predicated region
        $region89: #{tpu_custom_call.1} parent=83 // pred_check
          %p642 = pneg %p84
        $region90: #{tpu_custom_call.1} parent=83 // pred_check_branch
          %644 = sbr.rel (%p642) target = $region92
        $region91: #{tpu_custom_call.1} parent=83 // pred_region
          %s645 = sand.u32 %s38, 1
          %s646 = scalar_lea.sflag [#allocation6], %s645
          %s647 = sand.u32 %s74, 1
          %s648 = smul.addr %s647, 16
          %s649 = scalar_lea.vmem [#allocation5], %s648
          %s651 = ssub.s32 256, 256
          %652 = vsyncadd %s646, %s651
          %s653 = smul.addr %s38, 2
          %s654 = smul.addr %s653, 128
          %s655 = scalar_lea.hbm %s1, %s654
          %s656 = sshll.u32 %s649, 4
          %s657 = int_to_ptr.vmem [resolvable:$true] %s656
          %662 = dma.hbm_to_vmem [thread:$0]  %s655, 256, %s657, %s646, 128, 128, 8
        $region92: #{tpu_custom_call.1} parent=83 // pred_fallthru
          _
      $region84: #{tpu_custom_call.1} parent=5 // pred_fallthru
        _
      %p663 = scmp.le.s32.totalorder 1, %s38
      %p664 = scmp.lt.s32.totalorder %s38, 3
      %p665 = pnand %p663, %p664
      %p666 = pneg %p665
      // Predicated region
      $region93: #{tpu_custom_call.1} parent=5 // pred_check
        _
      $region94: #{tpu_custom_call.1} parent=5 // pred_check_branch
        %668 = sbr.rel (%p665) target = $region96
      $region95: #{tpu_custom_call.1} parent=5 // pred_region
        %s669 = ssub.s32 %s38, 1
        %s670 = sand.u32 %s51, 1
        %s671 = scalar_lea.sflag [#allocation3], %s670
        %s672 = sand.u32 %s51, 1
        %s673 = smul.addr %s672, 16
        %s674 = scalar_lea.vmem [#allocation2], %s673
        // Predicated region
        $region97: #{tpu_custom_call.1} parent=95 // pred_check
          %p675 = pneg %p64
        $region98: #{tpu_custom_call.1} parent=95 // pred_check_branch
          %677 = sbr.rel (%p675) target = $region100
        $region99: #{tpu_custom_call.1} parent=95 // pred_region
          %678 = dma.done %s671, 256
        $region100: #{tpu_custom_call.1} parent=95 // pred_fallthru
          _
        %s679 = sand.u32 %s43, 1
        %s680 = scalar_lea.sflag [#allocation6], %s679
        %s681 = sand.u32 %s77, 1
        %s682 = smul.addr %s681, 16
        %s683 = scalar_lea.vmem [#allocation5], %s682
        // Predicated region
        $region101: #{tpu_custom_call.1} parent=95 // pred_check
          %p684 = pneg %p90
        $region102: #{tpu_custom_call.1} parent=95 // pred_check_branch
          %686 = sbr.rel (%p684) target = $region104
        $region103: #{tpu_custom_call.1} parent=95 // pred_region
          %687 = dma.done %s680, 256
        $region104: #{tpu_custom_call.1} parent=95 // pred_fallthru
          _
        // Predicated region
        $region105: #{tpu_custom_call.1} parent=95 // pred_check
          %p688 = pneg %p111
        $region106: #{tpu_custom_call.1} parent=95 // pred_check_branch
          %690 = sbr.rel (%p688) target = $region108
        $region107: #{tpu_custom_call.1} parent=95 // pred_region
          %691 = dma.done [#allocation6], 16
        $region108: #{tpu_custom_call.1} parent=95 // pred_fallthru
          _
        // Predicated region
        $region109: #{tpu_custom_call.1} parent=95 // pred_check
          %p692 = pneg %p174
        $region110: #{tpu_custom_call.1} parent=95 // pred_check_branch
          %694 = sbr.rel (%p692) target = $region112
        $region111: #{tpu_custom_call.1} parent=95 // pred_region
          %695 = dma.done [#allocation9], 6144
        $region112: #{tpu_custom_call.1} parent=95 // pred_fallthru
          _
        // Predicated region
        $region113: #{tpu_custom_call.1} parent=95 // pred_check
          %p696 = pneg %p216
        $region114: #{tpu_custom_call.1} parent=95 // pred_check_branch
          %698 = sbr.rel (%p696) target = $region116
        $region115: #{tpu_custom_call.1} parent=95 // pred_region
          %699 = dma.done [#allocation9], 2048
        $region116: #{tpu_custom_call.1} parent=95 // pred_fallthru
          _
        // Predicated region
        $region117: #{tpu_custom_call.1} parent=95 // pred_check
          %p700 = pneg %p258
        $region118: #{tpu_custom_call.1} parent=95 // pred_check_branch
          %702 = sbr.rel (%p700) target = $region120
        $region119: #{tpu_custom_call.1} parent=95 // pred_region
          %703 = dma.done [#allocation12], 2048
        $region120: #{tpu_custom_call.1} parent=95 // pred_fallthru
          _
        // Predicated region
        $region121: #{tpu_custom_call.1} parent=95 // pred_check
          %p704 = pneg %p300
        $region122: #{tpu_custom_call.1} parent=95 // pred_check_branch
          %706 = sbr.rel (%p704) target = $region124
        $region123: #{tpu_custom_call.1} parent=95 // pred_region
          %707 = dma.done [#allocation12], 4096
        $region124: #{tpu_custom_call.1} parent=95 // pred_fallthru
          _
        // Predicated region
        $region125: #{tpu_custom_call.1} parent=95 // pred_check
          %p708 = pneg %p342
        $region126: #{tpu_custom_call.1} parent=95 // pred_check_branch
          %710 = sbr.rel (%p708) target = $region128
        $region127: #{tpu_custom_call.1} parent=95 // pred_region
          %711 = dma.done [#allocation15], 2048
        $region128: #{tpu_custom_call.1} parent=95 // pred_fallthru
          _
        // Predicated region
        $region129: #{tpu_custom_call.1} parent=95 // pred_check
          %p712 = pneg %p384
        $region130: #{tpu_custom_call.1} parent=95 // pred_check_branch
          %714 = sbr.rel (%p712) target = $region132
        $region131: #{tpu_custom_call.1} parent=95 // pred_region
          %715 = dma.done [#allocation15], 4096
        $region132: #{tpu_custom_call.1} parent=95 // pred_fallthru
          _
        // Predicated region
        $region133: #{tpu_custom_call.1} parent=95 // pred_check
          %p716 = pneg %p426
        $region134: #{tpu_custom_call.1} parent=95 // pred_check_branch
          %718 = sbr.rel (%p716) target = $region136
        $region135: #{tpu_custom_call.1} parent=95 // pred_region
          %719 = dma.done [#allocation18], 4096
        $region136: #{tpu_custom_call.1} parent=95 // pred_fallthru
          _
        %s720 = sand.u32 %s51, 1
        %s721 = scalar_lea.sflag [#allocation3], %s720
        %s722 = sand.u32 %s51, 1
        %s723 = smul.addr %s722, 16
        %s724 = scalar_lea.vmem [#allocation2], %s723
        %p725 = pneg %p64
        %p726 = pneg %p61
        %s727 = sand.u32 %s43, 1
        %s728 = scalar_lea.sflag [#allocation6], %s727
        %s729 = sand.u32 %s77, 1
        %s730 = smul.addr %s729, 16
        %s731 = scalar_lea.vmem [#allocation5], %s730
        %p732 = pneg %p90
        %p733 = pneg %p87
        %p734 = pneg %p111
        %p735 = pneg %p108
        %p736 = pneg %p132
        %p737 = pneg %p129
        %p738 = pneg %p153
        %p739 = pneg %p150
        %p740 = pneg %p174
        %p741 = pneg %p171
        %p742 = pneg %p195
        %p743 = pneg %p192
        %p744 = pneg %p216
        %p745 = pneg %p213
        %p746 = pneg %p237
        %p747 = pneg %p234
        %p748 = pneg %p258
        %p749 = pneg %p255
        %p750 = pneg %p279
        %p751 = pneg %p276
        %p752 = pneg %p300
        %p753 = pneg %p297
        %p754 = pneg %p321
        %p755 = pneg %p318
        %p756 = pneg %p342
        %p757 = pneg %p339
        %p758 = pneg %p363
        %p759 = pneg %p360
        %p760 = pneg %p384
        %p761 = pneg %p381
        %p762 = pneg %p405
        %p763 = pneg %p402
        %p764 = pneg %p426
        %p765 = pneg %p423
        %p766 = pneg %p447
        %p767 = pneg %p444
        %p768 = pneg %p473
        %p769 = pneg %p470
        %s770 = sand.u32 %s460, 1
        %s771 = scalar_lea.sflag [#allocation4], %s770
        %s772 = sand.u32 %s460, 1
        %s773 = smul.addr %s772, 16
        %s774 = scalar_lea.vmem [#allocation19], %s773
        %v775 = vld [vmem:[%s674] sm:$0xff]
        %v776 = vld [vmem:[%s674 + $0x8] sm:$0xff]
        %v777 = vld [vmem:[%s683] sm:$0xff]
        %v778 = vld [vmem:[%s683 + $0x8] sm:$0xff]
        %779 = vadd.xlane.f32.xlu0 %v775
        %v780 = vpop.xlane.xlu0 %779
        %781 = vadd.xlane.f32.xlu0 %v776
        %v782 = vpop.xlane.xlu0 %781
        %v783 = vrcp.pop 128.0
        %v784 = vmul.f32 %v780, %v783
        %v785 = vmul.f32 %v782, %v783
        %v786 = vsub.f32 %v775, %v784
        %v787 = vsub.f32 %v776, %v785
        %v788 = vmul.f32 %v786, %v786
        %v789 = vmul.f32 %v787, %v787
        %790 = vadd.xlane.f32.xlu0 %v788
        %v791 = vpop.xlane.xlu0 %790
        %792 = vadd.xlane.f32.xlu0 %v789
        %v793 = vpop.xlane.xlu0 %792
        %v794 = vmul.f32 %v791, %v783
        %v795 = vmul.f32 %v793, %v783
        %v796 = vadd.f32 %v794, 1e-05
        %v797 = vadd.f32 %v795, 1e-05
        %v798 = vrsqrt.pop %v796
        %v799 = vrsqrt.pop %v797
        %v800 = vmul.f32 %v786, %v798
        %v801 = vmul.f32 %v787, %v799
        %v802 = vld [vmem:[#allocation7] sm:$0x1]
        %v804 = vlaneseq
        %v805 = vshrl.u32 %v804, 7
        %v806 = vsub.s32 0, %v805
        %v807 = vrot.slane %v802, %v806
        %v809 = vmul.f32 %v800, %v807
        %v810 = vmul.f32 %v801, %v807
        %v811 = vld [vmem:[#allocation8] sm:$0xff]
        %v812 = vld [vmem:[#allocation8 + $0x8] sm:$0xff]
        %v813 = vld [vmem:[#allocation8 + $0x10] sm:$0xff]
        %v814 = vld [vmem:[#allocation8 + $0x18] sm:$0xff]
        %v815 = vld [vmem:[#allocation8 + $0x20] sm:$0xff]
        %v816 = vld [vmem:[#allocation8 + $0x28] sm:$0xff]
        %v817 = vld [vmem:[#allocation8 + $0x30] sm:$0xff]
        %v818 = vld [vmem:[#allocation8 + $0x38] sm:$0xff]
        %v819 = vld [vmem:[#allocation8 + $0x40] sm:$0xff]
        %v820 = vld [vmem:[#allocation8 + $0x48] sm:$0xff]
        %v821 = vld [vmem:[#allocation8 + $0x50] sm:$0xff]
        %v822 = vld [vmem:[#allocation8 + $0x58] sm:$0xff]
        %v823 = vld [vmem:[#allocation8 + $0x60] sm:$0xff]
        %v824 = vld [vmem:[#allocation8 + $0x68] sm:$0xff]
        %v825 = vld [vmem:[#allocation8 + $0x70] sm:$0xff]
        %v826 = vld [vmem:[#allocation8 + $0x78] sm:$0xff]
        %v827 = vld [vmem:[#allocation8 + $0x80] sm:$0xff]
        %v828 = vld [vmem:[#allocation8 + $0x88] sm:$0xff]
        %v829 = vld [vmem:[#allocation8 + $0x90] sm:$0xff]
        %v830 = vld [vmem:[#allocation8 + $0x98] sm:$0xff]
        %v831 = vld [vmem:[#allocation8 + $0xa0] sm:$0xff]
        %v832 = vld [vmem:[#allocation8 + $0xa8] sm:$0xff]
        %v833 = vld [vmem:[#allocation8 + $0xb0] sm:$0xff]
        %v834 = vld [vmem:[#allocation8 + $0xb8] sm:$0xff]
        %v835 = vld [vmem:[#allocation8 + $0xc0] sm:$0xff]
        %v836 = vld [vmem:[#allocation8 + $0xc8] sm:$0xff]
        %v837 = vld [vmem:[#allocation8 + $0xd0] sm:$0xff]
        %v838 = vld [vmem:[#allocation8 + $0xd8] sm:$0xff]
        %v839 = vld [vmem:[#allocation8 + $0xe0] sm:$0xff]
        %v840 = vld [vmem:[#allocation8 + $0xe8] sm:$0xff]
        %v841 = vld [vmem:[#allocation8 + $0xf0] sm:$0xff]
        %v842 = vld [vmem:[#allocation8 + $0xf8] sm:$0xff]
        %v843 = vld [vmem:[#allocation8 + $0x100] sm:$0xff]
        %v844 = vld [vmem:[#allocation8 + $0x108] sm:$0xff]
        %v845 = vld [vmem:[#allocation8 + $0x110] sm:$0xff]
        %v846 = vld [vmem:[#allocation8 + $0x118] sm:$0xff]
        %v847 = vld [vmem:[#allocation8 + $0x120] sm:$0xff]
        %v848 = vld [vmem:[#allocation8 + $0x128] sm:$0xff]
        %v849 = vld [vmem:[#allocation8 + $0x130] sm:$0xff]
        %v850 = vld [vmem:[#allocation8 + $0x138] sm:$0xff]
        %v851 = vld [vmem:[#allocation8 + $0x140] sm:$0xff]
        %v852 = vld [vmem:[#allocation8 + $0x148] sm:$0xff]
        %v853 = vld [vmem:[#allocation8 + $0x150] sm:$0xff]
        %v854 = vld [vmem:[#allocation8 + $0x158] sm:$0xff]
        %v855 = vld [vmem:[#allocation8 + $0x160] sm:$0xff]
        %v856 = vld [vmem:[#allocation8 + $0x168] sm:$0xff]
        %v857 = vld [vmem:[#allocation8 + $0x170] sm:$0xff]
        %v858 = vld [vmem:[#allocation8 + $0x178] sm:$0xff]
        %v859 = vld [vmem:[%s6] sm:$0x7]
        %v861 = vlaneseq
        %v862 = vshrl.u32 %v861, 7
        %v863 = vsub.s32 0, %v862
        %v864 = vrot.slane %v859, %v863
        %v865 = vlaneseq
        %v866 = vshrl.u32 %v865, 7
        %v867 = vsub.s32 1, %v866
        %v868 = vrot.slane %v859, %v867
        %v869 = vlaneseq
        %v870 = vshrl.u32 %v869, 7
        %v871 = vsub.s32 2, %v870
        %v872 = vrot.slane %v859, %v871
        %876 = vmatprep.subr.mxu0 %v812
        %877 = vmatpush1.msra.mxu0 %v811
        %878 = vmatprep.subr.mxu0 %v815
        %879 = vmatpush1.msra.mxu0 %v814
        %880 = vmatprep.subr.mxu0 %v818
        %881 = vmatpush1.msra.mxu0 %v817
        %882 = vmatprep.subr.mxu0 %v821
        %883 = vmatpush1.msra.mxu0 %v820
        %884 = vmatprep.subr.mxu0 %v824
        %885 = vmatpush1.msra.mxu0 %v823
        %886 = vmatprep.subr.mxu0 %v827
        %887 = vmatpush1.msra.mxu0 %v826
        %888 = vmatprep.subr.mxu0 %v830
        %889 = vmatpush1.msra.mxu0 %v829
        %890 = vmatprep.subr.mxu0 %v833
        %891 = vmatpush1.msra.mxu0 %v832
        %892 = vmatprep.subr.mxu0 %v836
        %893 = vmatpush1.msra.mxu0 %v835
        %894 = vmatprep.subr.mxu0 %v839
        %895 = vmatpush1.msra.mxu0 %v838
        %896 = vmatprep.subr.mxu0 %v842
        %897 = vmatpush1.msra.mxu0 %v841
        %898 = vmatprep.subr.mxu0 %v845
        %899 = vmatpush1.msra.mxu0 %v844
        %900 = vmatprep.subr.mxu0 %v848
        %901 = vmatpush1.msra.mxu0 %v847
        %902 = vmatprep.subr.mxu0 %v851
        %903 = vmatpush1.msra.mxu0 %v850
        %904 = vmatprep.subr.mxu0 %v854
        %905 = vmatpush1.msra.mxu0 %v853
        %906 = vmatprep.subr.mxu0 %v857
        %907 = vmatpush1.msra.mxu0 %v856
        %908 = vmatprep.subr.mxu0 0.0
        %909 = vmatpush1.msra.mxu0 0.0
        %910 = vmatprep.subr.mxu0 0.0
        %911 = vmatpush1.msra.mxu0 0.0
        %912 = vmatprep.subr.mxu0 0.0
        %913 = vmatpush1.msra.mxu0 0.0
        %914 = vmatprep.subr.mxu0 0.0
        %915 = vmatpush1.msra.mxu0 0.0
        %916 = vmatprep.subr.mxu0 0.0
        %917 = vmatpush1.msra.mxu0 0.0
        %918 = vmatprep.subr.mxu0 0.0
        %919 = vmatpush1.msra.mxu0 0.0
        %920 = vmatprep.subr.mxu0 0.0
        %921 = vmatpush1.msra.mxu0 0.0
        %922 = vmatprep.subr.mxu0 0.0
        %923 = vmatpush1.msra.mxu0 0.0
        %924 = vmatprep.subr.mxu0 0.0
        %925 = vmatpush1.msra.mxu0 0.0
        %926 = vmatprep.subr.mxu0 0.0
        %927 = vmatpush1.msra.mxu0 0.0
        %928 = vmatprep.subr.mxu0 0.0
        %929 = vmatpush1.msra.mxu0 0.0
        %930 = vmatprep.subr.mxu0 0.0
        %931 = vmatpush1.msra.mxu0 0.0
        %932 = vmatprep.subr.mxu0 0.0
        %933 = vmatpush1.msra.mxu0 0.0
        %934 = vmatprep.subr.mxu0 0.0
        %935 = vmatpush1.msra.mxu0 0.0
        %936 = vmatprep.subr.mxu0 0.0
        %937 = vmatpush1.msra.mxu0 0.0
        %938 = vmatprep.subr.mxu0 0.0
        %939 = vmatpush1.msra.mxu0 0.0
        %940 = vmatprep.mubr.f32.mxu0 0.0
        %941 = vmatmul.mubr.f32.gmra.mrb[0].mxu0 %v809
        %v942 = vpop.f32.mrb[0].mxu0
        %v943 = vadd.f32 %v864, %v942
        %v944 = vpop.f32.mrb[0].mxu0
        %v945 = vadd.f32 %v868, %v944
        %946 = vmatprep.mubr.f32.mxu0 0.0
        %947 = vmatmul.mubr.f32.gmra.mrb[0].mxu0 %v810
        %v948 = vpop.f32.mrb[0].mxu0
        %v949 = vadd.f32 %v864, %v948
        %v950 = vpop.f32.mrb[0].mxu0
        %v951 = vadd.f32 %v868, %v950
        %952 = vdwg.mxu0
        %953 = vmatprep.subr.mxu0 0.0
        %954 = vmatpush1.msra.mxu0 %v813
        %955 = vmatprep.subr.mxu0 0.0
        %956 = vmatpush1.msra.mxu0 %v816
        %957 = vmatprep.subr.mxu0 0.0
        %958 = vmatpush1.msra.mxu0 %v819
        %959 = vmatprep.subr.mxu0 0.0
        %960 = vmatpush1.msra.mxu0 %v822
        %961 = vmatprep.subr.mxu0 0.0
        %962 = vmatpush1.msra.mxu0 %v825
        %963 = vmatprep.subr.mxu0 0.0
        %964 = vmatpush1.msra.mxu0 %v828
        %965 = vmatprep.subr.mxu0 0.0
        %966 = vmatpush1.msra.mxu0 %v831
        %967 = vmatprep.subr.mxu0 0.0
        %968 = vmatpush1.msra.mxu0 %v834
        %969 = vmatprep.subr.mxu0 0.0
        %970 = vmatpush1.msra.mxu0 %v837
        %971 = vmatprep.subr.mxu0 0.0
        %972 = vmatpush1.msra.mxu0 %v840
        %973 = vmatprep.subr.mxu0 0.0
        %974 = vmatpush1.msra.mxu0 %v843
        %975 = vmatprep.subr.mxu0 0.0
        %976 = vmatpush1.msra.mxu0 %v846
        %977 = vmatprep.subr.mxu0 0.0
        %978 = vmatpush1.msra.mxu0 %v849
        %979 = vmatprep.subr.mxu0 0.0
        %980 = vmatpush1.msra.mxu0 %v852
        %981 = vmatprep.subr.mxu0 0.0
        %982 = vmatpush1.msra.mxu0 %v855
        %983 = vmatprep.subr.mxu0 0.0
        %984 = vmatpush1.msra.mxu0 %v858
        %985 = vmatprep.subr.mxu0 0.0
        %986 = vmatpush1.msra.mxu0 0.0
        %987 = vmatprep.subr.mxu0 0.0
        %988 = vmatpush1.msra.mxu0 0.0
        %989 = vmatprep.subr.mxu0 0.0
        %990 = vmatpush1.msra.mxu0 0.0
        %991 = vmatprep.subr.mxu0 0.0
        %992 = vmatpush1.msra.mxu0 0.0
        %993 = vmatprep.subr.mxu0 0.0
        %994 = vmatpush1.msra.mxu0 0.0
        %995 = vmatprep.subr.mxu0 0.0
        %996 = vmatpush1.msra.mxu0 0.0
        %997 = vmatprep.subr.mxu0 0.0
        %998 = vmatpush1.msra.mxu0 0.0
        %999 = vmatprep.subr.mxu0 0.0
        %1000 = vmatpush1.msra.mxu0 0.0
        %1001 = vmatprep.subr.mxu0 0.0
        %1002 = vmatpush1.msra.mxu0 0.0
        %1003 = vmatprep.subr.mxu0 0.0
        %1004 = vmatpush1.msra.mxu0 0.0
        %1005 = vmatprep.subr.mxu0 0.0
        %1006 = vmatpush1.msra.mxu0 0.0
        %1007 = vmatprep.subr.mxu0 0.0
        %1008 = vmatpush1.msra.mxu0 0.0
        %1009 = vmatprep.subr.mxu0 0.0
        %1010 = vmatpush1.msra.mxu0 0.0
        %1011 = vmatprep.subr.mxu0 0.0
        %1012 = vmatpush1.msra.mxu0 0.0
        %1013 = vmatprep.subr.mxu0 0.0
        %1014 = vmatpush1.msra.mxu0 0.0
        %1015 = vmatprep.subr.mxu0 0.0
        %1016 = vmatpush1.msra.mxu0 0.0
        %1017 = vmatprep.mubr.f32.mxu0 0.0
        %1018 = vmatmul.mubr.f32.gmra.mrb[0].mxu0 %v809
        %v1019 = vpop.f32.mrb[0].mxu0
        %v1020 = vadd.f32 %v872, %v1019
        %v1021 = vpop.f32.mrb[0].mxu0
        %1022 = vmatprep.mubr.f32.mxu0 0.0
        %1023 = vmatmul.mubr.f32.gmra.mrb[0].mxu0 %v810
        %v1024 = vpop.f32.mrb[0].mxu0
        %v1025 = vadd.f32 %v872, %v1024
        %v1026 = vpop.f32.mrb[0].mxu0
        %1027 = vdwg.mxu0
        %1030 = vrot.lane.b32.xlu0 %v943, 96
        %v1031 = vpop.permute.xlu0 %1030
        %1032 = vrot.lane.b32.xlu0 %v949, 96
        %v1033 = vpop.permute.xlu0 %1032
        %1034 = vrot.lane.b32.xlu0 %v943, 64
        %v1035 = vpop.permute.xlu0 %1034
        %1036 = vrot.lane.b32.xlu0 %v949, 64
        %v1037 = vpop.permute.xlu0 %1036
        %1038 = vrot.lane.b32.xlu0 %v943, 32
        %v1039 = vpop.permute.xlu0 %1038
        %1040 = vrot.lane.b32.xlu0 %v949, 32
        %v1041 = vpop.permute.xlu0 %1040
        %1044 = vrot.lane.b32.xlu0 %v945, 96
        %v1045 = vpop.permute.xlu0 %1044
        %1046 = vrot.lane.b32.xlu0 %v951, 96
        %v1047 = vpop.permute.xlu0 %1046
        %1048 = vrot.lane.b32.xlu0 %v945, 64
        %v1049 = vpop.permute.xlu0 %1048
        %1050 = vrot.lane.b32.xlu0 %v951, 64
        %v1051 = vpop.permute.xlu0 %1050
        %1052 = vrot.lane.b32.xlu0 %v945, 32
        %v1053 = vpop.permute.xlu0 %1052
        %1054 = vrot.lane.b32.xlu0 %v951, 32
        %v1055 = vpop.permute.xlu0 %1054
        %1058 = vrot.lane.b32.xlu0 %v1020, 96
        %v1059 = vpop.permute.xlu0 %1058
        %1060 = vrot.lane.b32.xlu0 %v1025, 96
        %v1061 = vpop.permute.xlu0 %1060
        %1064 = vrot.lane.b32.xlu0 %v1020, 64
        %v1065 = vpop.permute.xlu0 %1064
        %1066 = vrot.lane.b32.xlu0 %v1025, 64
        %v1067 = vpop.permute.xlu0 %1066
        %1070 = vrot.lane.b32.xlu0 %v1020, 32
        %v1071 = vpop.permute.xlu0 %1070
        %1072 = vrot.lane.b32.xlu0 %v1025, 32
        %v1073 = vpop.permute.xlu0 %1072
        %vm1076 = vcmask 261120
        %v1077 = vsel %vm1076, %v943, 0
        %v1079 = vsel %vm1076, %v949, 0
        %v1081 = vsel %vm1076, %v945, 0
        %v1083 = vsel %vm1076, %v951, 0
        %1085 = vmatprep.subr.mxu0 0.0
        %1086 = vmatpush1.xpose.msra.mxu0 %v1081
        %1087 = vmatprep.subr.mxu0 0.0
        %1088 = vmatpush1.xpose.msra.mxu0 %v1083
        %1089 = vmatprep.subr.mxu0 0.0
        %1090 = vmatpush1.xpose.msra.mxu0 0.0
        %1091 = vmatprep.subr.mxu0 0.0
        %1092 = vmatpush1.xpose.msra.mxu0 0.0
        %1093 = vmatprep.subr.mxu0 0.0
        %1094 = vmatpush1.xpose.msra.mxu0 0.0
        %1095 = vmatprep.subr.mxu0 0.0
        %1096 = vmatpush1.xpose.msra.mxu0 0.0
        %1097 = vmatprep.subr.mxu0 0.0
        %1098 = vmatpush1.xpose.msra.mxu0 0.0
        %1099 = vmatprep.subr.mxu0 0.0
        %1100 = vmatpush1.xpose.msra.mxu0 0.0
        %1101 = vmatprep.subr.mxu0 0.0
        %1102 = vmatpush1.xpose.msra.mxu0 0.0
        %1103 = vmatprep.subr.mxu0 0.0
        %1104 = vmatpush1.xpose.msra.mxu0 0.0
        %1105 = vmatprep.subr.mxu0 0.0
        %1106 = vmatpush1.xpose.msra.mxu0 0.0
        %1107 = vmatprep.subr.mxu0 0.0
        %1108 = vmatpush1.xpose.msra.mxu0 0.0
        %1109 = vmatprep.subr.mxu0 0.0
        %1110 = vmatpush1.xpose.msra.mxu0 0.0
        %1111 = vmatprep.subr.mxu0 0.0
        %1112 = vmatpush1.xpose.msra.mxu0 0.0
        %1113 = vmatprep.subr.mxu0 0.0
        %1114 = vmatpush1.xpose.msra.mxu0 0.0
        %1115 = vmatprep.subr.mxu0 0.0
        %1116 = vmatpush1.xpose.msra.mxu0 0.0
        %1117 = vmatprep.subr.mxu0 0.0
        %1118 = vmatpush1.xpose.msra.mxu0 0.0
        %1119 = vmatprep.subr.mxu0 0.0
        %1120 = vmatpush1.xpose.msra.mxu0 0.0
        %1121 = vmatprep.subr.mxu0 0.0
        %1122 = vmatpush1.xpose.msra.mxu0 0.0
        %1123 = vmatprep.subr.mxu0 0.0
        %1124 = vmatpush1.xpose.msra.mxu0 0.0
        %1125 = vmatprep.subr.mxu0 0.0
        %1126 = vmatpush1.xpose.msra.mxu0 0.0
        %1127 = vmatprep.subr.mxu0 0.0
        %1128 = vmatpush1.xpose.msra.mxu0 0.0
        %1129 = vmatprep.subr.mxu0 0.0
        %1130 = vmatpush1.xpose.msra.mxu0 0.0
        %1131 = vmatprep.subr.mxu0 0.0
        %1132 = vmatpush1.xpose.msra.mxu0 0.0
        %1133 = vmatprep.subr.mxu0 0.0
        %1134 = vmatpush1.xpose.msra.mxu0 0.0
        %1135 = vmatprep.subr.mxu0 0.0
        %1136 = vmatpush1.xpose.msra.mxu0 0.0
        %1137 = vmatprep.subr.mxu0 0.0
        %1138 = vmatpush1.xpose.msra.mxu0 0.0
        %1139 = vmatprep.subr.mxu0 0.0
        %1140 = vmatpush1.xpose.msra.mxu0 0.0
        %1141 = vmatprep.subr.mxu0 0.0
        %1142 = vmatpush1.xpose.msra.mxu0 0.0
        %1143 = vmatprep.subr.mxu0 0.0
        %1144 = vmatpush1.xpose.msra.mxu0 0.0
        %1145 = vmatprep.subr.mxu0 0.0
        %1146 = vmatpush1.xpose.msra.mxu0 0.0
        %1147 = vmatprep.subr.mxu0 0.0
        %1148 = vmatpush1.xpose.msra.mxu0 0.0
        %1149 = vmatprep.mubr.f32.mxu0 0.0
        %1150 = vmatmul.mubr.f32.gmra.mrb[0].mxu0 %v1077
        %v1151 = vpop.f32.mrb[0].mxu0
        %v1152 = vadd.f32 0.0, %v1151
        %v1153 = vpop.f32.mrb[0].mxu0
        %1154 = vmatprep.mubr.f32.mxu0 0.0
        %1155 = vmatmul.mubr.f32.gmra.mrb[0].mxu0 %v1079
        %v1156 = vpop.f32.mrb[0].mxu0
        %v1157 = vadd.f32 0.0, %v1156
        %v1158 = vpop.f32.mrb[0].mxu0
        %1159 = vdwg.mxu0
        %v1160 = vsel %vm1076, %v1031, 0
        %v1162 = vsel %vm1076, %v1033, 0
        %v1164 = vsel %vm1076, %v1045, 0
        %v1166 = vsel %vm1076, %v1047, 0
        %1168 = vmatprep.subr.mxu0 0.0
        %1169 = vmatpush1.xpose.msra.mxu0 %v1164
        %1170 = vmatprep.subr.mxu0 0.0
        %1171 = vmatpush1.xpose.msra.mxu0 %v1166
        %1172 = vmatprep.subr.mxu0 0.0
        %1173 = vmatpush1.xpose.msra.mxu0 0.0
        %1174 = vmatprep.subr.mxu0 0.0
        %1175 = vmatpush1.xpose.msra.mxu0 0.0
        %1176 = vmatprep.subr.mxu0 0.0
        %1177 = vmatpush1.xpose.msra.mxu0 0.0
        %1178 = vmatprep.subr.mxu0 0.0
        %1179 = vmatpush1.xpose.msra.mxu0 0.0
        %1180 = vmatprep.subr.mxu0 0.0
        %1181 = vmatpush1.xpose.msra.mxu0 0.0
        %1182 = vmatprep.subr.mxu0 0.0
        %1183 = vmatpush1.xpose.msra.mxu0 0.0
        %1184 = vmatprep.subr.mxu0 0.0
        %1185 = vmatpush1.xpose.msra.mxu0 0.0
        %1186 = vmatprep.subr.mxu0 0.0
        %1187 = vmatpush1.xpose.msra.mxu0 0.0
        %1188 = vmatprep.subr.mxu0 0.0
        %1189 = vmatpush1.xpose.msra.mxu0 0.0
        %1190 = vmatprep.subr.mxu0 0.0
        %1191 = vmatpush1.xpose.msra.mxu0 0.0
        %1192 = vmatprep.subr.mxu0 0.0
        %1193 = vmatpush1.xpose.msra.mxu0 0.0
        %1194 = vmatprep.subr.mxu0 0.0
        %1195 = vmatpush1.xpose.msra.mxu0 0.0
        %1196 = vmatprep.subr.mxu0 0.0
        %1197 = vmatpush1.xpose.msra.mxu0 0.0
        %1198 = vmatprep.subr.mxu0 0.0
        %1199 = vmatpush1.xpose.msra.mxu0 0.0
        %1200 = vmatprep.subr.mxu0 0.0
        %1201 = vmatpush1.xpose.msra.mxu0 0.0
        %1202 = vmatprep.subr.mxu0 0.0
        %1203 = vmatpush1.xpose.msra.mxu0 0.0
        %1204 = vmatprep.subr.mxu0 0.0
        %1205 = vmatpush1.xpose.msra.mxu0 0.0
        %1206 = vmatprep.subr.mxu0 0.0
        %1207 = vmatpush1.xpose.msra.mxu0 0.0
        %1208 = vmatprep.subr.mxu0 0.0
        %1209 = vmatpush1.xpose.msra.mxu0 0.0
        %1210 = vmatprep.subr.mxu0 0.0
        %1211 = vmatpush1.xpose.msra.mxu0 0.0
        %1212 = vmatprep.subr.mxu0 0.0
        %1213 = vmatpush1.xpose.msra.mxu0 0.0
        %1214 = vmatprep.subr.mxu0 0.0
        %1215 = vmatpush1.xpose.msra.mxu0 0.0
        %1216 = vmatprep.subr.mxu0 0.0
        %1217 = vmatpush1.xpose.msra.mxu0 0.0
        %1218 = vmatprep.subr.mxu0 0.0
        %1219 = vmatpush1.xpose.msra.mxu0 0.0
        %1220 = vmatprep.subr.mxu0 0.0
        %1221 = vmatpush1.xpose.msra.mxu0 0.0
        %1222 = vmatprep.subr.mxu0 0.0
        %1223 = vmatpush1.xpose.msra.mxu0 0.0
        %1224 = vmatprep.subr.mxu0 0.0
        %1225 = vmatpush1.xpose.msra.mxu0 0.0
        %1226 = vmatprep.subr.mxu0 0.0
        %1227 = vmatpush1.xpose.msra.mxu0 0.0
        %1228 = vmatprep.subr.mxu0 0.0
        %1229 = vmatpush1.xpose.msra.mxu0 0.0
        %1230 = vmatprep.subr.mxu0 0.0
        %1231 = vmatpush1.xpose.msra.mxu0 0.0
        %1232 = vmatprep.mubr.f32.mxu0 0.0
        %1233 = vmatmul.mubr.f32.gmra.mrb[0].mxu0 %v1160
        %v1234 = vpop.f32.mrb[0].mxu0
        %v1235 = vadd.f32 0.0, %v1234
        %v1236 = vpop.f32.mrb[0].mxu0
        %1237 = vmatprep.mubr.f32.mxu0 0.0
        %1238 = vmatmul.mubr.f32.gmra.mrb[0].mxu0 %v1162
        %v1239 = vpop.f32.mrb[0].mxu0
        %v1240 = vadd.f32 0.0, %v1239
        %v1241 = vpop.f32.mrb[0].mxu0
        %1242 = vdwg.mxu0
        %v1243 = vsel %vm1076, %v1035, 0
        %v1245 = vsel %vm1076, %v1037, 0
        %v1247 = vsel %vm1076, %v1049, 0
        %v1249 = vsel %vm1076, %v1051, 0
        %1251 = vmatprep.subr.mxu0 0.0
        %1252 = vmatpush1.xpose.msra.mxu0 %v1247
        %1253 = vmatprep.subr.mxu0 0.0
        %1254 = vmatpush1.xpose.msra.mxu0 %v1249
        %1255 = vmatprep.subr.mxu0 0.0
        %1256 = vmatpush1.xpose.msra.mxu0 0.0
        %1257 = vmatprep.subr.mxu0 0.0
        %1258 = vmatpush1.xpose.msra.mxu0 0.0
        %1259 = vmatprep.subr.mxu0 0.0
        %1260 = vmatpush1.xpose.msra.mxu0 0.0
        %1261 = vmatprep.subr.mxu0 0.0
        %1262 = vmatpush1.xpose.msra.mxu0 0.0
        %1263 = vmatprep.subr.mxu0 0.0
        %1264 = vmatpush1.xpose.msra.mxu0 0.0
        %1265 = vmatprep.subr.mxu0 0.0
        %1266 = vmatpush1.xpose.msra.mxu0 0.0
        %1267 = vmatprep.subr.mxu0 0.0
        %1268 = vmatpush1.xpose.msra.mxu0 0.0
        %1269 = vmatprep.subr.mxu0 0.0
        %1270 = vmatpush1.xpose.msra.mxu0 0.0
        %1271 = vmatprep.subr.mxu0 0.0
        %1272 = vmatpush1.xpose.msra.mxu0 0.0
        %1273 = vmatprep.subr.mxu0 0.0
        %1274 = vmatpush1.xpose.msra.mxu0 0.0
        %1275 = vmatprep.subr.mxu0 0.0
        %1276 = vmatpush1.xpose.msra.mxu0 0.0
        %1277 = vmatprep.subr.mxu0 0.0
        %1278 = vmatpush1.xpose.msra.mxu0 0.0
        %1279 = vmatprep.subr.mxu0 0.0
        %1280 = vmatpush1.xpose.msra.mxu0 0.0
        %1281 = vmatprep.subr.mxu0 0.0
        %1282 = vmatpush1.xpose.msra.mxu0 0.0
        %1283 = vmatprep.subr.mxu0 0.0
        %1284 = vmatpush1.xpose.msra.mxu0 0.0
        %1285 = vmatprep.subr.mxu0 0.0
        %1286 = vmatpush1.xpose.msra.mxu0 0.0
        %1287 = vmatprep.subr.mxu0 0.0
        %1288 = vmatpush1.xpose.msra.mxu0 0.0
        %1289 = vmatprep.subr.mxu0 0.0
        %1290 = vmatpush1.xpose.msra.mxu0 0.0
        %1291 = vmatprep.subr.mxu0 0.0
        %1292 = vmatpush1.xpose.msra.mxu0 0.0
        %1293 = vmatprep.subr.mxu0 0.0
        %1294 = vmatpush1.xpose.msra.mxu0 0.0
        %1295 = vmatprep.subr.mxu0 0.0
        %1296 = vmatpush1.xpose.msra.mxu0 0.0
        %1297 = vmatprep.subr.mxu0 0.0
        %1298 = vmatpush1.xpose.msra.mxu0 0.0
        %1299 = vmatprep.subr.mxu0 0.0
        %1300 = vmatpush1.xpose.msra.mxu0 0.0
        %1301 = vmatprep.subr.mxu0 0.0
        %1302 = vmatpush1.xpose.msra.mxu0 0.0
        %1303 = vmatprep.subr.mxu0 0.0
        %1304 = vmatpush1.xpose.msra.mxu0 0.0
        %1305 = vmatprep.subr.mxu0 0.0
        %1306 = vmatpush1.xpose.msra.mxu0 0.0
        %1307 = vmatprep.subr.mxu0 0.0
        %1308 = vmatpush1.xpose.msra.mxu0 0.0
        %1309 = vmatprep.subr.mxu0 0.0
        %1310 = vmatpush1.xpose.msra.mxu0 0.0
        %1311 = vmatprep.subr.mxu0 0.0
        %1312 = vmatpush1.xpose.msra.mxu0 0.0
        %1313 = vmatprep.subr.mxu0 0.0
        %1314 = vmatpush1.xpose.msra.mxu0 0.0
        %1315 = vmatprep.mubr.f32.mxu0 0.0
        %1316 = vmatmul.mubr.f32.gmra.mrb[0].mxu0 %v1243
        %v1317 = vpop.f32.mrb[0].mxu0
        %v1318 = vadd.f32 0.0, %v1317
        %v1319 = vpop.f32.mrb[0].mxu0
        %1320 = vmatprep.mubr.f32.mxu0 0.0
        %1321 = vmatmul.mubr.f32.gmra.mrb[0].mxu0 %v1245
        %v1322 = vpop.f32.mrb[0].mxu0
        %v1323 = vadd.f32 0.0, %v1322
        %v1324 = vpop.f32.mrb[0].mxu0
        %1325 = vdwg.mxu0
        %v1326 = vsel %vm1076, %v1039, 0
        %v1328 = vsel %vm1076, %v1041, 0
        %v1330 = vsel %vm1076, %v1053, 0
        %v1332 = vsel %vm1076, %v1055, 0
        %1334 = vmatprep.subr.mxu0 0.0
        %1335 = vmatpush1.xpose.msra.mxu0 %v1330
        %1336 = vmatprep.subr.mxu0 0.0
        %1337 = vmatpush1.xpose.msra.mxu0 %v1332
        %1338 = vmatprep.subr.mxu0 0.0
        %1339 = vmatpush1.xpose.msra.mxu0 0.0
        %1340 = vmatprep.subr.mxu0 0.0
        %1341 = vmatpush1.xpose.msra.mxu0 0.0
        %1342 = vmatprep.subr.mxu0 0.0
        %1343 = vmatpush1.xpose.msra.mxu0 0.0
        %1344 = vmatprep.subr.mxu0 0.0
        %1345 = vmatpush1.xpose.msra.mxu0 0.0
        %1346 = vmatprep.subr.mxu0 0.0
        %1347 = vmatpush1.xpose.msra.mxu0 0.0
        %1348 = vmatprep.subr.mxu0 0.0
        %1349 = vmatpush1.xpose.msra.mxu0 0.0
        %1350 = vmatprep.subr.mxu0 0.0
        %1351 = vmatpush1.xpose.msra.mxu0 0.0
        %1352 = vmatprep.subr.mxu0 0.0
        %1353 = vmatpush1.xpose.msra.mxu0 0.0
        %1354 = vmatprep.subr.mxu0 0.0
        %1355 = vmatpush1.xpose.msra.mxu0 0.0
        %1356 = vmatprep.subr.mxu0 0.0
        %1357 = vmatpush1.xpose.msra.mxu0 0.0
        %1358 = vmatprep.subr.mxu0 0.0
        %1359 = vmatpush1.xpose.msra.mxu0 0.0
        %1360 = vmatprep.subr.mxu0 0.0
        %1361 = vmatpush1.xpose.msra.mxu0 0.0
        %1362 = vmatprep.subr.mxu0 0.0
        %1363 = vmatpush1.xpose.msra.mxu0 0.0
        %1364 = vmatprep.subr.mxu0 0.0
        %1365 = vmatpush1.xpose.msra.mxu0 0.0
        %1366 = vmatprep.subr.mxu0 0.0
        %1367 = vmatpush1.xpose.msra.mxu0 0.0
        %1368 = vmatprep.subr.mxu0 0.0
        %1369 = vmatpush1.xpose.msra.mxu0 0.0
        %1370 = vmatprep.subr.mxu0 0.0
        %1371 = vmatpush1.xpose.msra.mxu0 0.0
        %1372 = vmatprep.subr.mxu0 0.0
        %1373 = vmatpush1.xpose.msra.mxu0 0.0
        %1374 = vmatprep.subr.mxu0 0.0
        %1375 = vmatpush1.xpose.msra.mxu0 0.0
        %1376 = vmatprep.subr.mxu0 0.0
        %1377 = vmatpush1.xpose.msra.mxu0 0.0
        %1378 = vmatprep.subr.mxu0 0.0
        %1379 = vmatpush1.xpose.msra.mxu0 0.0
        %1380 = vmatprep.subr.mxu0 0.0
        %1381 = vmatpush1.xpose.msra.mxu0 0.0
        %1382 = vmatprep.subr.mxu0 0.0
        %1383 = vmatpush1.xpose.msra.mxu0 0.0
        %1384 = vmatprep.subr.mxu0 0.0
        %1385 = vmatpush1.xpose.msra.mxu0 0.0
        %1386 = vmatprep.subr.mxu0 0.0
        %1387 = vmatpush1.xpose.msra.mxu0 0.0
        %1388 = vmatprep.subr.mxu0 0.0
        %1389 = vmatpush1.xpose.msra.mxu0 0.0
        %1390 = vmatprep.subr.mxu0 0.0
        %1391 = vmatpush1.xpose.msra.mxu0 0.0
        %1392 = vmatprep.subr.mxu0 0.0
        %1393 = vmatpush1.xpose.msra.mxu0 0.0
        %1394 = vmatprep.subr.mxu0 0.0
        %1395 = vmatpush1.xpose.msra.mxu0 0.0
        %1396 = vmatprep.subr.mxu0 0.0
        %1397 = vmatpush1.xpose.msra.mxu0 0.0
        %1398 = vmatprep.mubr.f32.mxu0 0.0
        %1399 = vmatmul.mubr.f32.gmra.mrb[0].mxu0 %v1326
        %v1400 = vpop.f32.mrb[0].mxu0
        %v1401 = vadd.f32 0.0, %v1400
        %v1402 = vpop.f32.mrb[0].mxu0
        %1403 = vmatprep.mubr.f32.mxu0 0.0
        %1404 = vmatmul.mubr.f32.gmra.mrb[0].mxu0 %v1328
        %v1405 = vpop.f32.mrb[0].mxu0
        %v1406 = vadd.f32 0.0, %v1405
        %v1407 = vpop.f32.mrb[0].mxu0
        %1408 = vdwg.mxu0
        %v1409 = vlaneseq
        %v1410 = vshrl.u32 %v1409, 7
        %v1411 = vadd.s32 %v1410, 8
        %v1412 = vlaneseq
        %v1413 = vand.u32 %v1412, 127
        %vm1414 = vcmp.le.s32.totalorder %v1413, %v1410
        %vm1415 = vcmp.le.s32.totalorder %v1413, %v1411
        %v1416 = vsel %vm1414, 1, 0
        %v1417 = vsel %vm1415, 1, 0
        %vm1418 = vcmp.eq.s32.totalorder %v1416, 1
        %vm1419 = vcmp.eq.s32.totalorder %v1417, 1
        %v1420 = vsel %vm1418, %v1152, -1e+30
        %v1421 = vsel %vm1419, %v1157, -1e+30
        %v1422 = vsel %vm1418, %v1235, -1e+30
        %v1423 = vsel %vm1419, %v1240, -1e+30
        %v1424 = vsel %vm1418, %v1318, -1e+30
        %v1425 = vsel %vm1419, %v1323, -1e+30
        %v1426 = vsel %vm1418, %v1401, -1e+30
        %v1427 = vsel %vm1419, %v1406, -1e+30
        %vm1428 = vcmask 130048
        %v1429 = vsel %vm1428, %v1420, -inf
        %1430 = vmax.xlane.f32.xlu0 %v1429
        %v1431 = vpop.xlane.xlu0 %1430
        %v1432 = vsel %vm1428, %v1421, -inf
        %1433 = vmax.xlane.f32.xlu0 %v1432
        %v1434 = vpop.xlane.xlu0 %1433
        %v1435 = vsel %vm1428, %v1422, -inf
        %1436 = vmax.xlane.f32.xlu0 %v1435
        %v1437 = vpop.xlane.xlu0 %1436
        %v1438 = vsel %vm1428, %v1423, -inf
        %1439 = vmax.xlane.f32.xlu0 %v1438
        %v1440 = vpop.xlane.xlu0 %1439
        %v1441 = vsel %vm1428, %v1424, -inf
        %1442 = vmax.xlane.f32.xlu0 %v1441
        %v1443 = vpop.xlane.xlu0 %1442
        %v1444 = vsel %vm1428, %v1425, -inf
        %1445 = vmax.xlane.f32.xlu0 %v1444
        %v1446 = vpop.xlane.xlu0 %1445
        %v1447 = vsel %vm1428, %v1426, -inf
        %1448 = vmax.xlane.f32.xlu0 %v1447
        %v1449 = vpop.xlane.xlu0 %1448
        %v1450 = vsel %vm1428, %v1427, -inf
        %1451 = vmax.xlane.f32.xlu0 %v1450
        %v1452 = vpop.xlane.xlu0 %1451
        %v1453 = vsub.f32 %v1420, %v1431
        %v1454 = vsub.f32 %v1421, %v1434
        %v1455 = vsub.f32 %v1422, %v1437
        %v1456 = vsub.f32 %v1423, %v1440
        %v1457 = vsub.f32 %v1424, %v1443
        %v1458 = vsub.f32 %v1425, %v1446
        %v1459 = vsub.f32 %v1426, %v1449
        %v1460 = vsub.f32 %v1427, %v1452
        %v1461 = vmul.f32 %v1453, 1.442695
        %v1462 = vpow.pop %v1461
        %v1463 = vmul.f32 %v1454, 1.442695
        %v1464 = vpow.pop %v1463
        %v1465 = vmul.f32 %v1455, 1.442695
        %v1466 = vpow.pop %v1465
        %v1467 = vmul.f32 %v1456, 1.442695
        %v1468 = vpow.pop %v1467
        %v1469 = vmul.f32 %v1457, 1.442695
        %v1470 = vpow.pop %v1469
        %v1471 = vmul.f32 %v1458, 1.442695
        %v1472 = vpow.pop %v1471
        %v1473 = vmul.f32 %v1459, 1.442695
        %v1474 = vpow.pop %v1473
        %v1475 = vmul.f32 %v1460, 1.442695
        %v1476 = vpow.pop %v1475
        %v1477 = vsel %vm1428, %v1462, 0.0
        %1478 = vadd.xlane.f32.xlu0 %v1477
        %v1479 = vpop.xlane.xlu0 %1478
        %v1480 = vsel %vm1428, %v1464, 0.0
        %1481 = vadd.xlane.f32.xlu0 %v1480
        %v1482 = vpop.xlane.xlu0 %1481
        %v1483 = vsel %vm1428, %v1466, 0.0
        %1484 = vadd.xlane.f32.xlu0 %v1483
        %v1485 = vpop.xlane.xlu0 %1484
        %v1486 = vsel %vm1428, %v1468, 0.0
        %1487 = vadd.xlane.f32.xlu0 %v1486
        %v1488 = vpop.xlane.xlu0 %1487
        %v1489 = vsel %vm1428, %v1470, 0.0
        %1490 = vadd.xlane.f32.xlu0 %v1489
        %v1491 = vpop.xlane.xlu0 %1490
        %v1492 = vsel %vm1428, %v1472, 0.0
        %1493 = vadd.xlane.f32.xlu0 %v1492
        %v1494 = vpop.xlane.xlu0 %1493
        %v1495 = vsel %vm1428, %v1474, 0.0
        %1496 = vadd.xlane.f32.xlu0 %v1495
        %v1497 = vpop.xlane.xlu0 %1496
        %v1498 = vsel %vm1428, %v1476, 0.0
        %1499 = vadd.xlane.f32.xlu0 %v1498
        %v1500 = vpop.xlane.xlu0 %1499
        %v1501 = vrcp.pop %v1479
        %v1502 = vrcp.pop %v1482
        %v1503 = vrcp.pop %v1485
        %v1504 = vrcp.pop %v1488
        %v1505 = vrcp.pop %v1491
        %v1506 = vrcp.pop %v1494
        %v1507 = vrcp.pop %v1497
        %v1508 = vrcp.pop %v1500
        %v1509 = vmul.f32 %v1462, %v1501
        %v1510 = vmul.f32 %v1464, %v1502
        %v1511 = vmul.f32 %v1466, %v1503
        %v1512 = vmul.f32 %v1468, %v1504
        %v1513 = vmul.f32 %v1470, %v1505
        %v1514 = vmul.f32 %v1472, %v1506
        %v1515 = vmul.f32 %v1474, %v1507
        %v1516 = vmul.f32 %v1476, %v1508
        %v1518 = vsel %vm1428, %v1509, 0
        %v1521 = vsel %vm1428, %v1510, 0
        %1523 = vmatprep.subr.mxu0 0.0
        %1524 = vmatpush1.msra.mxu0 %v1020
        %1525 = vmatprep.subr.mxu0 0.0
        %1526 = vmatpush1.msra.mxu0 %v1025
        %1527 = vmatprep.subr.mxu0 0.0
        %1528 = vmatpush1.msra.mxu0 0.0
        %1529 = vmatprep.subr.mxu0 0.0
        %1530 = vmatpush1.msra.mxu0 0.0
        %1531 = vmatprep.subr.mxu0 0.0
        %1532 = vmatpush1.msra.mxu0 0.0
        %1533 = vmatprep.subr.mxu0 0.0
        %1534 = vmatpush1.msra.mxu0 0.0
        %1535 = vmatprep.subr.mxu0 0.0
        %1536 = vmatpush1.msra.mxu0 0.0
        %1537 = vmatprep.subr.mxu0 0.0
        %1538 = vmatpush1.msra.mxu0 0.0
        %1539 = vmatprep.subr.mxu0 0.0
        %1540 = vmatpush1.msra.mxu0 0.0
        %1541 = vmatprep.subr.mxu0 0.0
        %1542 = vmatpush1.msra.mxu0 0.0
        %1543 = vmatprep.subr.mxu0 0.0
        %1544 = vmatpush1.msra.mxu0 0.0
        %1545 = vmatprep.subr.mxu0 0.0
        %1546 = vmatpush1.msra.mxu0 0.0
        %1547 = vmatprep.subr.mxu0 0.0
        %1548 = vmatpush1.msra.mxu0 0.0
        %1549 = vmatprep.subr.mxu0 0.0
        %1550 = vmatpush1.msra.mxu0 0.0
        %1551 = vmatprep.subr.mxu0 0.0
        %1552 = vmatpush1.msra.mxu0 0.0
        %1553 = vmatprep.subr.mxu0 0.0
        %1554 = vmatpush1.msra.mxu0 0.0
        %1555 = vmatprep.subr.mxu0 0.0
        %1556 = vmatpush1.msra.mxu0 0.0
        %1557 = vmatprep.subr.mxu0 0.0
        %1558 = vmatpush1.msra.mxu0 0.0
        %1559 = vmatprep.subr.mxu0 0.0
        %1560 = vmatpush1.msra.mxu0 0.0
        %1561 = vmatprep.subr.mxu0 0.0
        %1562 = vmatpush1.msra.mxu0 0.0
        %1563 = vmatprep.subr.mxu0 0.0
        %1564 = vmatpush1.msra.mxu0 0.0
        %1565 = vmatprep.subr.mxu0 0.0
        %1566 = vmatpush1.msra.mxu0 0.0
        %1567 = vmatprep.subr.mxu0 0.0
        %1568 = vmatpush1.msra.mxu0 0.0
        %1569 = vmatprep.subr.mxu0 0.0
        %1570 = vmatpush1.msra.mxu0 0.0
        %1571 = vmatprep.subr.mxu0 0.0
        %1572 = vmatpush1.msra.mxu0 0.0
        %1573 = vmatprep.subr.mxu0 0.0
        %1574 = vmatpush1.msra.mxu0 0.0
        %1575 = vmatprep.subr.mxu0 0.0
        %1576 = vmatpush1.msra.mxu0 0.0
        %1577 = vmatprep.subr.mxu0 0.0
        %1578 = vmatpush1.msra.mxu0 0.0
        %1579 = vmatprep.subr.mxu0 0.0
        %1580 = vmatpush1.msra.mxu0 0.0
        %1581 = vmatprep.subr.mxu0 0.0
        %1582 = vmatpush1.msra.mxu0 0.0
        %1583 = vmatprep.subr.mxu0 0.0
        %1584 = vmatpush1.msra.mxu0 0.0
        %1585 = vmatprep.subr.mxu0 0.0
        %1586 = vmatpush1.msra.mxu0 0.0
        %1587 = vmatprep.mubr.f32.mxu0 0.0
        %1588 = vmatmul.mubr.f32.gmra.mrb[0].mxu0 %v1518
        %v1589 = vpop.f32.mrb[0].mxu0
        %v1590 = vadd.f32 0.0, %v1589
        %v1591 = vpop.f32.mrb[0].mxu0
        %1592 = vmatprep.mubr.f32.mxu0 0.0
        %1593 = vmatmul.mubr.f32.gmra.mrb[0].mxu0 %v1521
        %v1594 = vpop.f32.mrb[0].mxu0
        %v1595 = vadd.f32 0.0, %v1594
        %v1596 = vpop.f32.mrb[0].mxu0
        %1597 = vdwg.mxu0
        %v1599 = vsel %vm1428, %v1511, 0
        %v1602 = vsel %vm1428, %v1512, 0
        %1604 = vmatprep.subr.mxu0 0.0
        %1605 = vmatpush1.msra.mxu0 %v1059
        %1606 = vmatprep.subr.mxu0 0.0
        %1607 = vmatpush1.msra.mxu0 %v1061
        %1608 = vmatprep.subr.mxu0 0.0
        %1609 = vmatpush1.msra.mxu0 0.0
        %1610 = vmatprep.subr.mxu0 0.0
        %1611 = vmatpush1.msra.mxu0 0.0
        %1612 = vmatprep.subr.mxu0 0.0
        %1613 = vmatpush1.msra.mxu0 0.0
        %1614 = vmatprep.subr.mxu0 0.0
        %1615 = vmatpush1.msra.mxu0 0.0
        %1616 = vmatprep.subr.mxu0 0.0
        %1617 = vmatpush1.msra.mxu0 0.0
        %1618 = vmatprep.subr.mxu0 0.0
        %1619 = vmatpush1.msra.mxu0 0.0
        %1620 = vmatprep.subr.mxu0 0.0
        %1621 = vmatpush1.msra.mxu0 0.0
        %1622 = vmatprep.subr.mxu0 0.0
        %1623 = vmatpush1.msra.mxu0 0.0
        %1624 = vmatprep.subr.mxu0 0.0
        %1625 = vmatpush1.msra.mxu0 0.0
        %1626 = vmatprep.subr.mxu0 0.0
        %1627 = vmatpush1.msra.mxu0 0.0
        %1628 = vmatprep.subr.mxu0 0.0
        %1629 = vmatpush1.msra.mxu0 0.0
        %1630 = vmatprep.subr.mxu0 0.0
        %1631 = vmatpush1.msra.mxu0 0.0
        %1632 = vmatprep.subr.mxu0 0.0
        %1633 = vmatpush1.msra.mxu0 0.0
        %1634 = vmatprep.subr.mxu0 0.0
        %1635 = vmatpush1.msra.mxu0 0.0
        %1636 = vmatprep.subr.mxu0 0.0
        %1637 = vmatpush1.msra.mxu0 0.0
        %1638 = vmatprep.subr.mxu0 0.0
        %1639 = vmatpush1.msra.mxu0 0.0
        %1640 = vmatprep.subr.mxu0 0.0
        %1641 = vmatpush1.msra.mxu0 0.0
        %1642 = vmatprep.subr.mxu0 0.0
        %1643 = vmatpush1.msra.mxu0 0.0
        %1644 = vmatprep.subr.mxu0 0.0
        %1645 = vmatpush1.msra.mxu0 0.0
        %1646 = vmatprep.subr.mxu0 0.0
        %1647 = vmatpush1.msra.mxu0 0.0
        %1648 = vmatprep.subr.mxu0 0.0
        %1649 = vmatpush1.msra.mxu0 0.0
        %1650 = vmatprep.subr.mxu0 0.0
        %1651 = vmatpush1.msra.mxu0 0.0
        %1652 = vmatprep.subr.mxu0 0.0
        %1653 = vmatpush1.msra.mxu0 0.0
        %1654 = vmatprep.subr.mxu0 0.0
        %1655 = vmatpush1.msra.mxu0 0.0
        %1656 = vmatprep.subr.mxu0 0.0
        %1657 = vmatpush1.msra.mxu0 0.0
        %1658 = vmatprep.subr.mxu0 0.0
        %1659 = vmatpush1.msra.mxu0 0.0
        %1660 = vmatprep.subr.mxu0 0.0
        %1661 = vmatpush1.msra.mxu0 0.0
        %1662 = vmatprep.subr.mxu0 0.0
        %1663 = vmatpush1.msra.mxu0 0.0
        %1664 = vmatprep.subr.mxu0 0.0
        %1665 = vmatpush1.msra.mxu0 0.0
        %1666 = vmatprep.subr.mxu0 0.0
        %1667 = vmatpush1.msra.mxu0 0.0
        %1668 = vmatprep.mubr.f32.mxu0 0.0
        %1669 = vmatmul.mubr.f32.gmra.mrb[0].mxu0 %v1599
        %v1670 = vpop.f32.mrb[0].mxu0
        %v1671 = vadd.f32 0.0, %v1670
        %v1672 = vpop.f32.mrb[0].mxu0
        %1673 = vmatprep.mubr.f32.mxu0 0.0
        %1674 = vmatmul.mubr.f32.gmra.mrb[0].mxu0 %v1602
        %v1675 = vpop.f32.mrb[0].mxu0
        %v1676 = vadd.f32 0.0, %v1675
        %v1677 = vpop.f32.mrb[0].mxu0
        %1678 = vdwg.mxu0
        %v1680 = vsel %vm1428, %v1513, 0
        %v1683 = vsel %vm1428, %v1514, 0
        %1685 = vmatprep.subr.mxu0 0.0
        %1686 = vmatpush1.msra.mxu0 %v1065
        %1687 = vmatprep.subr.mxu0 0.0
        %1688 = vmatpush1.msra.mxu0 %v1067
        %1689 = vmatprep.subr.mxu0 0.0
        %1690 = vmatpush1.msra.mxu0 0.0
        %1691 = vmatprep.subr.mxu0 0.0
        %1692 = vmatpush1.msra.mxu0 0.0
        %1693 = vmatprep.subr.mxu0 0.0
        %1694 = vmatpush1.msra.mxu0 0.0
        %1695 = vmatprep.subr.mxu0 0.0
        %1696 = vmatpush1.msra.mxu0 0.0
        %1697 = vmatprep.subr.mxu0 0.0
        %1698 = vmatpush1.msra.mxu0 0.0
        %1699 = vmatprep.subr.mxu0 0.0
        %1700 = vmatpush1.msra.mxu0 0.0
        %1701 = vmatprep.subr.mxu0 0.0
        %1702 = vmatpush1.msra.mxu0 0.0
        %1703 = vmatprep.subr.mxu0 0.0
        %1704 = vmatpush1.msra.mxu0 0.0
        %1705 = vmatprep.subr.mxu0 0.0
        %1706 = vmatpush1.msra.mxu0 0.0
        %1707 = vmatprep.subr.mxu0 0.0
        %1708 = vmatpush1.msra.mxu0 0.0
        %1709 = vmatprep.subr.mxu0 0.0
        %1710 = vmatpush1.msra.mxu0 0.0
        %1711 = vmatprep.subr.mxu0 0.0
        %1712 = vmatpush1.msra.mxu0 0.0
        %1713 = vmatprep.subr.mxu0 0.0
        %1714 = vmatpush1.msra.mxu0 0.0
        %1715 = vmatprep.subr.mxu0 0.0
        %1716 = vmatpush1.msra.mxu0 0.0
        %1717 = vmatprep.subr.mxu0 0.0
        %1718 = vmatpush1.msra.mxu0 0.0
        %1719 = vmatprep.subr.mxu0 0.0
        %1720 = vmatpush1.msra.mxu0 0.0
        %1721 = vmatprep.subr.mxu0 0.0
        %1722 = vmatpush1.msra.mxu0 0.0
        %1723 = vmatprep.subr.mxu0 0.0
        %1724 = vmatpush1.msra.mxu0 0.0
        %1725 = vmatprep.subr.mxu0 0.0
        %1726 = vmatpush1.msra.mxu0 0.0
        %1727 = vmatprep.subr.mxu0 0.0
        %1728 = vmatpush1.msra.mxu0 0.0
        %1729 = vmatprep.subr.mxu0 0.0
        %1730 = vmatpush1.msra.mxu0 0.0
        %1731 = vmatprep.subr.mxu0 0.0
        %1732 = vmatpush1.msra.mxu0 0.0
        %1733 = vmatprep.subr.mxu0 0.0
        %1734 = vmatpush1.msra.mxu0 0.0
        %1735 = vmatprep.subr.mxu0 0.0
        %1736 = vmatpush1.msra.mxu0 0.0
        %1737 = vmatprep.subr.mxu0 0.0
        %1738 = vmatpush1.msra.mxu0 0.0
        %1739 = vmatprep.subr.mxu0 0.0
        %1740 = vmatpush1.msra.mxu0 0.0
        %1741 = vmatprep.subr.mxu0 0.0
        %1742 = vmatpush1.msra.mxu0 0.0
        %1743 = vmatprep.subr.mxu0 0.0
        %1744 = vmatpush1.msra.mxu0 0.0
        %1745 = vmatprep.subr.mxu0 0.0
        %1746 = vmatpush1.msra.mxu0 0.0
        %1747 = vmatprep.subr.mxu0 0.0
        %1748 = vmatpush1.msra.mxu0 0.0
        %1749 = vmatprep.mubr.f32.mxu0 0.0
        %1750 = vmatmul.mubr.f32.gmra.mrb[0].mxu0 %v1680
        %v1751 = vpop.f32.mrb[0].mxu0
        %v1752 = vadd.f32 0.0, %v1751
        %v1753 = vpop.f32.mrb[0].mxu0
        %1754 = vmatprep.mubr.f32.mxu0 0.0
        %1755 = vmatmul.mubr.f32.gmra.mrb[0].mxu0 %v1683
        %v1756 = vpop.f32.mrb[0].mxu0
        %v1757 = vadd.f32 0.0, %v1756
        %v1758 = vpop.f32.mrb[0].mxu0
        %1759 = vdwg.mxu0
        %v1761 = vsel %vm1428, %v1515, 0
        %v1764 = vsel %vm1428, %v1516, 0
        %1766 = vmatprep.subr.mxu0 0.0
        %1767 = vmatpush1.msra.mxu0 %v1071
        %1768 = vmatprep.subr.mxu0 0.0
        %1769 = vmatpush1.msra.mxu0 %v1073
        %1770 = vmatprep.subr.mxu0 0.0
        %1771 = vmatpush1.msra.mxu0 0.0
        %1772 = vmatprep.subr.mxu0 0.0
        %1773 = vmatpush1.msra.mxu0 0.0
        %1774 = vmatprep.subr.mxu0 0.0
        %1775 = vmatpush1.msra.mxu0 0.0
        %1776 = vmatprep.subr.mxu0 0.0
        %1777 = vmatpush1.msra.mxu0 0.0
        %1778 = vmatprep.subr.mxu0 0.0
        %1779 = vmatpush1.msra.mxu0 0.0
        %1780 = vmatprep.subr.mxu0 0.0
        %1781 = vmatpush1.msra.mxu0 0.0
        %1782 = vmatprep.subr.mxu0 0.0
        %1783 = vmatpush1.msra.mxu0 0.0
        %1784 = vmatprep.subr.mxu0 0.0
        %1785 = vmatpush1.msra.mxu0 0.0
        %1786 = vmatprep.subr.mxu0 0.0
        %1787 = vmatpush1.msra.mxu0 0.0
        %1788 = vmatprep.subr.mxu0 0.0
        %1789 = vmatpush1.msra.mxu0 0.0
        %1790 = vmatprep.subr.mxu0 0.0
        %1791 = vmatpush1.msra.mxu0 0.0
        %1792 = vmatprep.subr.mxu0 0.0
        %1793 = vmatpush1.msra.mxu0 0.0
        %1794 = vmatprep.subr.mxu0 0.0
        %1795 = vmatpush1.msra.mxu0 0.0
        %1796 = vmatprep.subr.mxu0 0.0
        %1797 = vmatpush1.msra.mxu0 0.0
        %1798 = vmatprep.subr.mxu0 0.0
        %1799 = vmatpush1.msra.mxu0 0.0
        %1800 = vmatprep.subr.mxu0 0.0
        %1801 = vmatpush1.msra.mxu0 0.0
        %1802 = vmatprep.subr.mxu0 0.0
        %1803 = vmatpush1.msra.mxu0 0.0
        %1804 = vmatprep.subr.mxu0 0.0
        %1805 = vmatpush1.msra.mxu0 0.0
        %1806 = vmatprep.subr.mxu0 0.0
        %1807 = vmatpush1.msra.mxu0 0.0
        %1808 = vmatprep.subr.mxu0 0.0
        %1809 = vmatpush1.msra.mxu0 0.0
        %1810 = vmatprep.subr.mxu0 0.0
        %1811 = vmatpush1.msra.mxu0 0.0
        %1812 = vmatprep.subr.mxu0 0.0
        %1813 = vmatpush1.msra.mxu0 0.0
        %1814 = vmatprep.subr.mxu0 0.0
        %1815 = vmatpush1.msra.mxu0 0.0
        %1816 = vmatprep.subr.mxu0 0.0
        %1817 = vmatpush1.msra.mxu0 0.0
        %1818 = vmatprep.subr.mxu0 0.0
        %1819 = vmatpush1.msra.mxu0 0.0
        %1820 = vmatprep.subr.mxu0 0.0
        %1821 = vmatpush1.msra.mxu0 0.0
        %1822 = vmatprep.subr.mxu0 0.0
        %1823 = vmatpush1.msra.mxu0 0.0
        %1824 = vmatprep.subr.mxu0 0.0
        %1825 = vmatpush1.msra.mxu0 0.0
        %1826 = vmatprep.subr.mxu0 0.0
        %1827 = vmatpush1.msra.mxu0 0.0
        %1828 = vmatprep.subr.mxu0 0.0
        %1829 = vmatpush1.msra.mxu0 0.0
        %1830 = vmatprep.mubr.f32.mxu0 0.0
        %1831 = vmatmul.mubr.f32.gmra.mrb[0].mxu0 %v1761
        %v1832 = vpop.f32.mrb[0].mxu0
        %v1833 = vadd.f32 0.0, %v1832
        %v1834 = vpop.f32.mrb[0].mxu0
        %1835 = vmatprep.mubr.f32.mxu0 0.0
        %1836 = vmatmul.mubr.f32.gmra.mrb[0].mxu0 %v1764
        %v1837 = vpop.f32.mrb[0].mxu0
        %v1838 = vadd.f32 0.0, %v1837
        %v1839 = vpop.f32.mrb[0].mxu0
        %1840 = vdwg.mxu0
        %v1841 = vld [vmem:[#allocation10] sm:$0xff]
        %v1842 = vld [vmem:[#allocation10 + $0x8] sm:$0xff]
        %v1843 = vld [vmem:[#allocation10 + $0x10] sm:$0xff]
        %v1844 = vld [vmem:[#allocation10 + $0x18] sm:$0xff]
        %v1845 = vld [vmem:[#allocation10 + $0x20] sm:$0xff]
        %v1846 = vld [vmem:[#allocation10 + $0x28] sm:$0xff]
        %v1847 = vld [vmem:[#allocation10 + $0x30] sm:$0xff]
        %v1848 = vld [vmem:[#allocation10 + $0x38] sm:$0xff]
        %v1849 = vld [vmem:[#allocation10 + $0x40] sm:$0xff]
        %v1850 = vld [vmem:[#allocation10 + $0x48] sm:$0xff]
        %v1851 = vld [vmem:[#allocation10 + $0x50] sm:$0xff]
        %v1852 = vld [vmem:[#allocation10 + $0x58] sm:$0xff]
        %v1853 = vld [vmem:[#allocation10 + $0x60] sm:$0xff]
        %v1854 = vld [vmem:[#allocation10 + $0x68] sm:$0xff]
        %v1855 = vld [vmem:[#allocation10 + $0x70] sm:$0xff]
        %v1856 = vld [vmem:[#allocation10 + $0x78] sm:$0xff]
        %v1858 = vsel %vm1076, %v1590, 0
        %v1861 = vsel %vm1076, %v1595, 0
        %1863 = vmatprep.subr.mxu0 0.0
        %1864 = vmatpush1.msra.mxu0 %v1841
        %1865 = vmatprep.subr.mxu0 0.0
        %1866 = vmatpush1.msra.mxu0 %v1842
        %1867 = vmatprep.subr.mxu0 0.0
        %1868 = vmatpush1.msra.mxu0 %v1843
        %1869 = vmatprep.subr.mxu0 0.0
        %1870 = vmatpush1.msra.mxu0 %v1844
        %1871 = vmatprep.subr.mxu0 0.0
        %1872 = vmatpush1.msra.mxu0 0.0
        %1873 = vmatprep.subr.mxu0 0.0
        %1874 = vmatpush1.msra.mxu0 0.0
        %1875 = vmatprep.subr.mxu0 0.0
        %1876 = vmatpush1.msra.mxu0 0.0
        %1877 = vmatprep.subr.mxu0 0.0
        %1878 = vmatpush1.msra.mxu0 0.0
        %1879 = vmatprep.subr.mxu0 0.0
        %1880 = vmatpush1.msra.mxu0 0.0
        %1881 = vmatprep.subr.mxu0 0.0
        %1882 = vmatpush1.msra.mxu0 0.0
        %1883 = vmatprep.subr.mxu0 0.0
        %1884 = vmatpush1.msra.mxu0 0.0
        %1885 = vmatprep.subr.mxu0 0.0
        %1886 = vmatpush1.msra.mxu0 0.0
        %1887 = vmatprep.subr.mxu0 0.0
        %1888 = vmatpush1.msra.mxu0 0.0
        %1889 = vmatprep.subr.mxu0 0.0
        %1890 = vmatpush1.msra.mxu0 0.0
        %1891 = vmatprep.subr.mxu0 0.0
        %1892 = vmatpush1.msra.mxu0 0.0
        %1893 = vmatprep.subr.mxu0 0.0
        %1894 = vmatpush1.msra.mxu0 0.0
        %1895 = vmatprep.subr.mxu0 0.0
        %1896 = vmatpush1.msra.mxu0 0.0
        %1897 = vmatprep.subr.mxu0 0.0
        %1898 = vmatpush1.msra.mxu0 0.0
        %1899 = vmatprep.subr.mxu0 0.0
        %1900 = vmatpush1.msra.mxu0 0.0
        %1901 = vmatprep.subr.mxu0 0.0
        %1902 = vmatpush1.msra.mxu0 0.0
        %1903 = vmatprep.subr.mxu0 0.0
        %1904 = vmatpush1.msra.mxu0 0.0
        %1905 = vmatprep.subr.mxu0 0.0
        %1906 = vmatpush1.msra.mxu0 0.0
        %1907 = vmatprep.subr.mxu0 0.0
        %1908 = vmatpush1.msra.mxu0 0.0
        %1909 = vmatprep.subr.mxu0 0.0
        %1910 = vmatpush1.msra.mxu0 0.0
        %1911 = vmatprep.subr.mxu0 0.0
        %1912 = vmatpush1.msra.mxu0 0.0
        %1913 = vmatprep.subr.mxu0 0.0
        %1914 = vmatpush1.msra.mxu0 0.0
        %1915 = vmatprep.subr.mxu0 0.0
        %1916 = vmatpush1.msra.mxu0 0.0
        %1917 = vmatprep.subr.mxu0 0.0
        %1918 = vmatpush1.msra.mxu0 0.0
        %1919 = vmatprep.subr.mxu0 0.0
        %1920 = vmatpush1.msra.mxu0 0.0
        %1921 = vmatprep.subr.mxu0 0.0
        %1922 = vmatpush1.msra.mxu0 0.0
        %1923 = vmatprep.subr.mxu0 0.0
        %1924 = vmatpush1.msra.mxu0 0.0
        %1925 = vmatprep.subr.mxu0 0.0
        %1926 = vmatpush1.msra.mxu0 0.0
        %1927 = vmatprep.mubr.f32.mxu0 0.0
        %1928 = vmatmul.mubr.f32.gmra.mrb[0].mxu0 %v1858
        %v1929 = vpop.f32.mrb[0].mxu0
        %v1930 = vadd.f32 0.0, %v1929
        %v1931 = vpop.f32.mrb[0].mxu0
        %1932 = vmatprep.mubr.f32.mxu0 0.0
        %1933 = vmatmul.mubr.f32.gmra.mrb[0].mxu0 %v1861
        %v1934 = vpop.f32.mrb[0].mxu0
        %v1935 = vadd.f32 0.0, %v1934
        %v1936 = vpop.f32.mrb[0].mxu0
        %1937 = vdwg.mxu0
        %v1939 = vsel %vm1076, %v1671, 0
        %v1942 = vsel %vm1076, %v1676, 0
        %1944 = vmatprep.subr.mxu0 0.0
        %1945 = vmatpush1.msra.mxu0 %v1845
        %1946 = vmatprep.subr.mxu0 0.0
        %1947 = vmatpush1.msra.mxu0 %v1846
        %1948 = vmatprep.subr.mxu0 0.0
        %1949 = vmatpush1.msra.mxu0 %v1847
        %1950 = vmatprep.subr.mxu0 0.0
        %1951 = vmatpush1.msra.mxu0 %v1848
        %1952 = vmatprep.subr.mxu0 0.0
        %1953 = vmatpush1.msra.mxu0 0.0
        %1954 = vmatprep.subr.mxu0 0.0
        %1955 = vmatpush1.msra.mxu0 0.0
        %1956 = vmatprep.subr.mxu0 0.0
        %1957 = vmatpush1.msra.mxu0 0.0
        %1958 = vmatprep.subr.mxu0 0.0
        %1959 = vmatpush1.msra.mxu0 0.0
        %1960 = vmatprep.subr.mxu0 0.0
        %1961 = vmatpush1.msra.mxu0 0.0
        %1962 = vmatprep.subr.mxu0 0.0
        %1963 = vmatpush1.msra.mxu0 0.0
        %1964 = vmatprep.subr.mxu0 0.0
        %1965 = vmatpush1.msra.mxu0 0.0
        %1966 = vmatprep.subr.mxu0 0.0
        %1967 = vmatpush1.msra.mxu0 0.0
        %1968 = vmatprep.subr.mxu0 0.0
        %1969 = vmatpush1.msra.mxu0 0.0
        %1970 = vmatprep.subr.mxu0 0.0
        %1971 = vmatpush1.msra.mxu0 0.0
        %1972 = vmatprep.subr.mxu0 0.0
        %1973 = vmatpush1.msra.mxu0 0.0
        %1974 = vmatprep.subr.mxu0 0.0
        %1975 = vmatpush1.msra.mxu0 0.0
        %1976 = vmatprep.subr.mxu0 0.0
        %1977 = vmatpush1.msra.mxu0 0.0
        %1978 = vmatprep.subr.mxu0 0.0
        %1979 = vmatpush1.msra.mxu0 0.0
        %1980 = vmatprep.subr.mxu0 0.0
        %1981 = vmatpush1.msra.mxu0 0.0
        %1982 = vmatprep.subr.mxu0 0.0
        %1983 = vmatpush1.msra.mxu0 0.0
        %1984 = vmatprep.subr.mxu0 0.0
        %1985 = vmatpush1.msra.mxu0 0.0
        %1986 = vmatprep.subr.mxu0 0.0
        %1987 = vmatpush1.msra.mxu0 0.0
        %1988 = vmatprep.subr.mxu0 0.0
        %1989 = vmatpush1.msra.mxu0 0.0
        %1990 = vmatprep.subr.mxu0 0.0
        %1991 = vmatpush1.msra.mxu0 0.0
        %1992 = vmatprep.subr.mxu0 0.0
        %1993 = vmatpush1.msra.mxu0 0.0
        %1994 = vmatprep.subr.mxu0 0.0
        %1995 = vmatpush1.msra.mxu0 0.0
        %1996 = vmatprep.subr.mxu0 0.0
        %1997 = vmatpush1.msra.mxu0 0.0
        %1998 = vmatprep.subr.mxu0 0.0
        %1999 = vmatpush1.msra.mxu0 0.0
        %2000 = vmatprep.subr.mxu0 0.0
        %2001 = vmatpush1.msra.mxu0 0.0
        %2002 = vmatprep.subr.mxu0 0.0
        %2003 = vmatpush1.msra.mxu0 0.0
        %2004 = vmatprep.subr.mxu0 0.0
        %2005 = vmatpush1.msra.mxu0 0.0
        %2006 = vmatprep.subr.mxu0 0.0
        %2007 = vmatpush1.msra.mxu0 0.0
        %2008 = vmatprep.mubr.f32.mxu0 0.0
        %2009 = vmatmul.mubr.f32.gmra.mrb[0].mxu0 %v1939
        %v2010 = vpop.f32.mrb[0].mxu0
        %v2011 = vadd.f32 0.0, %v2010
        %v2012 = vpop.f32.mrb[0].mxu0
        %2013 = vmatprep.mubr.f32.mxu0 0.0
        %2014 = vmatmul.mubr.f32.gmra.mrb[0].mxu0 %v1942
        %v2015 = vpop.f32.mrb[0].mxu0
        %v2016 = vadd.f32 0.0, %v2015
        %v2017 = vpop.f32.mrb[0].mxu0
        %2018 = vdwg.mxu0
        %v2020 = vsel %vm1076, %v1752, 0
        %v2023 = vsel %vm1076, %v1757, 0
        %2025 = vmatprep.subr.mxu0 0.0
        %2026 = vmatpush1.msra.mxu0 %v1849
        %2027 = vmatprep.subr.mxu0 0.0
        %2028 = vmatpush1.msra.mxu0 %v1850
        %2029 = vmatprep.subr.mxu0 0.0
        %2030 = vmatpush1.msra.mxu0 %v1851
        %2031 = vmatprep.subr.mxu0 0.0
        %2032 = vmatpush1.msra.mxu0 %v1852
        %2033 = vmatprep.subr.mxu0 0.0
        %2034 = vmatpush1.msra.mxu0 0.0
        %2035 = vmatprep.subr.mxu0 0.0
        %2036 = vmatpush1.msra.mxu0 0.0
        %2037 = vmatprep.subr.mxu0 0.0
        %2038 = vmatpush1.msra.mxu0 0.0
        %2039 = vmatprep.subr.mxu0 0.0
        %2040 = vmatpush1.msra.mxu0 0.0
        %2041 = vmatprep.subr.mxu0 0.0
        %2042 = vmatpush1.msra.mxu0 0.0
        %2043 = vmatprep.subr.mxu0 0.0
        %2044 = vmatpush1.msra.mxu0 0.0
        %2045 = vmatprep.subr.mxu0 0.0
        %2046 = vmatpush1.msra.mxu0 0.0
        %2047 = vmatprep.subr.mxu0 0.0
        %2048 = vmatpush1.msra.mxu0 0.0
        %2049 = vmatprep.subr.mxu0 0.0
        %2050 = vmatpush1.msra.mxu0 0.0
        %2051 = vmatprep.subr.mxu0 0.0
        %2052 = vmatpush1.msra.mxu0 0.0
        %2053 = vmatprep.subr.mxu0 0.0
        %2054 = vmatpush1.msra.mxu0 0.0
        %2055 = vmatprep.subr.mxu0 0.0
        %2056 = vmatpush1.msra.mxu0 0.0
        %2057 = vmatprep.subr.mxu0 0.0
        %2058 = vmatpush1.msra.mxu0 0.0
        %2059 = vmatprep.subr.mxu0 0.0
        %2060 = vmatpush1.msra.mxu0 0.0
        %2061 = vmatprep.subr.mxu0 0.0
        %2062 = vmatpush1.msra.mxu0 0.0
        %2063 = vmatprep.subr.mxu0 0.0
        %2064 = vmatpush1.msra.mxu0 0.0
        %2065 = vmatprep.subr.mxu0 0.0
        %2066 = vmatpush1.msra.mxu0 0.0
        %2067 = vmatprep.subr.mxu0 0.0
        %2068 = vmatpush1.msra.mxu0 0.0
        %2069 = vmatprep.subr.mxu0 0.0
        %2070 = vmatpush1.msra.mxu0 0.0
        %2071 = vmatprep.subr.mxu0 0.0
        %2072 = vmatpush1.msra.mxu0 0.0
        %2073 = vmatprep.subr.mxu0 0.0
        %2074 = vmatpush1.msra.mxu0 0.0
        %2075 = vmatprep.subr.mxu0 0.0
        %2076 = vmatpush1.msra.mxu0 0.0
        %2077 = vmatprep.subr.mxu0 0.0
        %2078 = vmatpush1.msra.mxu0 0.0
        %2079 = vmatprep.subr.mxu0 0.0
        %2080 = vmatpush1.msra.mxu0 0.0
        %2081 = vmatprep.subr.mxu0 0.0
        %2082 = vmatpush1.msra.mxu0 0.0
        %2083 = vmatprep.subr.mxu0 0.0
        %2084 = vmatpush1.msra.mxu0 0.0
        %2085 = vmatprep.subr.mxu0 0.0
        %2086 = vmatpush1.msra.mxu0 0.0
        %2087 = vmatprep.subr.mxu0 0.0
        %2088 = vmatpush1.msra.mxu0 0.0
        %2089 = vmatprep.mubr.f32.mxu0 0.0
        %2090 = vmatmul.mubr.f32.gmra.mrb[0].mxu0 %v2020
        %v2091 = vpop.f32.mrb[0].mxu0
        %v2092 = vadd.f32 0.0, %v2091
        %v2093 = vpop.f32.mrb[0].mxu0
        %2094 = vmatprep.mubr.f32.mxu0 0.0
        %2095 = vmatmul.mubr.f32.gmra.mrb[0].mxu0 %v2023
        %v2096 = vpop.f32.mrb[0].mxu0
        %v2097 = vadd.f32 0.0, %v2096
        %v2098 = vpop.f32.mrb[0].mxu0
        %2099 = vdwg.mxu0
        %v2101 = vsel %vm1076, %v1833, 0
        %v2104 = vsel %vm1076, %v1838, 0
        %2106 = vmatprep.subr.mxu0 0.0
        %2107 = vmatpush1.msra.mxu0 %v1853
        %2108 = vmatprep.subr.mxu0 0.0
        %2109 = vmatpush1.msra.mxu0 %v1854
        %2110 = vmatprep.subr.mxu0 0.0
        %2111 = vmatpush1.msra.mxu0 %v1855
        %2112 = vmatprep.subr.mxu0 0.0
        %2113 = vmatpush1.msra.mxu0 %v1856
        %2114 = vmatprep.subr.mxu0 0.0
        %2115 = vmatpush1.msra.mxu0 0.0
        %2116 = vmatprep.subr.mxu0 0.0
        %2117 = vmatpush1.msra.mxu0 0.0
        %2118 = vmatprep.subr.mxu0 0.0
        %2119 = vmatpush1.msra.mxu0 0.0
        %2120 = vmatprep.subr.mxu0 0.0
        %2121 = vmatpush1.msra.mxu0 0.0
        %2122 = vmatprep.subr.mxu0 0.0
        %2123 = vmatpush1.msra.mxu0 0.0
        %2124 = vmatprep.subr.mxu0 0.0
        %2125 = vmatpush1.msra.mxu0 0.0
        %2126 = vmatprep.subr.mxu0 0.0
        %2127 = vmatpush1.msra.mxu0 0.0
        %2128 = vmatprep.subr.mxu0 0.0
        %2129 = vmatpush1.msra.mxu0 0.0
        %2130 = vmatprep.subr.mxu0 0.0
        %2131 = vmatpush1.msra.mxu0 0.0
        %2132 = vmatprep.subr.mxu0 0.0
        %2133 = vmatpush1.msra.mxu0 0.0
        %2134 = vmatprep.subr.mxu0 0.0
        %2135 = vmatpush1.msra.mxu0 0.0
        %2136 = vmatprep.subr.mxu0 0.0
        %2137 = vmatpush1.msra.mxu0 0.0
        %2138 = vmatprep.subr.mxu0 0.0
        %2139 = vmatpush1.msra.mxu0 0.0
        %2140 = vmatprep.subr.mxu0 0.0
        %2141 = vmatpush1.msra.mxu0 0.0
        %2142 = vmatprep.subr.mxu0 0.0
        %2143 = vmatpush1.msra.mxu0 0.0
        %2144 = vmatprep.subr.mxu0 0.0
        %2145 = vmatpush1.msra.mxu0 0.0
        %2146 = vmatprep.subr.mxu0 0.0
        %2147 = vmatpush1.msra.mxu0 0.0
        %2148 = vmatprep.subr.mxu0 0.0
        %2149 = vmatpush1.msra.mxu0 0.0
        %2150 = vmatprep.subr.mxu0 0.0
        %2151 = vmatpush1.msra.mxu0 0.0
        %2152 = vmatprep.subr.mxu0 0.0
        %2153 = vmatpush1.msra.mxu0 0.0
        %2154 = vmatprep.subr.mxu0 0.0
        %2155 = vmatpush1.msra.mxu0 0.0
        %2156 = vmatprep.subr.mxu0 0.0
        %2157 = vmatpush1.msra.mxu0 0.0
        %2158 = vmatprep.subr.mxu0 0.0
        %2159 = vmatpush1.msra.mxu0 0.0
        %2160 = vmatprep.subr.mxu0 0.0
        %2161 = vmatpush1.msra.mxu0 0.0
        %2162 = vmatprep.subr.mxu0 0.0
        %2163 = vmatpush1.msra.mxu0 0.0
        %2164 = vmatprep.subr.mxu0 0.0
        %2165 = vmatpush1.msra.mxu0 0.0
        %2166 = vmatprep.subr.mxu0 0.0
        %2167 = vmatpush1.msra.mxu0 0.0
        %2168 = vmatprep.subr.mxu0 0.0
        %2169 = vmatpush1.msra.mxu0 0.0
        %2170 = vmatprep.mubr.f32.mxu0 0.0
        %2171 = vmatmul.mubr.f32.gmra.mrb[0].mxu0 %v2101
        %v2172 = vpop.f32.mrb[0].mxu0
        %v2173 = vadd.f32 0.0, %v2172
        %v2174 = vpop.f32.mrb[0].mxu0
        %2175 = vmatprep.mubr.f32.mxu0 0.0
        %2176 = vmatmul.mubr.f32.gmra.mrb[0].mxu0 %v2104
        %v2177 = vpop.f32.mrb[0].mxu0
        %v2178 = vadd.f32 0.0, %v2177
        %v2179 = vpop.f32.mrb[0].mxu0
        %2180 = vdwg.mxu0
        %v2181 = vadd.f32 %v1930, %v2011
        %v2182 = vadd.f32 %v2181, %v2092
        %v2183 = vadd.f32 %v2182, %v2173
        %v2184 = vadd.f32 %v1935, %v2016
        %v2185 = vadd.f32 %v2184, %v2097
        %v2186 = vadd.f32 %v2185, %v2178
        %v2187 = vld [vmem:[%s8] sm:$0x1]
        %v2189 = vlaneseq
        %v2190 = vshrl.u32 %v2189, 7
        %v2191 = vsub.s32 0, %v2190
        %v2192 = vrot.slane %v2187, %v2191
        %v2194 = vadd.f32 %v2183, %v2192
        %v2195 = vadd.f32 %v2186, %v2192
        %v2196 = vadd.f32 %v775, %v2194
        %v2197 = vadd.f32 %v776, %v2195
        %2198 = vadd.xlane.f32.xlu0 %v2196
        %v2199 = vpop.xlane.xlu0 %2198
        %2200 = vadd.xlane.f32.xlu0 %v2197
        %v2201 = vpop.xlane.xlu0 %2200
        %v2202 = vmul.f32 %v2199, %v783
        %v2203 = vmul.f32 %v2201, %v783
        %v2204 = vsub.f32 %v2196, %v2202
        %v2205 = vsub.f32 %v2197, %v2203
        %v2206 = vmul.f32 %v2204, %v2204
        %v2207 = vmul.f32 %v2205, %v2205
        %2208 = vadd.xlane.f32.xlu0 %v2206
        %v2209 = vpop.xlane.xlu0 %2208
        %2210 = vadd.xlane.f32.xlu0 %v2207
        %v2211 = vpop.xlane.xlu0 %2210
        %v2212 = vmul.f32 %v2209, %v783
        %v2213 = vmul.f32 %v2211, %v783
        %v2214 = vadd.f32 %v2212, 1e-05
        %v2215 = vadd.f32 %v2213, 1e-05
        %v2216 = vrsqrt.pop %v2214
        %v2217 = vrsqrt.pop %v2215
        %v2218 = vmul.f32 %v2204, %v2216
        %v2219 = vmul.f32 %v2205, %v2217
        %v2220 = vld [vmem:[%s3] sm:$0x1]
        %v2222 = vlaneseq
        %v2223 = vshrl.u32 %v2222, 7
        %v2224 = vsub.s32 0, %v2223
        %v2225 = vrot.slane %v2220, %v2224
        %v2227 = vmul.f32 %v2218, %v2225
        %v2228 = vmul.f32 %v2219, %v2225
        %v2229 = vld [vmem:[#allocation11] sm:$0xff]
        %v2230 = vld [vmem:[#allocation11 + $0x8] sm:$0xff]
        %v2231 = vld [vmem:[#allocation11 + $0x10] sm:$0xff]
        %v2232 = vld [vmem:[#allocation11 + $0x18] sm:$0xff]
        %v2233 = vld [vmem:[#allocation11 + $0x20] sm:$0xff]
        %v2234 = vld [vmem:[#allocation11 + $0x28] sm:$0xff]
        %v2235 = vld [vmem:[#allocation11 + $0x30] sm:$0xff]
        %v2236 = vld [vmem:[#allocation11 + $0x38] sm:$0xff]
        %v2237 = vld [vmem:[#allocation11 + $0x40] sm:$0xff]
        %v2238 = vld [vmem:[#allocation11 + $0x48] sm:$0xff]
        %v2239 = vld [vmem:[#allocation11 + $0x50] sm:$0xff]
        %v2240 = vld [vmem:[#allocation11 + $0x58] sm:$0xff]
        %v2241 = vld [vmem:[#allocation11 + $0x60] sm:$0xff]
        %v2242 = vld [vmem:[#allocation11 + $0x68] sm:$0xff]
        %v2243 = vld [vmem:[#allocation11 + $0x70] sm:$0xff]
        %v2244 = vld [vmem:[#allocation11 + $0x78] sm:$0xff]
        %v2245 = vld [vmem:[%s10] sm:$0x1]
        %v2247 = vlaneseq
        %v2248 = vshrl.u32 %v2247, 7
        %v2249 = vsub.s32 0, %v2248
        %v2250 = vrot.slane %v2245, %v2249
        %2252 = vmatprep.subr.mxu0 0.0
        %2253 = vmatpush1.msra.mxu0 %v2229
        %2254 = vmatprep.subr.mxu0 0.0
        %2255 = vmatpush1.msra.mxu0 %v2230
        %2256 = vmatprep.subr.mxu0 0.0
        %2257 = vmatpush1.msra.mxu0 %v2231
        %2258 = vmatprep.subr.mxu0 0.0
        %2259 = vmatpush1.msra.mxu0 %v2232
        %2260 = vmatprep.subr.mxu0 0.0
        %2261 = vmatpush1.msra.mxu0 %v2233
        %2262 = vmatprep.subr.mxu0 0.0
        %2263 = vmatpush1.msra.mxu0 %v2234
        %2264 = vmatprep.subr.mxu0 0.0
        %2265 = vmatpush1.msra.mxu0 %v2235
        %2266 = vmatprep.subr.mxu0 0.0
        %2267 = vmatpush1.msra.mxu0 %v2236
        %2268 = vmatprep.subr.mxu0 0.0
        %2269 = vmatpush1.msra.mxu0 %v2237
        %2270 = vmatprep.subr.mxu0 0.0
        %2271 = vmatpush1.msra.mxu0 %v2238
        %2272 = vmatprep.subr.mxu0 0.0
        %2273 = vmatpush1.msra.mxu0 %v2239
        %2274 = vmatprep.subr.mxu0 0.0
        %2275 = vmatpush1.msra.mxu0 %v2240
        %2276 = vmatprep.subr.mxu0 0.0
        %2277 = vmatpush1.msra.mxu0 %v2241
        %2278 = vmatprep.subr.mxu0 0.0
        %2279 = vmatpush1.msra.mxu0 %v2242
        %2280 = vmatprep.subr.mxu0 0.0
        %2281 = vmatpush1.msra.mxu0 %v2243
        %2282 = vmatprep.subr.mxu0 0.0
        %2283 = vmatpush1.msra.mxu0 %v2244
        %2284 = vmatprep.subr.mxu0 0.0
        %2285 = vmatpush1.msra.mxu0 0.0
        %2286 = vmatprep.subr.mxu0 0.0
        %2287 = vmatpush1.msra.mxu0 0.0
        %2288 = vmatprep.subr.mxu0 0.0
        %2289 = vmatpush1.msra.mxu0 0.0
        %2290 = vmatprep.subr.mxu0 0.0
        %2291 = vmatpush1.msra.mxu0 0.0
        %2292 = vmatprep.subr.mxu0 0.0
        %2293 = vmatpush1.msra.mxu0 0.0
        %2294 = vmatprep.subr.mxu0 0.0
        %2295 = vmatpush1.msra.mxu0 0.0
        %2296 = vmatprep.subr.mxu0 0.0
        %2297 = vmatpush1.msra.mxu0 0.0
        %2298 = vmatprep.subr.mxu0 0.0
        %2299 = vmatpush1.msra.mxu0 0.0
        %2300 = vmatprep.subr.mxu0 0.0
        %2301 = vmatpush1.msra.mxu0 0.0
        %2302 = vmatprep.subr.mxu0 0.0
        %2303 = vmatpush1.msra.mxu0 0.0
        %2304 = vmatprep.subr.mxu0 0.0
        %2305 = vmatpush1.msra.mxu0 0.0
        %2306 = vmatprep.subr.mxu0 0.0
        %2307 = vmatpush1.msra.mxu0 0.0
        %2308 = vmatprep.subr.mxu0 0.0
        %2309 = vmatpush1.msra.mxu0 0.0
        %2310 = vmatprep.subr.mxu0 0.0
        %2311 = vmatpush1.msra.mxu0 0.0
        %2312 = vmatprep.subr.mxu0 0.0
        %2313 = vmatpush1.msra.mxu0 0.0
        %2314 = vmatprep.subr.mxu0 0.0
        %2315 = vmatpush1.msra.mxu0 0.0
        %2316 = vmatprep.mubr.f32.mxu0 0.0
        %2317 = vmatmul.mubr.f32.gmra.mrb[0].mxu0 %v2227
        %v2318 = vpop.f32.mrb[0].mxu0
        %v2319 = vadd.f32 %v2250, %v2318
        %v2320 = vpop.f32.mrb[0].mxu0
        %2321 = vmatprep.mubr.f32.mxu0 0.0
        %2322 = vmatmul.mubr.f32.gmra.mrb[0].mxu0 %v2228
        %v2323 = vpop.f32.mrb[0].mxu0
        %v2324 = vadd.f32 %v2250, %v2323
        %v2325 = vpop.f32.mrb[0].mxu0
        %2326 = vdwg.mxu0
        %v2327 = vld [vmem:[#allocation13] sm:$0xff]
        %v2328 = vld [vmem:[#allocation13 + $0x8] sm:$0xff]
        %v2329 = vld [vmem:[#allocation13 + $0x10] sm:$0xff]
        %v2330 = vld [vmem:[#allocation13 + $0x18] sm:$0xff]
        %v2331 = vld [vmem:[#allocation13 + $0x20] sm:$0xff]
        %v2332 = vld [vmem:[#allocation13 + $0x28] sm:$0xff]
        %v2333 = vld [vmem:[#allocation13 + $0x30] sm:$0xff]
        %v2334 = vld [vmem:[#allocation13 + $0x38] sm:$0xff]
        %v2335 = vld [vmem:[#allocation13 + $0x40] sm:$0xff]
        %v2336 = vld [vmem:[#allocation13 + $0x48] sm:$0xff]
        %v2337 = vld [vmem:[#allocation13 + $0x50] sm:$0xff]
        %v2338 = vld [vmem:[#allocation13 + $0x58] sm:$0xff]
        %v2339 = vld [vmem:[#allocation13 + $0x60] sm:$0xff]
        %v2340 = vld [vmem:[#allocation13 + $0x68] sm:$0xff]
        %v2341 = vld [vmem:[#allocation13 + $0x70] sm:$0xff]
        %v2342 = vld [vmem:[#allocation13 + $0x78] sm:$0xff]
        %v2343 = vld [vmem:[#allocation13 + $0x80] sm:$0xff]
        %v2344 = vld [vmem:[#allocation13 + $0x88] sm:$0xff]
        %v2345 = vld [vmem:[#allocation13 + $0x90] sm:$0xff]
        %v2346 = vld [vmem:[#allocation13 + $0x98] sm:$0xff]
        %v2347 = vld [vmem:[#allocation13 + $0xa0] sm:$0xff]
        %v2348 = vld [vmem:[#allocation13 + $0xa8] sm:$0xff]
        %v2349 = vld [vmem:[#allocation13 + $0xb0] sm:$0xff]
        %v2350 = vld [vmem:[#allocation13 + $0xb8] sm:$0xff]
        %v2351 = vld [vmem:[#allocation13 + $0xc0] sm:$0xff]
        %v2352 = vld [vmem:[#allocation13 + $0xc8] sm:$0xff]
        %v2353 = vld [vmem:[#allocation13 + $0xd0] sm:$0xff]
        %v2354 = vld [vmem:[#allocation13 + $0xd8] sm:$0xff]
        %v2355 = vld [vmem:[#allocation13 + $0xe0] sm:$0xff]
        %v2356 = vld [vmem:[#allocation13 + $0xe8] sm:$0xff]
        %v2357 = vld [vmem:[#allocation13 + $0xf0] sm:$0xff]
        %v2358 = vld [vmem:[#allocation13 + $0xf8] sm:$0xff]
        %v2359 = vld [vmem:[%s12] sm:$0x3]
        %v2361 = vlaneseq
        %v2362 = vshrl.u32 %v2361, 7
        %v2363 = vsub.s32 0, %v2362
        %v2364 = vrot.slane %v2359, %v2363
        %v2365 = vlaneseq
        %v2366 = vshrl.u32 %v2365, 7
        %v2367 = vsub.s32 1, %v2366
        %v2368 = vrot.slane %v2359, %v2367
        %2371 = vmatprep.subr.mxu0 %v2328
        %2372 = vmatpush1.msra.mxu0 %v2327
        %2373 = vmatprep.subr.mxu0 %v2330
        %2374 = vmatpush1.msra.mxu0 %v2329
        %2375 = vmatprep.subr.mxu0 %v2332
        %2376 = vmatpush1.msra.mxu0 %v2331
        %2377 = vmatprep.subr.mxu0 %v2334
        %2378 = vmatpush1.msra.mxu0 %v2333
        %2379 = vmatprep.subr.mxu0 %v2336
        %2380 = vmatpush1.msra.mxu0 %v2335
        %2381 = vmatprep.subr.mxu0 %v2338
        %2382 = vmatpush1.msra.mxu0 %v2337
        %2383 = vmatprep.subr.mxu0 %v2340
        %2384 = vmatpush1.msra.mxu0 %v2339
        %2385 = vmatprep.subr.mxu0 %v2342
        %2386 = vmatpush1.msra.mxu0 %v2341
        %2387 = vmatprep.subr.mxu0 %v2344
        %2388 = vmatpush1.msra.mxu0 %v2343
        %2389 = vmatprep.subr.mxu0 %v2346
        %2390 = vmatpush1.msra.mxu0 %v2345
        %2391 = vmatprep.subr.mxu0 %v2348
        %2392 = vmatpush1.msra.mxu0 %v2347
        %2393 = vmatprep.subr.mxu0 %v2350
        %2394 = vmatpush1.msra.mxu0 %v2349
        %2395 = vmatprep.subr.mxu0 %v2352
        %2396 = vmatpush1.msra.mxu0 %v2351
        %2397 = vmatprep.subr.mxu0 %v2354
        %2398 = vmatpush1.msra.mxu0 %v2353
        %2399 = vmatprep.subr.mxu0 %v2356
        %2400 = vmatpush1.msra.mxu0 %v2355
        %2401 = vmatprep.subr.mxu0 %v2358
        %2402 = vmatpush1.msra.mxu0 %v2357
        %2403 = vmatprep.subr.mxu0 0.0
        %2404 = vmatpush1.msra.mxu0 0.0
        %2405 = vmatprep.subr.mxu0 0.0
        %2406 = vmatpush1.msra.mxu0 0.0
        %2407 = vmatprep.subr.mxu0 0.0
        %2408 = vmatpush1.msra.mxu0 0.0
        %2409 = vmatprep.subr.mxu0 0.0
        %2410 = vmatpush1.msra.mxu0 0.0
        %2411 = vmatprep.subr.mxu0 0.0
        %2412 = vmatpush1.msra.mxu0 0.0
        %2413 = vmatprep.subr.mxu0 0.0
        %2414 = vmatpush1.msra.mxu0 0.0
        %2415 = vmatprep.subr.mxu0 0.0
        %2416 = vmatpush1.msra.mxu0 0.0
        %2417 = vmatprep.subr.mxu0 0.0
        %2418 = vmatpush1.msra.mxu0 0.0
        %2419 = vmatprep.subr.mxu0 0.0
        %2420 = vmatpush1.msra.mxu0 0.0
        %2421 = vmatprep.subr.mxu0 0.0
        %2422 = vmatpush1.msra.mxu0 0.0
        %2423 = vmatprep.subr.mxu0 0.0
        %2424 = vmatpush1.msra.mxu0 0.0
        %2425 = vmatprep.subr.mxu0 0.0
        %2426 = vmatpush1.msra.mxu0 0.0
        %2427 = vmatprep.subr.mxu0 0.0
        %2428 = vmatpush1.msra.mxu0 0.0
        %2429 = vmatprep.subr.mxu0 0.0
        %2430 = vmatpush1.msra.mxu0 0.0
        %2431 = vmatprep.subr.mxu0 0.0
        %2432 = vmatpush1.msra.mxu0 0.0
        %2433 = vmatprep.subr.mxu0 0.0
        %2434 = vmatpush1.msra.mxu0 0.0
        %2435 = vmatprep.mubr.f32.mxu0 0.0
        %2436 = vmatmul.mubr.f32.gmra.mrb[0].mxu0 %v777
        %v2437 = vpop.f32.mrb[0].mxu0
        %v2438 = vadd.f32 %v2364, %v2437
        %v2439 = vpop.f32.mrb[0].mxu0
        %v2440 = vadd.f32 %v2368, %v2439
        %2441 = vmatprep.mubr.f32.mxu0 0.0
        %2442 = vmatmul.mubr.f32.gmra.mrb[0].mxu0 %v778
        %v2443 = vpop.f32.mrb[0].mxu0
        %v2444 = vadd.f32 %v2364, %v2443
        %v2445 = vpop.f32.mrb[0].mxu0
        %v2446 = vadd.f32 %v2368, %v2445
        %2447 = vdwg.mxu0
        %2450 = vrot.lane.b32.xlu0 %v2319, 96
        %v2451 = vpop.permute.xlu0 %2450
        %2452 = vrot.lane.b32.xlu0 %v2324, 96
        %v2453 = vpop.permute.xlu0 %2452
        %2454 = vrot.lane.b32.xlu0 %v2319, 64
        %v2455 = vpop.permute.xlu0 %2454
        %2456 = vrot.lane.b32.xlu0 %v2324, 64
        %v2457 = vpop.permute.xlu0 %2456
        %2458 = vrot.lane.b32.xlu0 %v2319, 32
        %v2459 = vpop.permute.xlu0 %2458
        %2460 = vrot.lane.b32.xlu0 %v2324, 32
        %v2461 = vpop.permute.xlu0 %2460
        %2464 = vrot.lane.b32.xlu0 %v2438, 96
        %v2465 = vpop.permute.xlu0 %2464
        %2466 = vrot.lane.b32.xlu0 %v2444, 96
        %v2467 = vpop.permute.xlu0 %2466
        %2468 = vrot.lane.b32.xlu0 %v2438, 64
        %v2469 = vpop.permute.xlu0 %2468
        %2470 = vrot.lane.b32.xlu0 %v2444, 64
        %v2471 = vpop.permute.xlu0 %2470
        %2472 = vrot.lane.b32.xlu0 %v2438, 32
        %v2473 = vpop.permute.xlu0 %2472
        %2474 = vrot.lane.b32.xlu0 %v2444, 32
        %v2475 = vpop.permute.xlu0 %2474
        %2478 = vrot.lane.b32.xlu0 %v2440, 96
        %v2479 = vpop.permute.xlu0 %2478
        %2480 = vrot.lane.b32.xlu0 %v2446, 96
        %v2481 = vpop.permute.xlu0 %2480
        %2484 = vrot.lane.b32.xlu0 %v2440, 64
        %v2485 = vpop.permute.xlu0 %2484
        %2486 = vrot.lane.b32.xlu0 %v2446, 64
        %v2487 = vpop.permute.xlu0 %2486
        %2490 = vrot.lane.b32.xlu0 %v2440, 32
        %v2491 = vpop.permute.xlu0 %2490
        %2492 = vrot.lane.b32.xlu0 %v2446, 32
        %v2493 = vpop.permute.xlu0 %2492
        %v2496 = vsel %vm1076, %v2319, 0
        %v2498 = vsel %vm1076, %v2324, 0
        %v2500 = vsel %vm1076, %v2438, 0
        %v2502 = vsel %vm1076, %v2444, 0
        %2504 = vmatprep.subr.mxu0 0.0
        %2505 = vmatpush1.xpose.msra.mxu0 %v2500
        %2506 = vmatprep.subr.mxu0 0.0
        %2507 = vmatpush1.xpose.msra.mxu0 %v2502
        %2508 = vmatprep.subr.mxu0 0.0
        %2509 = vmatpush1.xpose.msra.mxu0 0.0
        %2510 = vmatprep.subr.mxu0 0.0
        %2511 = vmatpush1.xpose.msra.mxu0 0.0
        %2512 = vmatprep.subr.mxu0 0.0
        %2513 = vmatpush1.xpose.msra.mxu0 0.0
        %2514 = vmatprep.subr.mxu0 0.0
        %2515 = vmatpush1.xpose.msra.mxu0 0.0
        %2516 = vmatprep.subr.mxu0 0.0
        %2517 = vmatpush1.xpose.msra.mxu0 0.0
        %2518 = vmatprep.subr.mxu0 0.0
        %2519 = vmatpush1.xpose.msra.mxu0 0.0
        %2520 = vmatprep.subr.mxu0 0.0
        %2521 = vmatpush1.xpose.msra.mxu0 0.0
        %2522 = vmatprep.subr.mxu0 0.0
        %2523 = vmatpush1.xpose.msra.mxu0 0.0
        %2524 = vmatprep.subr.mxu0 0.0
        %2525 = vmatpush1.xpose.msra.mxu0 0.0
        %2526 = vmatprep.subr.mxu0 0.0
        %2527 = vmatpush1.xpose.msra.mxu0 0.0
        %2528 = vmatprep.subr.mxu0 0.0
        %2529 = vmatpush1.xpose.msra.mxu0 0.0
        %2530 = vmatprep.subr.mxu0 0.0
        %2531 = vmatpush1.xpose.msra.mxu0 0.0
        %2532 = vmatprep.subr.mxu0 0.0
        %2533 = vmatpush1.xpose.msra.mxu0 0.0
        %2534 = vmatprep.subr.mxu0 0.0
        %2535 = vmatpush1.xpose.msra.mxu0 0.0
        %2536 = vmatprep.subr.mxu0 0.0
        %2537 = vmatpush1.xpose.msra.mxu0 0.0
        %2538 = vmatprep.subr.mxu0 0.0
        %2539 = vmatpush1.xpose.msra.mxu0 0.0
        %2540 = vmatprep.subr.mxu0 0.0
        %2541 = vmatpush1.xpose.msra.mxu0 0.0
        %2542 = vmatprep.subr.mxu0 0.0
        %2543 = vmatpush1.xpose.msra.mxu0 0.0
        %2544 = vmatprep.subr.mxu0 0.0
        %2545 = vmatpush1.xpose.msra.mxu0 0.0
        %2546 = vmatprep.subr.mxu0 0.0
        %2547 = vmatpush1.xpose.msra.mxu0 0.0
        %2548 = vmatprep.subr.mxu0 0.0
        %2549 = vmatpush1.xpose.msra.mxu0 0.0
        %2550 = vmatprep.subr.mxu0 0.0
        %2551 = vmatpush1.xpose.msra.mxu0 0.0
        %2552 = vmatprep.subr.mxu0 0.0
        %2553 = vmatpush1.xpose.msra.mxu0 0.0
        %2554 = vmatprep.subr.mxu0 0.0
        %2555 = vmatpush1.xpose.msra.mxu0 0.0
        %2556 = vmatprep.subr.mxu0 0.0
        %2557 = vmatpush1.xpose.msra.mxu0 0.0
        %2558 = vmatprep.subr.mxu0 0.0
        %2559 = vmatpush1.xpose.msra.mxu0 0.0
        %2560 = vmatprep.subr.mxu0 0.0
        %2561 = vmatpush1.xpose.msra.mxu0 0.0
        %2562 = vmatprep.subr.mxu0 0.0
        %2563 = vmatpush1.xpose.msra.mxu0 0.0
        %2564 = vmatprep.subr.mxu0 0.0
        %2565 = vmatpush1.xpose.msra.mxu0 0.0
        %2566 = vmatprep.subr.mxu0 0.0
        %2567 = vmatpush1.xpose.msra.mxu0 0.0
        %2568 = vmatprep.mubr.f32.mxu0 0.0
        %2569 = vmatmul.mubr.f32.gmra.mrb[0].mxu0 %v2496
        %v2570 = vpop.f32.mrb[0].mxu0
        %v2571 = vadd.f32 0.0, %v2570
        %v2572 = vpop.f32.mrb[0].mxu0
        %2573 = vmatprep.mubr.f32.mxu0 0.0
        %2574 = vmatmul.mubr.f32.gmra.mrb[0].mxu0 %v2498
        %v2575 = vpop.f32.mrb[0].mxu0
        %v2576 = vadd.f32 0.0, %v2575
        %v2577 = vpop.f32.mrb[0].mxu0
        %2578 = vdwg.mxu0
        %v2579 = vsel %vm1076, %v2451, 0
        %v2581 = vsel %vm1076, %v2453, 0
        %v2583 = vsel %vm1076, %v2465, 0
        %v2585 = vsel %vm1076, %v2467, 0
        %2587 = vmatprep.subr.mxu0 0.0
        %2588 = vmatpush1.xpose.msra.mxu0 %v2583
        %2589 = vmatprep.subr.mxu0 0.0
        %2590 = vmatpush1.xpose.msra.mxu0 %v2585
        %2591 = vmatprep.subr.mxu0 0.0
        %2592 = vmatpush1.xpose.msra.mxu0 0.0
        %2593 = vmatprep.subr.mxu0 0.0
        %2594 = vmatpush1.xpose.msra.mxu0 0.0
        %2595 = vmatprep.subr.mxu0 0.0
        %2596 = vmatpush1.xpose.msra.mxu0 0.0
        %2597 = vmatprep.subr.mxu0 0.0
        %2598 = vmatpush1.xpose.msra.mxu0 0.0
        %2599 = vmatprep.subr.mxu0 0.0
        %2600 = vmatpush1.xpose.msra.mxu0 0.0
        %2601 = vmatprep.subr.mxu0 0.0
        %2602 = vmatpush1.xpose.msra.mxu0 0.0
        %2603 = vmatprep.subr.mxu0 0.0
        %2604 = vmatpush1.xpose.msra.mxu0 0.0
        %2605 = vmatprep.subr.mxu0 0.0
        %2606 = vmatpush1.xpose.msra.mxu0 0.0
        %2607 = vmatprep.subr.mxu0 0.0
        %2608 = vmatpush1.xpose.msra.mxu0 0.0
        %2609 = vmatprep.subr.mxu0 0.0
        %2610 = vmatpush1.xpose.msra.mxu0 0.0
        %2611 = vmatprep.subr.mxu0 0.0
        %2612 = vmatpush1.xpose.msra.mxu0 0.0
        %2613 = vmatprep.subr.mxu0 0.0
        %2614 = vmatpush1.xpose.msra.mxu0 0.0
        %2615 = vmatprep.subr.mxu0 0.0
        %2616 = vmatpush1.xpose.msra.mxu0 0.0
        %2617 = vmatprep.subr.mxu0 0.0
        %2618 = vmatpush1.xpose.msra.mxu0 0.0
        %2619 = vmatprep.subr.mxu0 0.0
        %2620 = vmatpush1.xpose.msra.mxu0 0.0
        %2621 = vmatprep.subr.mxu0 0.0
        %2622 = vmatpush1.xpose.msra.mxu0 0.0
        %2623 = vmatprep.subr.mxu0 0.0
        %2624 = vmatpush1.xpose.msra.mxu0 0.0
        %2625 = vmatprep.subr.mxu0 0.0
        %2626 = vmatpush1.xpose.msra.mxu0 0.0
        %2627 = vmatprep.subr.mxu0 0.0
        %2628 = vmatpush1.xpose.msra.mxu0 0.0
        %2629 = vmatprep.subr.mxu0 0.0
        %2630 = vmatpush1.xpose.msra.mxu0 0.0
        %2631 = vmatprep.subr.mxu0 0.0
        %2632 = vmatpush1.xpose.msra.mxu0 0.0
        %2633 = vmatprep.subr.mxu0 0.0
        %2634 = vmatpush1.xpose.msra.mxu0 0.0
        %2635 = vmatprep.subr.mxu0 0.0
        %2636 = vmatpush1.xpose.msra.mxu0 0.0
        %2637 = vmatprep.subr.mxu0 0.0
        %2638 = vmatpush1.xpose.msra.mxu0 0.0
        %2639 = vmatprep.subr.mxu0 0.0
        %2640 = vmatpush1.xpose.msra.mxu0 0.0
        %2641 = vmatprep.subr.mxu0 0.0
        %2642 = vmatpush1.xpose.msra.mxu0 0.0
        %2643 = vmatprep.subr.mxu0 0.0
        %2644 = vmatpush1.xpose.msra.mxu0 0.0
        %2645 = vmatprep.subr.mxu0 0.0
        %2646 = vmatpush1.xpose.msra.mxu0 0.0
        %2647 = vmatprep.subr.mxu0 0.0
        %2648 = vmatpush1.xpose.msra.mxu0 0.0
        %2649 = vmatprep.subr.mxu0 0.0
        %2650 = vmatpush1.xpose.msra.mxu0 0.0
        %2651 = vmatprep.mubr.f32.mxu0 0.0
        %2652 = vmatmul.mubr.f32.gmra.mrb[0].mxu0 %v2579
        %v2653 = vpop.f32.mrb[0].mxu0
        %v2654 = vadd.f32 0.0, %v2653
        %v2655 = vpop.f32.mrb[0].mxu0
        %2656 = vmatprep.mubr.f32.mxu0 0.0
        %2657 = vmatmul.mubr.f32.gmra.mrb[0].mxu0 %v2581
        %v2658 = vpop.f32.mrb[0].mxu0
        %v2659 = vadd.f32 0.0, %v2658
        %v2660 = vpop.f32.mrb[0].mxu0
        %2661 = vdwg.mxu0
        %v2662 = vsel %vm1076, %v2455, 0
        %v2664 = vsel %vm1076, %v2457, 0
        %v2666 = vsel %vm1076, %v2469, 0
        %v2668 = vsel %vm1076, %v2471, 0
        %2670 = vmatprep.subr.mxu0 0.0
        %2671 = vmatpush1.xpose.msra.mxu0 %v2666
        %2672 = vmatprep.subr.mxu0 0.0
        %2673 = vmatpush1.xpose.msra.mxu0 %v2668
        %2674 = vmatprep.subr.mxu0 0.0
        %2675 = vmatpush1.xpose.msra.mxu0 0.0
        %2676 = vmatprep.subr.mxu0 0.0
        %2677 = vmatpush1.xpose.msra.mxu0 0.0
        %2678 = vmatprep.subr.mxu0 0.0
        %2679 = vmatpush1.xpose.msra.mxu0 0.0
        %2680 = vmatprep.subr.mxu0 0.0
        %2681 = vmatpush1.xpose.msra.mxu0 0.0
        %2682 = vmatprep.subr.mxu0 0.0
        %2683 = vmatpush1.xpose.msra.mxu0 0.0
        %2684 = vmatprep.subr.mxu0 0.0
        %2685 = vmatpush1.xpose.msra.mxu0 0.0
        %2686 = vmatprep.subr.mxu0 0.0
        %2687 = vmatpush1.xpose.msra.mxu0 0.0
        %2688 = vmatprep.subr.mxu0 0.0
        %2689 = vmatpush1.xpose.msra.mxu0 0.0
        %2690 = vmatprep.subr.mxu0 0.0
        %2691 = vmatpush1.xpose.msra.mxu0 0.0
        %2692 = vmatprep.subr.mxu0 0.0
        %2693 = vmatpush1.xpose.msra.mxu0 0.0
        %2694 = vmatprep.subr.mxu0 0.0
        %2695 = vmatpush1.xpose.msra.mxu0 0.0
        %2696 = vmatprep.subr.mxu0 0.0
        %2697 = vmatpush1.xpose.msra.mxu0 0.0
        %2698 = vmatprep.subr.mxu0 0.0
        %2699 = vmatpush1.xpose.msra.mxu0 0.0
        %2700 = vmatprep.subr.mxu0 0.0
        %2701 = vmatpush1.xpose.msra.mxu0 0.0
        %2702 = vmatprep.subr.mxu0 0.0
        %2703 = vmatpush1.xpose.msra.mxu0 0.0
        %2704 = vmatprep.subr.mxu0 0.0
        %2705 = vmatpush1.xpose.msra.mxu0 0.0
        %2706 = vmatprep.subr.mxu0 0.0
        %2707 = vmatpush1.xpose.msra.mxu0 0.0
        %2708 = vmatprep.subr.mxu0 0.0
        %2709 = vmatpush1.xpose.msra.mxu0 0.0
        %2710 = vmatprep.subr.mxu0 0.0
        %2711 = vmatpush1.xpose.msra.mxu0 0.0
        %2712 = vmatprep.subr.mxu0 0.0
        %2713 = vmatpush1.xpose.msra.mxu0 0.0
        %2714 = vmatprep.subr.mxu0 0.0
        %2715 = vmatpush1.xpose.msra.mxu0 0.0
        %2716 = vmatprep.subr.mxu0 0.0
        %2717 = vmatpush1.xpose.msra.mxu0 0.0
        %2718 = vmatprep.subr.mxu0 0.0
        %2719 = vmatpush1.xpose.msra.mxu0 0.0
        %2720 = vmatprep.subr.mxu0 0.0
        %2721 = vmatpush1.xpose.msra.mxu0 0.0
        %2722 = vmatprep.subr.mxu0 0.0
        %2723 = vmatpush1.xpose.msra.mxu0 0.0
        %2724 = vmatprep.subr.mxu0 0.0
        %2725 = vmatpush1.xpose.msra.mxu0 0.0
        %2726 = vmatprep.subr.mxu0 0.0
        %2727 = vmatpush1.xpose.msra.mxu0 0.0
        %2728 = vmatprep.subr.mxu0 0.0
        %2729 = vmatpush1.xpose.msra.mxu0 0.0
        %2730 = vmatprep.subr.mxu0 0.0
        %2731 = vmatpush1.xpose.msra.mxu0 0.0
        %2732 = vmatprep.subr.mxu0 0.0
        %2733 = vmatpush1.xpose.msra.mxu0 0.0
        %2734 = vmatprep.mubr.f32.mxu0 0.0
        %2735 = vmatmul.mubr.f32.gmra.mrb[0].mxu0 %v2662
        %v2736 = vpop.f32.mrb[0].mxu0
        %v2737 = vadd.f32 0.0, %v2736
        %v2738 = vpop.f32.mrb[0].mxu0
        %2739 = vmatprep.mubr.f32.mxu0 0.0
        %2740 = vmatmul.mubr.f32.gmra.mrb[0].mxu0 %v2664
        %v2741 = vpop.f32.mrb[0].mxu0
        %v2742 = vadd.f32 0.0, %v2741
        %v2743 = vpop.f32.mrb[0].mxu0
        %2744 = vdwg.mxu0
        %v2745 = vsel %vm1076, %v2459, 0
        %v2747 = vsel %vm1076, %v2461, 0
        %v2749 = vsel %vm1076, %v2473, 0
        %v2751 = vsel %vm1076, %v2475, 0
        %2753 = vmatprep.subr.mxu0 0.0
        %2754 = vmatpush1.xpose.msra.mxu0 %v2749
        %2755 = vmatprep.subr.mxu0 0.0
        %2756 = vmatpush1.xpose.msra.mxu0 %v2751
        %2757 = vmatprep.subr.mxu0 0.0
        %2758 = vmatpush1.xpose.msra.mxu0 0.0
        %2759 = vmatprep.subr.mxu0 0.0
        %2760 = vmatpush1.xpose.msra.mxu0 0.0
        %2761 = vmatprep.subr.mxu0 0.0
        %2762 = vmatpush1.xpose.msra.mxu0 0.0
        %2763 = vmatprep.subr.mxu0 0.0
        %2764 = vmatpush1.xpose.msra.mxu0 0.0
        %2765 = vmatprep.subr.mxu0 0.0
        %2766 = vmatpush1.xpose.msra.mxu0 0.0
        %2767 = vmatprep.subr.mxu0 0.0
        %2768 = vmatpush1.xpose.msra.mxu0 0.0
        %2769 = vmatprep.subr.mxu0 0.0
        %2770 = vmatpush1.xpose.msra.mxu0 0.0
        %2771 = vmatprep.subr.mxu0 0.0
        %2772 = vmatpush1.xpose.msra.mxu0 0.0
        %2773 = vmatprep.subr.mxu0 0.0
        %2774 = vmatpush1.xpose.msra.mxu0 0.0
        %2775 = vmatprep.subr.mxu0 0.0
        %2776 = vmatpush1.xpose.msra.mxu0 0.0
        %2777 = vmatprep.subr.mxu0 0.0
        %2778 = vmatpush1.xpose.msra.mxu0 0.0
        %2779 = vmatprep.subr.mxu0 0.0
        %2780 = vmatpush1.xpose.msra.mxu0 0.0
        %2781 = vmatprep.subr.mxu0 0.0
        %2782 = vmatpush1.xpose.msra.mxu0 0.0
        %2783 = vmatprep.subr.mxu0 0.0
        %2784 = vmatpush1.xpose.msra.mxu0 0.0
        %2785 = vmatprep.subr.mxu0 0.0
        %2786 = vmatpush1.xpose.msra.mxu0 0.0
        %2787 = vmatprep.subr.mxu0 0.0
        %2788 = vmatpush1.xpose.msra.mxu0 0.0
        %2789 = vmatprep.subr.mxu0 0.0
        %2790 = vmatpush1.xpose.msra.mxu0 0.0
        %2791 = vmatprep.subr.mxu0 0.0
        %2792 = vmatpush1.xpose.msra.mxu0 0.0
        %2793 = vmatprep.subr.mxu0 0.0
        %2794 = vmatpush1.xpose.msra.mxu0 0.0
        %2795 = vmatprep.subr.mxu0 0.0
        %2796 = vmatpush1.xpose.msra.mxu0 0.0
        %2797 = vmatprep.subr.mxu0 0.0
        %2798 = vmatpush1.xpose.msra.mxu0 0.0
        %2799 = vmatprep.subr.mxu0 0.0
        %2800 = vmatpush1.xpose.msra.mxu0 0.0
        %2801 = vmatprep.subr.mxu0 0.0
        %2802 = vmatpush1.xpose.msra.mxu0 0.0
        %2803 = vmatprep.subr.mxu0 0.0
        %2804 = vmatpush1.xpose.msra.mxu0 0.0
        %2805 = vmatprep.subr.mxu0 0.0
        %2806 = vmatpush1.xpose.msra.mxu0 0.0
        %2807 = vmatprep.subr.mxu0 0.0
        %2808 = vmatpush1.xpose.msra.mxu0 0.0
        %2809 = vmatprep.subr.mxu0 0.0
        %2810 = vmatpush1.xpose.msra.mxu0 0.0
        %2811 = vmatprep.subr.mxu0 0.0
        %2812 = vmatpush1.xpose.msra.mxu0 0.0
        %2813 = vmatprep.subr.mxu0 0.0
        %2814 = vmatpush1.xpose.msra.mxu0 0.0
        %2815 = vmatprep.subr.mxu0 0.0
        %2816 = vmatpush1.xpose.msra.mxu0 0.0
        %2817 = vmatprep.mubr.f32.mxu0 0.0
        %2818 = vmatmul.mubr.f32.gmra.mrb[0].mxu0 %v2745
        %v2819 = vpop.f32.mrb[0].mxu0
        %v2820 = vadd.f32 0.0, %v2819
        %v2821 = vpop.f32.mrb[0].mxu0
        %2822 = vmatprep.mubr.f32.mxu0 0.0
        %2823 = vmatmul.mubr.f32.gmra.mrb[0].mxu0 %v2747
        %v2824 = vpop.f32.mrb[0].mxu0
        %v2825 = vadd.f32 0.0, %v2824
        %v2826 = vpop.f32.mrb[0].mxu0
        %2827 = vdwg.mxu0
        %v2828 = vsel %vm1428, %v2571, -inf
        %2829 = vmax.xlane.f32.xlu0 %v2828
        %v2830 = vpop.xlane.xlu0 %2829
        %v2831 = vsel %vm1428, %v2576, -inf
        %2832 = vmax.xlane.f32.xlu0 %v2831
        %v2833 = vpop.xlane.xlu0 %2832
        %v2834 = vsel %vm1428, %v2654, -inf
        %2835 = vmax.xlane.f32.xlu0 %v2834
        %v2836 = vpop.xlane.xlu0 %2835
        %v2837 = vsel %vm1428, %v2659, -inf
        %2838 = vmax.xlane.f32.xlu0 %v2837
        %v2839 = vpop.xlane.xlu0 %2838
        %v2840 = vsel %vm1428, %v2737, -inf
        %2841 = vmax.xlane.f32.xlu0 %v2840
        %v2842 = vpop.xlane.xlu0 %2841
        %v2843 = vsel %vm1428, %v2742, -inf
        %2844 = vmax.xlane.f32.xlu0 %v2843
        %v2845 = vpop.xlane.xlu0 %2844
        %v2846 = vsel %vm1428, %v2820, -inf
        %2847 = vmax.xlane.f32.xlu0 %v2846
        %v2848 = vpop.xlane.xlu0 %2847
        %v2849 = vsel %vm1428, %v2825, -inf
        %2850 = vmax.xlane.f32.xlu0 %v2849
        %v2851 = vpop.xlane.xlu0 %2850
        %v2852 = vsub.f32 %v2571, %v2830
        %v2853 = vsub.f32 %v2576, %v2833
        %v2854 = vsub.f32 %v2654, %v2836
        %v2855 = vsub.f32 %v2659, %v2839
        %v2856 = vsub.f32 %v2737, %v2842
        %v2857 = vsub.f32 %v2742, %v2845
        %v2858 = vsub.f32 %v2820, %v2848
        %v2859 = vsub.f32 %v2825, %v2851
        %v2860 = vmul.f32 %v2852, 1.442695
        %v2861 = vpow.pop %v2860
        %v2862 = vmul.f32 %v2853, 1.442695
        %v2863 = vpow.pop %v2862
        %v2864 = vmul.f32 %v2854, 1.442695
        %v2865 = vpow.pop %v2864
        %v2866 = vmul.f32 %v2855, 1.442695
        %v2867 = vpow.pop %v2866
        %v2868 = vmul.f32 %v2856, 1.442695
        %v2869 = vpow.pop %v2868
        %v2870 = vmul.f32 %v2857, 1.442695
        %v2871 = vpow.pop %v2870
        %v2872 = vmul.f32 %v2858, 1.442695
        %v2873 = vpow.pop %v2872
        %v2874 = vmul.f32 %v2859, 1.442695
        %v2875 = vpow.pop %v2874
        %v2876 = vsel %vm1428, %v2861, 0.0
        %2877 = vadd.xlane.f32.xlu0 %v2876
        %v2878 = vpop.xlane.xlu0 %2877
        %v2879 = vsel %vm1428, %v2863, 0.0
        %2880 = vadd.xlane.f32.xlu0 %v2879
        %v2881 = vpop.xlane.xlu0 %2880
        %v2882 = vsel %vm1428, %v2865, 0.0
        %2883 = vadd.xlane.f32.xlu0 %v2882
        %v2884 = vpop.xlane.xlu0 %2883
        %v2885 = vsel %vm1428, %v2867, 0.0
        %2886 = vadd.xlane.f32.xlu0 %v2885
        %v2887 = vpop.xlane.xlu0 %2886
        %v2888 = vsel %vm1428, %v2869, 0.0
        %2889 = vadd.xlane.f32.xlu0 %v2888
        %v2890 = vpop.xlane.xlu0 %2889
        %v2891 = vsel %vm1428, %v2871, 0.0
        %2892 = vadd.xlane.f32.xlu0 %v2891
        %v2893 = vpop.xlane.xlu0 %2892
        %v2894 = vsel %vm1428, %v2873, 0.0
        %2895 = vadd.xlane.f32.xlu0 %v2894
        %v2896 = vpop.xlane.xlu0 %2895
        %v2897 = vsel %vm1428, %v2875, 0.0
        %2898 = vadd.xlane.f32.xlu0 %v2897
        %v2899 = vpop.xlane.xlu0 %2898
        %v2900 = vrcp.pop %v2878
        %v2901 = vrcp.pop %v2881
        %v2902 = vrcp.pop %v2884
        %v2903 = vrcp.pop %v2887
        %v2904 = vrcp.pop %v2890
        %v2905 = vrcp.pop %v2893
        %v2906 = vrcp.pop %v2896
        %v2907 = vrcp.pop %v2899
        %v2908 = vmul.f32 %v2861, %v2900
        %v2909 = vmul.f32 %v2863, %v2901
        %v2910 = vmul.f32 %v2865, %v2902
        %v2911 = vmul.f32 %v2867, %v2903
        %v2912 = vmul.f32 %v2869, %v2904
        %v2913 = vmul.f32 %v2871, %v2905
        %v2914 = vmul.f32 %v2873, %v2906
        %v2915 = vmul.f32 %v2875, %v2907
        %v2917 = vsel %vm1428, %v2908, 0
        %v2920 = vsel %vm1428, %v2909, 0
        %2922 = vmatprep.subr.mxu0 0.0
        %2923 = vmatpush1.msra.mxu0 %v2440
        %2924 = vmatprep.subr.mxu0 0.0
        %2925 = vmatpush1.msra.mxu0 %v2446
        %2926 = vmatprep.subr.mxu0 0.0
        %2927 = vmatpush1.msra.mxu0 0.0
        %2928 = vmatprep.subr.mxu0 0.0
        %2929 = vmatpush1.msra.mxu0 0.0
        %2930 = vmatprep.subr.mxu0 0.0
        %2931 = vmatpush1.msra.mxu0 0.0
        %2932 = vmatprep.subr.mxu0 0.0
        %2933 = vmatpush1.msra.mxu0 0.0
        %2934 = vmatprep.subr.mxu0 0.0
        %2935 = vmatpush1.msra.mxu0 0.0
        %2936 = vmatprep.subr.mxu0 0.0
        %2937 = vmatpush1.msra.mxu0 0.0
        %2938 = vmatprep.subr.mxu0 0.0
        %2939 = vmatpush1.msra.mxu0 0.0
        %2940 = vmatprep.subr.mxu0 0.0
        %2941 = vmatpush1.msra.mxu0 0.0
        %2942 = vmatprep.subr.mxu0 0.0
        %2943 = vmatpush1.msra.mxu0 0.0
        %2944 = vmatprep.subr.mxu0 0.0
        %2945 = vmatpush1.msra.mxu0 0.0
        %2946 = vmatprep.subr.mxu0 0.0
        %2947 = vmatpush1.msra.mxu0 0.0
        %2948 = vmatprep.subr.mxu0 0.0
        %2949 = vmatpush1.msra.mxu0 0.0
        %2950 = vmatprep.subr.mxu0 0.0
        %2951 = vmatpush1.msra.mxu0 0.0
        %2952 = vmatprep.subr.mxu0 0.0
        %2953 = vmatpush1.msra.mxu0 0.0
        %2954 = vmatprep.subr.mxu0 0.0
        %2955 = vmatpush1.msra.mxu0 0.0
        %2956 = vmatprep.subr.mxu0 0.0
        %2957 = vmatpush1.msra.mxu0 0.0
        %2958 = vmatprep.subr.mxu0 0.0
        %2959 = vmatpush1.msra.mxu0 0.0
        %2960 = vmatprep.subr.mxu0 0.0
        %2961 = vmatpush1.msra.mxu0 0.0
        %2962 = vmatprep.subr.mxu0 0.0
        %2963 = vmatpush1.msra.mxu0 0.0
        %2964 = vmatprep.subr.mxu0 0.0
        %2965 = vmatpush1.msra.mxu0 0.0
        %2966 = vmatprep.subr.mxu0 0.0
        %2967 = vmatpush1.msra.mxu0 0.0
        %2968 = vmatprep.subr.mxu0 0.0
        %2969 = vmatpush1.msra.mxu0 0.0
        %2970 = vmatprep.subr.mxu0 0.0
        %2971 = vmatpush1.msra.mxu0 0.0
        %2972 = vmatprep.subr.mxu0 0.0
        %2973 = vmatpush1.msra.mxu0 0.0
        %2974 = vmatprep.subr.mxu0 0.0
        %2975 = vmatpush1.msra.mxu0 0.0
        %2976 = vmatprep.subr.mxu0 0.0
        %2977 = vmatpush1.msra.mxu0 0.0
        %2978 = vmatprep.subr.mxu0 0.0
        %2979 = vmatpush1.msra.mxu0 0.0
        %2980 = vmatprep.subr.mxu0 0.0
        %2981 = vmatpush1.msra.mxu0 0.0
        %2982 = vmatprep.subr.mxu0 0.0
        %2983 = vmatpush1.msra.mxu0 0.0
        %2984 = vmatprep.subr.mxu0 0.0
        %2985 = vmatpush1.msra.mxu0 0.0
        %2986 = vmatprep.mubr.f32.mxu0 0.0
        %2987 = vmatmul.mubr.f32.gmra.mrb[0].mxu0 %v2917
        %v2988 = vpop.f32.mrb[0].mxu0
        %v2989 = vadd.f32 0.0, %v2988
        %v2990 = vpop.f32.mrb[0].mxu0
        %2991 = vmatprep.mubr.f32.mxu0 0.0
        %2992 = vmatmul.mubr.f32.gmra.mrb[0].mxu0 %v2920
        %v2993 = vpop.f32.mrb[0].mxu0
        %v2994 = vadd.f32 0.0, %v2993
        %v2995 = vpop.f32.mrb[0].mxu0
        %2996 = vdwg.mxu0
        %v2998 = vsel %vm1428, %v2910, 0
        %v3001 = vsel %vm1428, %v2911, 0
        %3003 = vmatprep.subr.mxu0 0.0
        %3004 = vmatpush1.msra.mxu0 %v2479
        %3005 = vmatprep.subr.mxu0 0.0
        %3006 = vmatpush1.msra.mxu0 %v2481
        %3007 = vmatprep.subr.mxu0 0.0
        %3008 = vmatpush1.msra.mxu0 0.0
        %3009 = vmatprep.subr.mxu0 0.0
        %3010 = vmatpush1.msra.mxu0 0.0
        %3011 = vmatprep.subr.mxu0 0.0
        %3012 = vmatpush1.msra.mxu0 0.0
        %3013 = vmatprep.subr.mxu0 0.0
        %3014 = vmatpush1.msra.mxu0 0.0
        %3015 = vmatprep.subr.mxu0 0.0
        %3016 = vmatpush1.msra.mxu0 0.0
        %3017 = vmatprep.subr.mxu0 0.0
        %3018 = vmatpush1.msra.mxu0 0.0
        %3019 = vmatprep.subr.mxu0 0.0
        %3020 = vmatpush1.msra.mxu0 0.0
        %3021 = vmatprep.subr.mxu0 0.0
        %3022 = vmatpush1.msra.mxu0 0.0
        %3023 = vmatprep.subr.mxu0 0.0
        %3024 = vmatpush1.msra.mxu0 0.0
        %3025 = vmatprep.subr.mxu0 0.0
        %3026 = vmatpush1.msra.mxu0 0.0
        %3027 = vmatprep.subr.mxu0 0.0
        %3028 = vmatpush1.msra.mxu0 0.0
        %3029 = vmatprep.subr.mxu0 0.0
        %3030 = vmatpush1.msra.mxu0 0.0
        %3031 = vmatprep.subr.mxu0 0.0
        %3032 = vmatpush1.msra.mxu0 0.0
        %3033 = vmatprep.subr.mxu0 0.0
        %3034 = vmatpush1.msra.mxu0 0.0
        %3035 = vmatprep.subr.mxu0 0.0
        %3036 = vmatpush1.msra.mxu0 0.0
        %3037 = vmatprep.subr.mxu0 0.0
        %3038 = vmatpush1.msra.mxu0 0.0
        %3039 = vmatprep.subr.mxu0 0.0
        %3040 = vmatpush1.msra.mxu0 0.0
        %3041 = vmatprep.subr.mxu0 0.0
        %3042 = vmatpush1.msra.mxu0 0.0
        %3043 = vmatprep.subr.mxu0 0.0
        %3044 = vmatpush1.msra.mxu0 0.0
        %3045 = vmatprep.subr.mxu0 0.0
        %3046 = vmatpush1.msra.mxu0 0.0
        %3047 = vmatprep.subr.mxu0 0.0
        %3048 = vmatpush1.msra.mxu0 0.0
        %3049 = vmatprep.subr.mxu0 0.0
        %3050 = vmatpush1.msra.mxu0 0.0
        %3051 = vmatprep.subr.mxu0 0.0
        %3052 = vmatpush1.msra.mxu0 0.0
        %3053 = vmatprep.subr.mxu0 0.0
        %3054 = vmatpush1.msra.mxu0 0.0
        %3055 = vmatprep.subr.mxu0 0.0
        %3056 = vmatpush1.msra.mxu0 0.0
        %3057 = vmatprep.subr.mxu0 0.0
        %3058 = vmatpush1.msra.mxu0 0.0
        %3059 = vmatprep.subr.mxu0 0.0
        %3060 = vmatpush1.msra.mxu0 0.0
        %3061 = vmatprep.subr.mxu0 0.0
        %3062 = vmatpush1.msra.mxu0 0.0
        %3063 = vmatprep.subr.mxu0 0.0
        %3064 = vmatpush1.msra.mxu0 0.0
        %3065 = vmatprep.subr.mxu0 0.0
        %3066 = vmatpush1.msra.mxu0 0.0
        %3067 = vmatprep.mubr.f32.mxu0 0.0
        %3068 = vmatmul.mubr.f32.gmra.mrb[0].mxu0 %v2998
        %v3069 = vpop.f32.mrb[0].mxu0
        %v3070 = vadd.f32 0.0, %v3069
        %v3071 = vpop.f32.mrb[0].mxu0
        %3072 = vmatprep.mubr.f32.mxu0 0.0
        %3073 = vmatmul.mubr.f32.gmra.mrb[0].mxu0 %v3001
        %v3074 = vpop.f32.mrb[0].mxu0
        %v3075 = vadd.f32 0.0, %v3074
        %v3076 = vpop.f32.mrb[0].mxu0
        %3077 = vdwg.mxu0
        %v3079 = vsel %vm1428, %v2912, 0
        %v3082 = vsel %vm1428, %v2913, 0
        %3084 = vmatprep.subr.mxu0 0.0
        %3085 = vmatpush1.msra.mxu0 %v2485
        %3086 = vmatprep.subr.mxu0 0.0
        %3087 = vmatpush1.msra.mxu0 %v2487
        %3088 = vmatprep.subr.mxu0 0.0
        %3089 = vmatpush1.msra.mxu0 0.0
        %3090 = vmatprep.subr.mxu0 0.0
        %3091 = vmatpush1.msra.mxu0 0.0
        %3092 = vmatprep.subr.mxu0 0.0
        %3093 = vmatpush1.msra.mxu0 0.0
        %3094 = vmatprep.subr.mxu0 0.0
        %3095 = vmatpush1.msra.mxu0 0.0
        %3096 = vmatprep.subr.mxu0 0.0
        %3097 = vmatpush1.msra.mxu0 0.0
        %3098 = vmatprep.subr.mxu0 0.0
        %3099 = vmatpush1.msra.mxu0 0.0
        %3100 = vmatprep.subr.mxu0 0.0
        %3101 = vmatpush1.msra.mxu0 0.0
        %3102 = vmatprep.subr.mxu0 0.0
        %3103 = vmatpush1.msra.mxu0 0.0
        %3104 = vmatprep.subr.mxu0 0.0
        %3105 = vmatpush1.msra.mxu0 0.0
        %3106 = vmatprep.subr.mxu0 0.0
        %3107 = vmatpush1.msra.mxu0 0.0
        %3108 = vmatprep.subr.mxu0 0.0
        %3109 = vmatpush1.msra.mxu0 0.0
        %3110 = vmatprep.subr.mxu0 0.0
        %3111 = vmatpush1.msra.mxu0 0.0
        %3112 = vmatprep.subr.mxu0 0.0
        %3113 = vmatpush1.msra.mxu0 0.0
        %3114 = vmatprep.subr.mxu0 0.0
        %3115 = vmatpush1.msra.mxu0 0.0
        %3116 = vmatprep.subr.mxu0 0.0
        %3117 = vmatpush1.msra.mxu0 0.0
        %3118 = vmatprep.subr.mxu0 0.0
        %3119 = vmatpush1.msra.mxu0 0.0
        %3120 = vmatprep.subr.mxu0 0.0
        %3121 = vmatpush1.msra.mxu0 0.0
        %3122 = vmatprep.subr.mxu0 0.0
        %3123 = vmatpush1.msra.mxu0 0.0
        %3124 = vmatprep.subr.mxu0 0.0
        %3125 = vmatpush1.msra.mxu0 0.0
        %3126 = vmatprep.subr.mxu0 0.0
        %3127 = vmatpush1.msra.mxu0 0.0
        %3128 = vmatprep.subr.mxu0 0.0
        %3129 = vmatpush1.msra.mxu0 0.0
        %3130 = vmatprep.subr.mxu0 0.0
        %3131 = vmatpush1.msra.mxu0 0.0
        %3132 = vmatprep.subr.mxu0 0.0
        %3133 = vmatpush1.msra.mxu0 0.0
        %3134 = vmatprep.subr.mxu0 0.0
        %3135 = vmatpush1.msra.mxu0 0.0
        %3136 = vmatprep.subr.mxu0 0.0
        %3137 = vmatpush1.msra.mxu0 0.0
        %3138 = vmatprep.subr.mxu0 0.0
        %3139 = vmatpush1.msra.mxu0 0.0
        %3140 = vmatprep.subr.mxu0 0.0
        %3141 = vmatpush1.msra.mxu0 0.0
        %3142 = vmatprep.subr.mxu0 0.0
        %3143 = vmatpush1.msra.mxu0 0.0
        %3144 = vmatprep.subr.mxu0 0.0
        %3145 = vmatpush1.msra.mxu0 0.0
        %3146 = vmatprep.subr.mxu0 0.0
        %3147 = vmatpush1.msra.mxu0 0.0
        %3148 = vmatprep.mubr.f32.mxu0 0.0
        %3149 = vmatmul.mubr.f32.gmra.mrb[0].mxu0 %v3079
        %v3150 = vpop.f32.mrb[0].mxu0
        %v3151 = vadd.f32 0.0, %v3150
        %v3152 = vpop.f32.mrb[0].mxu0
        %3153 = vmatprep.mubr.f32.mxu0 0.0
        %3154 = vmatmul.mubr.f32.gmra.mrb[0].mxu0 %v3082
        %v3155 = vpop.f32.mrb[0].mxu0
        %v3156 = vadd.f32 0.0, %v3155
        %v3157 = vpop.f32.mrb[0].mxu0
        %3158 = vdwg.mxu0
        %v3160 = vsel %vm1428, %v2914, 0
        %v3163 = vsel %vm1428, %v2915, 0
        %3165 = vmatprep.subr.mxu0 0.0
        %3166 = vmatpush1.msra.mxu0 %v2491
        %3167 = vmatprep.subr.mxu0 0.0
        %3168 = vmatpush1.msra.mxu0 %v2493
        %3169 = vmatprep.subr.mxu0 0.0
        %3170 = vmatpush1.msra.mxu0 0.0
        %3171 = vmatprep.subr.mxu0 0.0
        %3172 = vmatpush1.msra.mxu0 0.0
        %3173 = vmatprep.subr.mxu0 0.0
        %3174 = vmatpush1.msra.mxu0 0.0
        %3175 = vmatprep.subr.mxu0 0.0
        %3176 = vmatpush1.msra.mxu0 0.0
        %3177 = vmatprep.subr.mxu0 0.0
        %3178 = vmatpush1.msra.mxu0 0.0
        %3179 = vmatprep.subr.mxu0 0.0
        %3180 = vmatpush1.msra.mxu0 0.0
        %3181 = vmatprep.subr.mxu0 0.0
        %3182 = vmatpush1.msra.mxu0 0.0
        %3183 = vmatprep.subr.mxu0 0.0
        %3184 = vmatpush1.msra.mxu0 0.0
        %3185 = vmatprep.subr.mxu0 0.0
        %3186 = vmatpush1.msra.mxu0 0.0
        %3187 = vmatprep.subr.mxu0 0.0
        %3188 = vmatpush1.msra.mxu0 0.0
        %3189 = vmatprep.subr.mxu0 0.0
        %3190 = vmatpush1.msra.mxu0 0.0
        %3191 = vmatprep.subr.mxu0 0.0
        %3192 = vmatpush1.msra.mxu0 0.0
        %3193 = vmatprep.subr.mxu0 0.0
        %3194 = vmatpush1.msra.mxu0 0.0
        %3195 = vmatprep.subr.mxu0 0.0
        %3196 = vmatpush1.msra.mxu0 0.0
        %3197 = vmatprep.subr.mxu0 0.0
        %3198 = vmatpush1.msra.mxu0 0.0
        %3199 = vmatprep.subr.mxu0 0.0
        %3200 = vmatpush1.msra.mxu0 0.0
        %3201 = vmatprep.subr.mxu0 0.0
        %3202 = vmatpush1.msra.mxu0 0.0
        %3203 = vmatprep.subr.mxu0 0.0
        %3204 = vmatpush1.msra.mxu0 0.0
        %3205 = vmatprep.subr.mxu0 0.0
        %3206 = vmatpush1.msra.mxu0 0.0
        %3207 = vmatprep.subr.mxu0 0.0
        %3208 = vmatpush1.msra.mxu0 0.0
        %3209 = vmatprep.subr.mxu0 0.0
        %3210 = vmatpush1.msra.mxu0 0.0
        %3211 = vmatprep.subr.mxu0 0.0
        %3212 = vmatpush1.msra.mxu0 0.0
        %3213 = vmatprep.subr.mxu0 0.0
        %3214 = vmatpush1.msra.mxu0 0.0
        %3215 = vmatprep.subr.mxu0 0.0
        %3216 = vmatpush1.msra.mxu0 0.0
        %3217 = vmatprep.subr.mxu0 0.0
        %3218 = vmatpush1.msra.mxu0 0.0
        %3219 = vmatprep.subr.mxu0 0.0
        %3220 = vmatpush1.msra.mxu0 0.0
        %3221 = vmatprep.subr.mxu0 0.0
        %3222 = vmatpush1.msra.mxu0 0.0
        %3223 = vmatprep.subr.mxu0 0.0
        %3224 = vmatpush1.msra.mxu0 0.0
        %3225 = vmatprep.subr.mxu0 0.0
        %3226 = vmatpush1.msra.mxu0 0.0
        %3227 = vmatprep.subr.mxu0 0.0
        %3228 = vmatpush1.msra.mxu0 0.0
        %3229 = vmatprep.mubr.f32.mxu0 0.0
        %3230 = vmatmul.mubr.f32.gmra.mrb[0].mxu0 %v3160
        %v3231 = vpop.f32.mrb[0].mxu0
        %v3232 = vadd.f32 0.0, %v3231
        %v3233 = vpop.f32.mrb[0].mxu0
        %3234 = vmatprep.mubr.f32.mxu0 0.0
        %3235 = vmatmul.mubr.f32.gmra.mrb[0].mxu0 %v3163
        %v3236 = vpop.f32.mrb[0].mxu0
        %v3237 = vadd.f32 0.0, %v3236
        %v3238 = vpop.f32.mrb[0].mxu0
        %3239 = vdwg.mxu0
        %v3240 = vld [vmem:[#allocation14] sm:$0xff]
        %v3241 = vld [vmem:[#allocation14 + $0x8] sm:$0xff]
        %v3242 = vld [vmem:[#allocation14 + $0x10] sm:$0xff]
        %v3243 = vld [vmem:[#allocation14 + $0x18] sm:$0xff]
        %v3244 = vld [vmem:[#allocation14 + $0x20] sm:$0xff]
        %v3245 = vld [vmem:[#allocation14 + $0x28] sm:$0xff]
        %v3246 = vld [vmem:[#allocation14 + $0x30] sm:$0xff]
        %v3247 = vld [vmem:[#allocation14 + $0x38] sm:$0xff]
        %v3248 = vld [vmem:[#allocation14 + $0x40] sm:$0xff]
        %v3249 = vld [vmem:[#allocation14 + $0x48] sm:$0xff]
        %v3250 = vld [vmem:[#allocation14 + $0x50] sm:$0xff]
        %v3251 = vld [vmem:[#allocation14 + $0x58] sm:$0xff]
        %v3252 = vld [vmem:[#allocation14 + $0x60] sm:$0xff]
        %v3253 = vld [vmem:[#allocation14 + $0x68] sm:$0xff]
        %v3254 = vld [vmem:[#allocation14 + $0x70] sm:$0xff]
        %v3255 = vld [vmem:[#allocation14 + $0x78] sm:$0xff]
        %v3257 = vsel %vm1076, %v2989, 0
        %v3260 = vsel %vm1076, %v2994, 0
        %3262 = vmatprep.subr.mxu0 0.0
        %3263 = vmatpush1.msra.mxu0 %v3240
        %3264 = vmatprep.subr.mxu0 0.0
        %3265 = vmatpush1.msra.mxu0 %v3241
        %3266 = vmatprep.subr.mxu0 0.0
        %3267 = vmatpush1.msra.mxu0 %v3242
        %3268 = vmatprep.subr.mxu0 0.0
        %3269 = vmatpush1.msra.mxu0 %v3243
        %3270 = vmatprep.subr.mxu0 0.0
        %3271 = vmatpush1.msra.mxu0 0.0
        %3272 = vmatprep.subr.mxu0 0.0
        %3273 = vmatpush1.msra.mxu0 0.0
        %3274 = vmatprep.subr.mxu0 0.0
        %3275 = vmatpush1.msra.mxu0 0.0
        %3276 = vmatprep.subr.mxu0 0.0
        %3277 = vmatpush1.msra.mxu0 0.0
        %3278 = vmatprep.subr.mxu0 0.0
        %3279 = vmatpush1.msra.mxu0 0.0
        %3280 = vmatprep.subr.mxu0 0.0
        %3281 = vmatpush1.msra.mxu0 0.0
        %3282 = vmatprep.subr.mxu0 0.0
        %3283 = vmatpush1.msra.mxu0 0.0
        %3284 = vmatprep.subr.mxu0 0.0
        %3285 = vmatpush1.msra.mxu0 0.0
        %3286 = vmatprep.subr.mxu0 0.0
        %3287 = vmatpush1.msra.mxu0 0.0
        %3288 = vmatprep.subr.mxu0 0.0
        %3289 = vmatpush1.msra.mxu0 0.0
        %3290 = vmatprep.subr.mxu0 0.0
        %3291 = vmatpush1.msra.mxu0 0.0
        %3292 = vmatprep.subr.mxu0 0.0
        %3293 = vmatpush1.msra.mxu0 0.0
        %3294 = vmatprep.subr.mxu0 0.0
        %3295 = vmatpush1.msra.mxu0 0.0
        %3296 = vmatprep.subr.mxu0 0.0
        %3297 = vmatpush1.msra.mxu0 0.0
        %3298 = vmatprep.subr.mxu0 0.0
        %3299 = vmatpush1.msra.mxu0 0.0
        %3300 = vmatprep.subr.mxu0 0.0
        %3301 = vmatpush1.msra.mxu0 0.0
        %3302 = vmatprep.subr.mxu0 0.0
        %3303 = vmatpush1.msra.mxu0 0.0
        %3304 = vmatprep.subr.mxu0 0.0
        %3305 = vmatpush1.msra.mxu0 0.0
        %3306 = vmatprep.subr.mxu0 0.0
        %3307 = vmatpush1.msra.mxu0 0.0
        %3308 = vmatprep.subr.mxu0 0.0
        %3309 = vmatpush1.msra.mxu0 0.0
        %3310 = vmatprep.subr.mxu0 0.0
        %3311 = vmatpush1.msra.mxu0 0.0
        %3312 = vmatprep.subr.mxu0 0.0
        %3313 = vmatpush1.msra.mxu0 0.0
        %3314 = vmatprep.subr.mxu0 0.0
        %3315 = vmatpush1.msra.mxu0 0.0
        %3316 = vmatprep.subr.mxu0 0.0
        %3317 = vmatpush1.msra.mxu0 0.0
        %3318 = vmatprep.subr.mxu0 0.0
        %3319 = vmatpush1.msra.mxu0 0.0
        %3320 = vmatprep.subr.mxu0 0.0
        %3321 = vmatpush1.msra.mxu0 0.0
        %3322 = vmatprep.subr.mxu0 0.0
        %3323 = vmatpush1.msra.mxu0 0.0
        %3324 = vmatprep.subr.mxu0 0.0
        %3325 = vmatpush1.msra.mxu0 0.0
        %3326 = vmatprep.mubr.f32.mxu0 0.0
        %3327 = vmatmul.mubr.f32.gmra.mrb[0].mxu0 %v3257
        %v3328 = vpop.f32.mrb[0].mxu0
        %v3329 = vadd.f32 0.0, %v3328
        %v3330 = vpop.f32.mrb[0].mxu0
        %3331 = vmatprep.mubr.f32.mxu0 0.0
        %3332 = vmatmul.mubr.f32.gmra.mrb[0].mxu0 %v3260
        %v3333 = vpop.f32.mrb[0].mxu0
        %v3334 = vadd.f32 0.0, %v3333
        %v3335 = vpop.f32.mrb[0].mxu0
        %3336 = vdwg.mxu0
        %v3338 = vsel %vm1076, %v3070, 0
        %v3341 = vsel %vm1076, %v3075, 0
        %3343 = vmatprep.subr.mxu0 0.0
        %3344 = vmatpush1.msra.mxu0 %v3244
        %3345 = vmatprep.subr.mxu0 0.0
        %3346 = vmatpush1.msra.mxu0 %v3245
        %3347 = vmatprep.subr.mxu0 0.0
        %3348 = vmatpush1.msra.mxu0 %v3246
        %3349 = vmatprep.subr.mxu0 0.0
        %3350 = vmatpush1.msra.mxu0 %v3247
        %3351 = vmatprep.subr.mxu0 0.0
        %3352 = vmatpush1.msra.mxu0 0.0
        %3353 = vmatprep.subr.mxu0 0.0
        %3354 = vmatpush1.msra.mxu0 0.0
        %3355 = vmatprep.subr.mxu0 0.0
        %3356 = vmatpush1.msra.mxu0 0.0
        %3357 = vmatprep.subr.mxu0 0.0
        %3358 = vmatpush1.msra.mxu0 0.0
        %3359 = vmatprep.subr.mxu0 0.0
        %3360 = vmatpush1.msra.mxu0 0.0
        %3361 = vmatprep.subr.mxu0 0.0
        %3362 = vmatpush1.msra.mxu0 0.0
        %3363 = vmatprep.subr.mxu0 0.0
        %3364 = vmatpush1.msra.mxu0 0.0
        %3365 = vmatprep.subr.mxu0 0.0
        %3366 = vmatpush1.msra.mxu0 0.0
        %3367 = vmatprep.subr.mxu0 0.0
        %3368 = vmatpush1.msra.mxu0 0.0
        %3369 = vmatprep.subr.mxu0 0.0
        %3370 = vmatpush1.msra.mxu0 0.0
        %3371 = vmatprep.subr.mxu0 0.0
        %3372 = vmatpush1.msra.mxu0 0.0
        %3373 = vmatprep.subr.mxu0 0.0
        %3374 = vmatpush1.msra.mxu0 0.0
        %3375 = vmatprep.subr.mxu0 0.0
        %3376 = vmatpush1.msra.mxu0 0.0
        %3377 = vmatprep.subr.mxu0 0.0
        %3378 = vmatpush1.msra.mxu0 0.0
        %3379 = vmatprep.subr.mxu0 0.0
        %3380 = vmatpush1.msra.mxu0 0.0
        %3381 = vmatprep.subr.mxu0 0.0
        %3382 = vmatpush1.msra.mxu0 0.0
        %3383 = vmatprep.subr.mxu0 0.0
        %3384 = vmatpush1.msra.mxu0 0.0
        %3385 = vmatprep.subr.mxu0 0.0
        %3386 = vmatpush1.msra.mxu0 0.0
        %3387 = vmatprep.subr.mxu0 0.0
        %3388 = vmatpush1.msra.mxu0 0.0
        %3389 = vmatprep.subr.mxu0 0.0
        %3390 = vmatpush1.msra.mxu0 0.0
        %3391 = vmatprep.subr.mxu0 0.0
        %3392 = vmatpush1.msra.mxu0 0.0
        %3393 = vmatprep.subr.mxu0 0.0
        %3394 = vmatpush1.msra.mxu0 0.0
        %3395 = vmatprep.subr.mxu0 0.0
        %3396 = vmatpush1.msra.mxu0 0.0
        %3397 = vmatprep.subr.mxu0 0.0
        %3398 = vmatpush1.msra.mxu0 0.0
        %3399 = vmatprep.subr.mxu0 0.0
        %3400 = vmatpush1.msra.mxu0 0.0
        %3401 = vmatprep.subr.mxu0 0.0
        %3402 = vmatpush1.msra.mxu0 0.0
        %3403 = vmatprep.subr.mxu0 0.0
        %3404 = vmatpush1.msra.mxu0 0.0
        %3405 = vmatprep.subr.mxu0 0.0
        %3406 = vmatpush1.msra.mxu0 0.0
        %3407 = vmatprep.mubr.f32.mxu0 0.0
        %3408 = vmatmul.mubr.f32.gmra.mrb[0].mxu0 %v3338
        %v3409 = vpop.f32.mrb[0].mxu0
        %v3410 = vadd.f32 0.0, %v3409
        %v3411 = vpop.f32.mrb[0].mxu0
        %3412 = vmatprep.mubr.f32.mxu0 0.0
        %3413 = vmatmul.mubr.f32.gmra.mrb[0].mxu0 %v3341
        %v3414 = vpop.f32.mrb[0].mxu0
        %v3415 = vadd.f32 0.0, %v3414
        %v3416 = vpop.f32.mrb[0].mxu0
        %3417 = vdwg.mxu0
        %v3419 = vsel %vm1076, %v3151, 0
        %v3422 = vsel %vm1076, %v3156, 0
        %3424 = vmatprep.subr.mxu0 0.0
        %3425 = vmatpush1.msra.mxu0 %v3248
        %3426 = vmatprep.subr.mxu0 0.0
        %3427 = vmatpush1.msra.mxu0 %v3249
        %3428 = vmatprep.subr.mxu0 0.0
        %3429 = vmatpush1.msra.mxu0 %v3250
        %3430 = vmatprep.subr.mxu0 0.0
        %3431 = vmatpush1.msra.mxu0 %v3251
        %3432 = vmatprep.subr.mxu0 0.0
        %3433 = vmatpush1.msra.mxu0 0.0
        %3434 = vmatprep.subr.mxu0 0.0
        %3435 = vmatpush1.msra.mxu0 0.0
        %3436 = vmatprep.subr.mxu0 0.0
        %3437 = vmatpush1.msra.mxu0 0.0
        %3438 = vmatprep.subr.mxu0 0.0
        %3439 = vmatpush1.msra.mxu0 0.0
        %3440 = vmatprep.subr.mxu0 0.0
        %3441 = vmatpush1.msra.mxu0 0.0
        %3442 = vmatprep.subr.mxu0 0.0
        %3443 = vmatpush1.msra.mxu0 0.0
        %3444 = vmatprep.subr.mxu0 0.0
        %3445 = vmatpush1.msra.mxu0 0.0
        %3446 = vmatprep.subr.mxu0 0.0
        %3447 = vmatpush1.msra.mxu0 0.0
        %3448 = vmatprep.subr.mxu0 0.0
        %3449 = vmatpush1.msra.mxu0 0.0
        %3450 = vmatprep.subr.mxu0 0.0
        %3451 = vmatpush1.msra.mxu0 0.0
        %3452 = vmatprep.subr.mxu0 0.0
        %3453 = vmatpush1.msra.mxu0 0.0
        %3454 = vmatprep.subr.mxu0 0.0
        %3455 = vmatpush1.msra.mxu0 0.0
        %3456 = vmatprep.subr.mxu0 0.0
        %3457 = vmatpush1.msra.mxu0 0.0
        %3458 = vmatprep.subr.mxu0 0.0
        %3459 = vmatpush1.msra.mxu0 0.0
        %3460 = vmatprep.subr.mxu0 0.0
        %3461 = vmatpush1.msra.mxu0 0.0
        %3462 = vmatprep.subr.mxu0 0.0
        %3463 = vmatpush1.msra.mxu0 0.0
        %3464 = vmatprep.subr.mxu0 0.0
        %3465 = vmatpush1.msra.mxu0 0.0
        %3466 = vmatprep.subr.mxu0 0.0
        %3467 = vmatpush1.msra.mxu0 0.0
        %3468 = vmatprep.subr.mxu0 0.0
        %3469 = vmatpush1.msra.mxu0 0.0
        %3470 = vmatprep.subr.mxu0 0.0
        %3471 = vmatpush1.msra.mxu0 0.0
        %3472 = vmatprep.subr.mxu0 0.0
        %3473 = vmatpush1.msra.mxu0 0.0
        %3474 = vmatprep.subr.mxu0 0.0
        %3475 = vmatpush1.msra.mxu0 0.0
        %3476 = vmatprep.subr.mxu0 0.0
        %3477 = vmatpush1.msra.mxu0 0.0
        %3478 = vmatprep.subr.mxu0 0.0
        %3479 = vmatpush1.msra.mxu0 0.0
        %3480 = vmatprep.subr.mxu0 0.0
        %3481 = vmatpush1.msra.mxu0 0.0
        %3482 = vmatprep.subr.mxu0 0.0
        %3483 = vmatpush1.msra.mxu0 0.0
        %3484 = vmatprep.subr.mxu0 0.0
        %3485 = vmatpush1.msra.mxu0 0.0
        %3486 = vmatprep.subr.mxu0 0.0
        %3487 = vmatpush1.msra.mxu0 0.0
        %3488 = vmatprep.mubr.f32.mxu0 0.0
        %3489 = vmatmul.mubr.f32.gmra.mrb[0].mxu0 %v3419
        %v3490 = vpop.f32.mrb[0].mxu0
        %v3491 = vadd.f32 0.0, %v3490
        %v3492 = vpop.f32.mrb[0].mxu0
        %3493 = vmatprep.mubr.f32.mxu0 0.0
        %3494 = vmatmul.mubr.f32.gmra.mrb[0].mxu0 %v3422
        %v3495 = vpop.f32.mrb[0].mxu0
        %v3496 = vadd.f32 0.0, %v3495
        %v3497 = vpop.f32.mrb[0].mxu0
        %3498 = vdwg.mxu0
        %v3500 = vsel %vm1076, %v3232, 0
        %v3503 = vsel %vm1076, %v3237, 0
        %3505 = vmatprep.subr.mxu0 0.0
        %3506 = vmatpush1.msra.mxu0 %v3252
        %3507 = vmatprep.subr.mxu0 0.0
        %3508 = vmatpush1.msra.mxu0 %v3253
        %3509 = vmatprep.subr.mxu0 0.0
        %3510 = vmatpush1.msra.mxu0 %v3254
        %3511 = vmatprep.subr.mxu0 0.0
        %3512 = vmatpush1.msra.mxu0 %v3255
        %3513 = vmatprep.subr.mxu0 0.0
        %3514 = vmatpush1.msra.mxu0 0.0
        %3515 = vmatprep.subr.mxu0 0.0
        %3516 = vmatpush1.msra.mxu0 0.0
        %3517 = vmatprep.subr.mxu0 0.0
        %3518 = vmatpush1.msra.mxu0 0.0
        %3519 = vmatprep.subr.mxu0 0.0
        %3520 = vmatpush1.msra.mxu0 0.0
        %3521 = vmatprep.subr.mxu0 0.0
        %3522 = vmatpush1.msra.mxu0 0.0
        %3523 = vmatprep.subr.mxu0 0.0
        %3524 = vmatpush1.msra.mxu0 0.0
        %3525 = vmatprep.subr.mxu0 0.0
        %3526 = vmatpush1.msra.mxu0 0.0
        %3527 = vmatprep.subr.mxu0 0.0
        %3528 = vmatpush1.msra.mxu0 0.0
        %3529 = vmatprep.subr.mxu0 0.0
        %3530 = vmatpush1.msra.mxu0 0.0
        %3531 = vmatprep.subr.mxu0 0.0
        %3532 = vmatpush1.msra.mxu0 0.0
        %3533 = vmatprep.subr.mxu0 0.0
        %3534 = vmatpush1.msra.mxu0 0.0
        %3535 = vmatprep.subr.mxu0 0.0
        %3536 = vmatpush1.msra.mxu0 0.0
        %3537 = vmatprep.subr.mxu0 0.0
        %3538 = vmatpush1.msra.mxu0 0.0
        %3539 = vmatprep.subr.mxu0 0.0
        %3540 = vmatpush1.msra.mxu0 0.0
        %3541 = vmatprep.subr.mxu0 0.0
        %3542 = vmatpush1.msra.mxu0 0.0
        %3543 = vmatprep.subr.mxu0 0.0
        %3544 = vmatpush1.msra.mxu0 0.0
        %3545 = vmatprep.subr.mxu0 0.0
        %3546 = vmatpush1.msra.mxu0 0.0
        %3547 = vmatprep.subr.mxu0 0.0
        %3548 = vmatpush1.msra.mxu0 0.0
        %3549 = vmatprep.subr.mxu0 0.0
        %3550 = vmatpush1.msra.mxu0 0.0
        %3551 = vmatprep.subr.mxu0 0.0
        %3552 = vmatpush1.msra.mxu0 0.0
        %3553 = vmatprep.subr.mxu0 0.0
        %3554 = vmatpush1.msra.mxu0 0.0
        %3555 = vmatprep.subr.mxu0 0.0
        %3556 = vmatpush1.msra.mxu0 0.0
        %3557 = vmatprep.subr.mxu0 0.0
        %3558 = vmatpush1.msra.mxu0 0.0
        %3559 = vmatprep.subr.mxu0 0.0
        %3560 = vmatpush1.msra.mxu0 0.0
        %3561 = vmatprep.subr.mxu0 0.0
        %3562 = vmatpush1.msra.mxu0 0.0
        %3563 = vmatprep.subr.mxu0 0.0
        %3564 = vmatpush1.msra.mxu0 0.0
        %3565 = vmatprep.subr.mxu0 0.0
        %3566 = vmatpush1.msra.mxu0 0.0
        %3567 = vmatprep.subr.mxu0 0.0
        %3568 = vmatpush1.msra.mxu0 0.0
        %3569 = vmatprep.mubr.f32.mxu0 0.0
        %3570 = vmatmul.mubr.f32.gmra.mrb[0].mxu0 %v3500
        %v3571 = vpop.f32.mrb[0].mxu0
        %v3572 = vadd.f32 0.0, %v3571
        %v3573 = vpop.f32.mrb[0].mxu0
        %3574 = vmatprep.mubr.f32.mxu0 0.0
        %3575 = vmatmul.mubr.f32.gmra.mrb[0].mxu0 %v3503
        %v3576 = vpop.f32.mrb[0].mxu0
        %v3577 = vadd.f32 0.0, %v3576
        %v3578 = vpop.f32.mrb[0].mxu0
        %3579 = vdwg.mxu0
        %v3580 = vadd.f32 %v3329, %v3410
        %v3581 = vadd.f32 %v3580, %v3491
        %v3582 = vadd.f32 %v3581, %v3572
        %v3583 = vadd.f32 %v3334, %v3415
        %v3584 = vadd.f32 %v3583, %v3496
        %v3585 = vadd.f32 %v3584, %v3577
        %v3586 = vld [vmem:[%s14] sm:$0x1]
        %v3588 = vlaneseq
        %v3589 = vshrl.u32 %v3588, 7
        %v3590 = vsub.s32 0, %v3589
        %v3591 = vrot.slane %v3586, %v3590
        %v3593 = vadd.f32 %v3582, %v3591
        %v3594 = vadd.f32 %v3585, %v3591
        %v3595 = vadd.f32 %v2196, %v3593
        %v3596 = vadd.f32 %v2197, %v3594
        %3597 = vadd.xlane.f32.xlu0 %v3595
        %v3598 = vpop.xlane.xlu0 %3597
        %3599 = vadd.xlane.f32.xlu0 %v3596
        %v3600 = vpop.xlane.xlu0 %3599
        %v3601 = vmul.f32 %v3598, %v783
        %v3602 = vmul.f32 %v3600, %v783
        %v3603 = vsub.f32 %v3595, %v3601
        %v3604 = vsub.f32 %v3596, %v3602
        %v3605 = vmul.f32 %v3603, %v3603
        %v3606 = vmul.f32 %v3604, %v3604
        %3607 = vadd.xlane.f32.xlu0 %v3605
        %v3608 = vpop.xlane.xlu0 %3607
        %3609 = vadd.xlane.f32.xlu0 %v3606
        %v3610 = vpop.xlane.xlu0 %3609
        %v3611 = vmul.f32 %v3608, %v783
        %v3612 = vmul.f32 %v3610, %v783
        %v3613 = vadd.f32 %v3611, 1e-05
        %v3614 = vadd.f32 %v3612, 1e-05
        %v3615 = vrsqrt.pop %v3613
        %v3616 = vrsqrt.pop %v3614
        %v3617 = vmul.f32 %v3603, %v3615
        %v3618 = vmul.f32 %v3604, %v3616
        %v3619 = vld [vmem:[%s4] sm:$0x1]
        %v3621 = vlaneseq
        %v3622 = vshrl.u32 %v3621, 7
        %v3623 = vsub.s32 0, %v3622
        %v3624 = vrot.slane %v3619, %v3623
        %v3626 = vmul.f32 %v3617, %v3624
        %v3627 = vmul.f32 %v3618, %v3624
        %v3628 = vld [vmem:[#allocation16] sm:$0xff]
        %v3629 = vld [vmem:[#allocation16 + $0x8] sm:$0xff]
        %v3630 = vld [vmem:[#allocation16 + $0x10] sm:$0xff]
        %v3631 = vld [vmem:[#allocation16 + $0x18] sm:$0xff]
        %v3632 = vld [vmem:[#allocation16 + $0x20] sm:$0xff]
        %v3633 = vld [vmem:[#allocation16 + $0x28] sm:$0xff]
        %v3634 = vld [vmem:[#allocation16 + $0x30] sm:$0xff]
        %v3635 = vld [vmem:[#allocation16 + $0x38] sm:$0xff]
        %v3636 = vld [vmem:[#allocation16 + $0x40] sm:$0xff]
        %v3637 = vld [vmem:[#allocation16 + $0x48] sm:$0xff]
        %v3638 = vld [vmem:[#allocation16 + $0x50] sm:$0xff]
        %v3639 = vld [vmem:[#allocation16 + $0x58] sm:$0xff]
        %v3640 = vld [vmem:[#allocation16 + $0x60] sm:$0xff]
        %v3641 = vld [vmem:[#allocation16 + $0x68] sm:$0xff]
        %v3642 = vld [vmem:[#allocation16 + $0x70] sm:$0xff]
        %v3643 = vld [vmem:[#allocation16 + $0x78] sm:$0xff]
        %v3644 = vld [vmem:[#allocation16 + $0x80] sm:$0xff]
        %v3645 = vld [vmem:[#allocation16 + $0x88] sm:$0xff]
        %v3646 = vld [vmem:[#allocation16 + $0x90] sm:$0xff]
        %v3647 = vld [vmem:[#allocation16 + $0x98] sm:$0xff]
        %v3648 = vld [vmem:[#allocation16 + $0xa0] sm:$0xff]
        %v3649 = vld [vmem:[#allocation16 + $0xa8] sm:$0xff]
        %v3650 = vld [vmem:[#allocation16 + $0xb0] sm:$0xff]
        %v3651 = vld [vmem:[#allocation16 + $0xb8] sm:$0xff]
        %v3652 = vld [vmem:[#allocation16 + $0xc0] sm:$0xff]
        %v3653 = vld [vmem:[#allocation16 + $0xc8] sm:$0xff]
        %v3654 = vld [vmem:[#allocation16 + $0xd0] sm:$0xff]
        %v3655 = vld [vmem:[#allocation16 + $0xd8] sm:$0xff]
        %v3656 = vld [vmem:[#allocation16 + $0xe0] sm:$0xff]
        %v3657 = vld [vmem:[#allocation16 + $0xe8] sm:$0xff]
        %v3658 = vld [vmem:[#allocation16 + $0xf0] sm:$0xff]
        %v3659 = vld [vmem:[#allocation16 + $0xf8] sm:$0xff]
        %v3660 = vld [vmem:[%s16] sm:$0x3]
        %v3662 = vlaneseq
        %v3663 = vshrl.u32 %v3662, 7
        %v3664 = vsub.s32 0, %v3663
        %v3665 = vrot.slane %v3660, %v3664
        %v3666 = vlaneseq
        %v3667 = vshrl.u32 %v3666, 7
        %v3668 = vsub.s32 1, %v3667
        %v3669 = vrot.slane %v3660, %v3668
        %3672 = vmatprep.subr.mxu0 %v3629
        %3673 = vmatpush1.msra.mxu0 %v3628
        %3674 = vmatprep.subr.mxu0 %v3631
        %3675 = vmatpush1.msra.mxu0 %v3630
        %3676 = vmatprep.subr.mxu0 %v3633
        %3677 = vmatpush1.msra.mxu0 %v3632
        %3678 = vmatprep.subr.mxu0 %v3635
        %3679 = vmatpush1.msra.mxu0 %v3634
        %3680 = vmatprep.subr.mxu0 %v3637
        %3681 = vmatpush1.msra.mxu0 %v3636
        %3682 = vmatprep.subr.mxu0 %v3639
        %3683 = vmatpush1.msra.mxu0 %v3638
        %3684 = vmatprep.subr.mxu0 %v3641
        %3685 = vmatpush1.msra.mxu0 %v3640
        %3686 = vmatprep.subr.mxu0 %v3643
        %3687 = vmatpush1.msra.mxu0 %v3642
        %3688 = vmatprep.subr.mxu0 %v3645
        %3689 = vmatpush1.msra.mxu0 %v3644
        %3690 = vmatprep.subr.mxu0 %v3647
        %3691 = vmatpush1.msra.mxu0 %v3646
        %3692 = vmatprep.subr.mxu0 %v3649
        %3693 = vmatpush1.msra.mxu0 %v3648
        %3694 = vmatprep.subr.mxu0 %v3651
        %3695 = vmatpush1.msra.mxu0 %v3650
        %3696 = vmatprep.subr.mxu0 %v3653
        %3697 = vmatpush1.msra.mxu0 %v3652
        %3698 = vmatprep.subr.mxu0 %v3655
        %3699 = vmatpush1.msra.mxu0 %v3654
        %3700 = vmatprep.subr.mxu0 %v3657
        %3701 = vmatpush1.msra.mxu0 %v3656
        %3702 = vmatprep.subr.mxu0 %v3659
        %3703 = vmatpush1.msra.mxu0 %v3658
        %3704 = vmatprep.subr.mxu0 0.0
        %3705 = vmatpush1.msra.mxu0 0.0
        %3706 = vmatprep.subr.mxu0 0.0
        %3707 = vmatpush1.msra.mxu0 0.0
        %3708 = vmatprep.subr.mxu0 0.0
        %3709 = vmatpush1.msra.mxu0 0.0
        %3710 = vmatprep.subr.mxu0 0.0
        %3711 = vmatpush1.msra.mxu0 0.0
        %3712 = vmatprep.subr.mxu0 0.0
        %3713 = vmatpush1.msra.mxu0 0.0
        %3714 = vmatprep.subr.mxu0 0.0
        %3715 = vmatpush1.msra.mxu0 0.0
        %3716 = vmatprep.subr.mxu0 0.0
        %3717 = vmatpush1.msra.mxu0 0.0
        %3718 = vmatprep.subr.mxu0 0.0
        %3719 = vmatpush1.msra.mxu0 0.0
        %3720 = vmatprep.subr.mxu0 0.0
        %3721 = vmatpush1.msra.mxu0 0.0
        %3722 = vmatprep.subr.mxu0 0.0
        %3723 = vmatpush1.msra.mxu0 0.0
        %3724 = vmatprep.subr.mxu0 0.0
        %3725 = vmatpush1.msra.mxu0 0.0
        %3726 = vmatprep.subr.mxu0 0.0
        %3727 = vmatpush1.msra.mxu0 0.0
        %3728 = vmatprep.subr.mxu0 0.0
        %3729 = vmatpush1.msra.mxu0 0.0
        %3730 = vmatprep.subr.mxu0 0.0
        %3731 = vmatpush1.msra.mxu0 0.0
        %3732 = vmatprep.subr.mxu0 0.0
        %3733 = vmatpush1.msra.mxu0 0.0
        %3734 = vmatprep.subr.mxu0 0.0
        %3735 = vmatpush1.msra.mxu0 0.0
        %3736 = vmatprep.mubr.f32.mxu0 0.0
        %3737 = vmatmul.mubr.f32.gmra.mrb[0].mxu0 %v3626
        %v3738 = vpop.f32.mrb[0].mxu0
        %v3739 = vadd.f32 %v3665, %v3738
        %v3740 = vpop.f32.mrb[0].mxu0
        %v3741 = vadd.f32 %v3669, %v3740
        %3742 = vmatprep.mubr.f32.mxu0 0.0
        %3743 = vmatmul.mubr.f32.gmra.mrb[0].mxu0 %v3627
        %v3744 = vpop.f32.mrb[0].mxu0
        %v3745 = vadd.f32 %v3665, %v3744
        %v3746 = vpop.f32.mrb[0].mxu0
        %v3747 = vadd.f32 %v3669, %v3746
        %3748 = vdwg.mxu0
        %v3749 = vmax.f32 %v3739, 0.0
        %v3750 = vmax.f32 %v3741, 0.0
        %v3751 = vmax.f32 %v3745, 0.0
        %v3752 = vmax.f32 %v3747, 0.0
        %v3753 = vld [vmem:[#allocation17] sm:$0xff]
        %v3754 = vld [vmem:[#allocation17 + $0x8] sm:$0xff]
        %v3755 = vld [vmem:[#allocation17 + $0x10] sm:$0xff]
        %v3756 = vld [vmem:[#allocation17 + $0x18] sm:$0xff]
        %v3757 = vld [vmem:[#allocation17 + $0x20] sm:$0xff]
        %v3758 = vld [vmem:[#allocation17 + $0x28] sm:$0xff]
        %v3759 = vld [vmem:[#allocation17 + $0x30] sm:$0xff]
        %v3760 = vld [vmem:[#allocation17 + $0x38] sm:$0xff]
        %v3761 = vld [vmem:[#allocation17 + $0x40] sm:$0xff]
        %v3762 = vld [vmem:[#allocation17 + $0x48] sm:$0xff]
        %v3763 = vld [vmem:[#allocation17 + $0x50] sm:$0xff]
        %v3764 = vld [vmem:[#allocation17 + $0x58] sm:$0xff]
        %v3765 = vld [vmem:[#allocation17 + $0x60] sm:$0xff]
        %v3766 = vld [vmem:[#allocation17 + $0x68] sm:$0xff]
        %v3767 = vld [vmem:[#allocation17 + $0x70] sm:$0xff]
        %v3768 = vld [vmem:[#allocation17 + $0x78] sm:$0xff]
        %v3769 = vld [vmem:[#allocation17 + $0x80] sm:$0xff]
        %v3770 = vld [vmem:[#allocation17 + $0x88] sm:$0xff]
        %v3771 = vld [vmem:[#allocation17 + $0x90] sm:$0xff]
        %v3772 = vld [vmem:[#allocation17 + $0x98] sm:$0xff]
        %v3773 = vld [vmem:[#allocation17 + $0xa0] sm:$0xff]
        %v3774 = vld [vmem:[#allocation17 + $0xa8] sm:$0xff]
        %v3775 = vld [vmem:[#allocation17 + $0xb0] sm:$0xff]
        %v3776 = vld [vmem:[#allocation17 + $0xb8] sm:$0xff]
        %v3777 = vld [vmem:[#allocation17 + $0xc0] sm:$0xff]
        %v3778 = vld [vmem:[#allocation17 + $0xc8] sm:$0xff]
        %v3779 = vld [vmem:[#allocation17 + $0xd0] sm:$0xff]
        %v3780 = vld [vmem:[#allocation17 + $0xd8] sm:$0xff]
        %v3781 = vld [vmem:[#allocation17 + $0xe0] sm:$0xff]
        %v3782 = vld [vmem:[#allocation17 + $0xe8] sm:$0xff]
        %v3783 = vld [vmem:[#allocation17 + $0xf0] sm:$0xff]
        %v3784 = vld [vmem:[#allocation17 + $0xf8] sm:$0xff]
        %v3785 = vld [vmem:[%s18] sm:$0x1]
        %v3787 = vlaneseq
        %v3788 = vshrl.u32 %v3787, 7
        %v3789 = vsub.s32 0, %v3788
        %v3790 = vrot.slane %v3785, %v3789
        %3792 = vmatprep.subr.mxu0 0.0
        %3793 = vmatpush1.msra.mxu0 %v3753
        %3794 = vmatprep.subr.mxu0 0.0
        %3795 = vmatpush1.msra.mxu0 %v3754
        %3796 = vmatprep.subr.mxu0 0.0
        %3797 = vmatpush1.msra.mxu0 %v3755
        %3798 = vmatprep.subr.mxu0 0.0
        %3799 = vmatpush1.msra.mxu0 %v3756
        %3800 = vmatprep.subr.mxu0 0.0
        %3801 = vmatpush1.msra.mxu0 %v3757
        %3802 = vmatprep.subr.mxu0 0.0
        %3803 = vmatpush1.msra.mxu0 %v3758
        %3804 = vmatprep.subr.mxu0 0.0
        %3805 = vmatpush1.msra.mxu0 %v3759
        %3806 = vmatprep.subr.mxu0 0.0
        %3807 = vmatpush1.msra.mxu0 %v3760
        %3808 = vmatprep.subr.mxu0 0.0
        %3809 = vmatpush1.msra.mxu0 %v3761
        %3810 = vmatprep.subr.mxu0 0.0
        %3811 = vmatpush1.msra.mxu0 %v3762
        %3812 = vmatprep.subr.mxu0 0.0
        %3813 = vmatpush1.msra.mxu0 %v3763
        %3814 = vmatprep.subr.mxu0 0.0
        %3815 = vmatpush1.msra.mxu0 %v3764
        %3816 = vmatprep.subr.mxu0 0.0
        %3817 = vmatpush1.msra.mxu0 %v3765
        %3818 = vmatprep.subr.mxu0 0.0
        %3819 = vmatpush1.msra.mxu0 %v3766
        %3820 = vmatprep.subr.mxu0 0.0
        %3821 = vmatpush1.msra.mxu0 %v3767
        %3822 = vmatprep.subr.mxu0 0.0
        %3823 = vmatpush1.msra.mxu0 %v3768
        %3824 = vmatprep.subr.mxu0 0.0
        %3825 = vmatpush1.msra.mxu0 %v3769
        %3826 = vmatprep.subr.mxu0 0.0
        %3827 = vmatpush1.msra.mxu0 %v3770
        %3828 = vmatprep.subr.mxu0 0.0
        %3829 = vmatpush1.msra.mxu0 %v3771
        %3830 = vmatprep.subr.mxu0 0.0
        %3831 = vmatpush1.msra.mxu0 %v3772
        %3832 = vmatprep.subr.mxu0 0.0
        %3833 = vmatpush1.msra.mxu0 %v3773
        %3834 = vmatprep.subr.mxu0 0.0
        %3835 = vmatpush1.msra.mxu0 %v3774
        %3836 = vmatprep.subr.mxu0 0.0
        %3837 = vmatpush1.msra.mxu0 %v3775
        %3838 = vmatprep.subr.mxu0 0.0
        %3839 = vmatpush1.msra.mxu0 %v3776
        %3840 = vmatprep.subr.mxu0 0.0
        %3841 = vmatpush1.msra.mxu0 %v3777
        %3842 = vmatprep.subr.mxu0 0.0
        %3843 = vmatpush1.msra.mxu0 %v3778
        %3844 = vmatprep.subr.mxu0 0.0
        %3845 = vmatpush1.msra.mxu0 %v3779
        %3846 = vmatprep.subr.mxu0 0.0
        %3847 = vmatpush1.msra.mxu0 %v3780
        %3848 = vmatprep.subr.mxu0 0.0
        %3849 = vmatpush1.msra.mxu0 %v3781
        %3850 = vmatprep.subr.mxu0 0.0
        %3851 = vmatpush1.msra.mxu0 %v3782
        %3852 = vmatprep.subr.mxu0 0.0
        %3853 = vmatpush1.msra.mxu0 %v3783
        %3854 = vmatprep.subr.mxu0 0.0
        %3855 = vmatpush1.msra.mxu0 %v3784
        %3856 = vmatprep.mubr.f32.mxu0 %v3750
        %3857 = vmatmul.mubr.f32.gmra.mrb[0].mxu0 %v3749
        %v3858 = vpop.f32.mrb[0].mxu0
        %v3859 = vadd.f32 %v3790, %v3858
        %v3860 = vpop.f32.mrb[0].mxu0
        %3861 = vmatprep.mubr.f32.mxu0 %v3752
        %3862 = vmatmul.mubr.f32.gmra.mrb[0].mxu0 %v3751
        %v3863 = vpop.f32.mrb[0].mxu0
        %v3864 = vadd.f32 %v3790, %v3863
        %v3865 = vpop.f32.mrb[0].mxu0
        %3866 = vdwg.mxu0
        %v3867 = vadd.f32 %v3595, %v3859
        %v3868 = vadd.f32 %v3596, %v3864
        %3869 = vst [vmem:[%s774] sm:$0xff] %v3867
        %3870 = vst [vmem:[%s774 + $0x8] sm:$0xff] %v3868
        %s3871 = sand.u32 %s460, 1
        %s3872 = scalar_lea.sflag [#allocation4], %s3871
        %s3873 = sand.u32 %s460, 1
        %s3874 = smul.addr %s3873, 16
        %s3875 = scalar_lea.vmem [#allocation19], %s3874
        // Predicated region
        $region137: #{tpu_custom_call.1} parent=95 // pred_check
          %p3876 = pneg %p470
        $region138: #{tpu_custom_call.1} parent=95 // pred_check_branch
          %3878 = sbr.rel (%p3876) target = $region140
        $region139: #{tpu_custom_call.1} parent=95 // pred_region
          %s3880 = ssub.s32 256, 256
          %3881 = vsyncadd %s3872, %s3880
          %s3882 = smul.addr %s43, 2
          %s3883 = smul.addr %s3882, 128
          %s3884 = scalar_lea.hbm %s19, %s3883
          %s3885 = sshll.u32 %s3875, 4
          %s3886 = int_to_ptr.vmem [resolvable:$true] %s3885
          %3891 = dma.vmem_to_hbm [thread:$0]  %s3886, 256, %s3884, %s3872, 128, 128, 8
        $region140: #{tpu_custom_call.1} parent=95 // pred_fallthru
          _
      $region96: #{tpu_custom_call.1} parent=5 // pred_fallthru
        _
      %p3892 = scmp.le.s32.totalorder 2, %s38
      // Predicated region
      $region141: #{tpu_custom_call.1} parent=5 // pred_check
        %p3893 = pneg %p3892
      $region142: #{tpu_custom_call.1} parent=5 // pred_check_branch
        %3895 = sbr.rel (%p3893) target = $region144
      $region143: #{tpu_custom_call.1} parent=5 // pred_region
        %s3896 = ssub.s32 %s38, 2
        // Predicated region
        $region145: #{tpu_custom_call.1} parent=143 // pred_check
          %p3897 = pneg %p476
        $region146: #{tpu_custom_call.1} parent=143 // pred_check_branch
          %3899 = sbr.rel (%p3897) target = $region148
        $region147: #{tpu_custom_call.1} parent=143 // pred_region
          %s3900 = sand.u32 %s461, 1
          %s3901 = scalar_lea.sflag [#allocation4], %s3900
          %s3902 = sand.u32 %s461, 1
          %s3903 = smul.addr %s3902, 16
          %s3904 = scalar_lea.vmem [#allocation19], %s3903
          %3905 = dma.done %s3901, 256
        $region148: #{tpu_custom_call.1} parent=143 // pred_fallthru
          _
      $region144: #{tpu_custom_call.1} parent=5 // pred_fallthru
        _
    $region6: #{tpu_custom_call.1} parent=1 // loop_footer
      %s42 = sadd.s32 1, %s38
    $region7: #{tpu_custom_call.1} parent=1 // loop_footer_branch
      %37 = sbr.rel target = $region3
    $region8: #{tpu_custom_call.1} parent=1 // loop_exit
      _
    %3906 = vsyncpa [#allocation3], 1
    %s3907 = scalar_lea.sflag [#allocation3], 1
    %3908 = vsyncpa %s3907, 1
    %3909 = vsyncpa [#allocation6], 1
    %s3910 = scalar_lea.sflag [#allocation6], 1
    %3911 = vsyncpa %s3910, 1
    %3912 = vsyncpa [#allocation9], 1
    %3913 = vsyncpa [#allocation12], 1
    %3914 = vsyncpa [#allocation15], 1
    %3915 = vsyncpa [#allocation18], 1
    %3916 = vsyncpa [#allocation4], 1
    %s3917 = scalar_lea.sflag [#allocation4], 1
    %3918 = vsyncpa %s3917, 1

</llo_original>
